<compile_context>
chip_gen: v5e
topology: v5e:2x2
jax: 0.10.0
libtpu: 0.0.40
codegen_flags: <defaults>
</compile_context>

<pallas_src>
import math

import jax
import jax.numpy as jnp
from jax.experimental import pallas as pl
from jax.experimental.pallas import tpu as pltpu

# ---- model hyperparameters (mCNN defaults) ----------------------------------
MAX_LEN = 28           # sequence length
LPAD = 32              # MAX_LEN rounded up to a sublane multiple (8)
DIM = 128              # d_model
NHEAD = 8
HEAD_DIM = DIM // NHEAD
NUM_LAYERS = 2
DIM_FF = 256
CIN = 4
K = 7                  # stem_kernel_size
PAD = K - 1            # 6 -> 'same' padding (3, 3)
EPS_BN = 1e-5
EPS_LN = 1e-5

# The circular sublane rolls emulate 'same' zero padding only because rows
# MAX_LEN..LPAD-1 of the padded activation are zero and wide enough (>= PAD//2)
# to absorb the wrap-around.
assert LPAD % 8 == 0
assert LPAD - MAX_LEN >= PAD // 2, "zero-pad rows must cover the conv halo"

# ---- f32 stem slab layout (row offsets, all 8-aligned slices) ---------------
_ROW_W1 = 0                        # rows 0..K*CIN-1 : conv1 im2col weight
_ROW_B1 = 32                       # conv1 bias
_ROW_BNS = 33                      # folded BatchNorm scale
_ROW_BNB = 34                      # folded BatchNorm shift
_ROW_B2 = 35                       # conv2 bias
_ROW_PE = 40                       # rows 40..40+L-1 : positional encoding
_STEM_ROWS = _ROW_PE + MAX_LEN + 4  # 72

_VEC_W = 3 * DIM                   # 384-wide f32 bias/LN slab (8 rows / layer)


# ---- in-kernel math helpers --------------------------------------------------
def _gelu(x):
    # tanh-form GELU (EUP tanh, single bundle slot); ~1e-3 max abs diff vs
    # torch's exact erf GELU.
    # TODO(synk): switch to exact erf GELU if lax.erf gains a Mosaic lowering.
    c = 0.7978845608028654  # sqrt(2/pi)
    return 0.5 * x * (1.0 + jnp.tanh(c * (x + 0.044715 * x * x * x)))


def _layernorm(x, g, b):
    mu = jnp.mean(x, axis=-1, keepdims=True)
    xc = x - mu
    var = jnp.mean(xc * xc, axis=-1, keepdims=True)
    return xc * jax.lax.rsqrt(var + EPS_LN) * g + b


def _encoder_layer(x, wqkv, bqkv, wo, bo, wf1, bf1, wf2, bf2,
                   ln1_g, ln1_b, ln2_g, ln2_b):
    """One nn.TransformerEncoderLayer (batch_first, post-norm, GELU, eval)."""
    bf16 = jnp.bfloat16
    f32 = jnp.float32

    # Fused QKV projection: one (L,128)@(128,384) bf16 matmul, f32 accumulate.
    # 1/sqrt(head_dim) is folded into the Q columns of wqkv/bqkv at init time.
    qkv = jnp.dot(x.astype(bf16), wqkv, preferred_element_type=f32) + bqkv
    qb = qkv[:, 0:DIM].astype(bf16)
    kb = qkv[:, DIM:2 * DIM].astype(bf16)
    vb = qkv[:, 2 * DIM:3 * DIM].astype(bf16)

    attn = None
    for head in range(NHEAD):
        sl = slice(head * HEAD_DIM, (head + 1) * HEAD_DIM)
        # scores = qh @ kh^T (contract head dim, no explicit transpose)
        s = jax.lax.dot_general(qb[:, sl], kb[:, sl], (((1,), (1,)), ((), ())),
                                preferred_element_type=f32)        # (L, L) f32
        s = s - jnp.max(s, axis=-1, keepdims=True)
        p = jnp.exp(s)
        p = p * pl.reciprocal(jnp.sum(p, axis=-1, keepdims=True), approx=True)
        oh = jnp.dot(p.astype(bf16), vb[:, sl],
                     preferred_element_type=f32)                    # (L, hd)
        # Accumulate through the matching 16-row slab of W_o: no lane-axis
        # concatenate of the 8 heads.
        contrib = jnp.dot(oh.astype(bf16), wo[sl, :],
                          preferred_element_type=f32)
        attn = contrib if attn is None else attn + contrib
    attn = attn + bo

    x1 = _layernorm(x + attn, ln1_g, ln1_b)
    ff = _gelu(jnp.dot(x1.astype(bf16), wf1, preferred_element_type=f32) + bf1)
    ff = jnp.dot(ff.astype(bf16), wf2, preferred_element_type=f32) + bf2
    return _layernorm(x1 + ff, ln2_g, ln2_b)


# ---- the single fused kernel -------------------------------------------------
def mcnn_kernel(xcol_ref, stem_ref, w2_ref, mat_ref, wf2_ref, vec_ref, out_ref):
    L = MAX_LEN
    f32 = jnp.float32
    bf16 = jnp.bfloat16

    # --- unpack stem params (one f32 slab, all 128-lane / 8-aligned slices) ---
    w1 = stem_ref[_ROW_W1:_ROW_W1 + K * CIN, :]          # (28, 128) f32
    b1 = stem_ref[_ROW_B1:_ROW_B1 + 1, :]
    bns = stem_ref[_ROW_BNS:_ROW_BNS + 1, :]
    bnb = stem_ref[_ROW_BNB:_ROW_BNB + 1, :]
    b2 = stem_ref[_ROW_B2:_ROW_B2 + 1, :]
    pe = stem_ref[_ROW_PE:_ROW_PE + L, :]                # (28, 128) f32

    # --- stem conv1 (4 -> DIM, K=7) as one im2col matmul ----------------------
    xcol = xcol_ref[0]                                   # (L, K*CIN) = (28, 28)
    h = jnp.dot(xcol, w1, preferred_element_type=f32) + b1

    # --- Residual(ConvBlock): BN(eval, folded) -> GELU -> conv (DIM->DIM, K=7)
    g = _gelu(h * bns + bnb)                             # (L, DIM) f32
    # 8-aligned zero-padded activation built in registers; rows L..LPAD-1 act
    # as the conv 'same' padding via the circular rolls below.
    gpad = jnp.concatenate([g, jnp.zeros((LPAD - L, DIM), f32)], axis=0)

    # conv2 as 7 roll-and-accumulate matmuls (no im2col scratch round trip):
    #   y[i] = sum_t g[i + t - 3] @ W2[t]   (zero outside [0, L))
    y = None
    for t in range(K):
        shift = (PAD // 2 - t) % LPAD
        rolled = gpad if shift == 0 else pltpu.roll(gpad, shift=shift, axis=0)
        yt = jnp.dot(rolled.astype(bf16), w2_ref[t * DIM:(t + 1) * DIM, :],
                     preferred_element_type=f32)         # (LPAD, DIM)
        y = yt if y is None else y + yt
    x = y[0:L, :] + b2 + h + pe       # conv2 + bias + residual + pos. enc.

    # --- 2x TransformerEncoderLayer -------------------------------------------
    for l in range(NUM_LAYERS):
        r0 = l * DIM
        wqkv = mat_ref[r0:r0 + DIM, 0:3 * DIM]                   # (128, 384) bf16
        wo = mat_ref[r0:r0 + DIM, 3 * DIM:4 * DIM]               # (128, 128) bf16
        wf1 = mat_ref[r0:r0 + DIM, 4 * DIM:4 * DIM + DIM_FF]     # (128, 256) bf16
        wf2 = wf2_ref[l * DIM_FF:(l + 1) * DIM_FF, :]            # (256, 128) bf16
        v0 = l * 8
        bqkv = vec_ref[v0:v0 + 1, 0:3 * DIM]
        bo = vec_ref[v0 + 1:v0 + 2, 0:DIM]
        ln1_g = vec_ref[v0 + 1:v0 + 2, DIM:2 * DIM]
        ln1_b = vec_ref[v0 + 1:v0 + 2, 2 * DIM:3 * DIM]
        bf1 = vec_ref[v0 + 2:v0 + 3, 0:DIM_FF]
        bf2 = vec_ref[v0 + 3:v0 + 4, 0:DIM]
        ln2_g = vec_ref[v0 + 3:v0 + 4, DIM:2 * DIM]
        ln2_b = vec_ref[v0 + 3:v0 + 4, 2 * DIM:3 * DIM]
        x = _encoder_layer(x, wqkv, bqkv, wo, bo, wf1, bf1, wf2, bf2,
                           ln1_g, ln1_b, ln2_g, ln2_b)

    out_ref[0] = x


# ---- host-side weight packing (5 resident slabs) ------------------------------
def _pack_params(params):
    f32, bf16 = jnp.float32, jnp.bfloat16

    stem = jnp.zeros((_STEM_ROWS, DIM), f32)
    stem = stem.at[_ROW_W1:_ROW_W1 + K * CIN, :].set(params["w1col"])
    stem = stem.at[_ROW_B1:_ROW_B1 + 1, :].set(params["b1"])
    stem = stem.at[_ROW_BNS:_ROW_BNS + 1, :].set(params["bn_scale"])
    stem = stem.at[_ROW_BNB:_ROW_BNB + 1, :].set(params["bn_shift"])
    stem = stem.at[_ROW_B2:_ROW_B2 + 1, :].set(params["b2"])
    stem = stem.at[_ROW_PE:_ROW_PE + MAX_LEN, :].set(params["pe"])

    stem_w2 = params["w2col"].astype(bf16)                       # (896, 128)

    mats, wf2s, vecs = [], [], []
    for lp in params["layers"]:
        wqkv = jnp.concatenate([lp["wq"], lp["wk"], lp["wv"]], axis=1)
        mats.append(jnp.concatenate([wqkv, lp["wo"], lp["wf1"]],
                                    axis=1).astype(bf16))        # (128, 768)
        wf2s.append(lp["wf2"].astype(bf16))                      # (256, 128)
        vec = jnp.zeros((8, _VEC_W), f32)
        vec = vec.at[0:1, :].set(
            jnp.concatenate([lp["bq"], lp["bk"], lp["bv"]], axis=1))
        vec = vec.at[1:2, :].set(
            jnp.concatenate([lp["bo"], lp["ln1_g"], lp["ln1_b"]], axis=1))
        vec = vec.at[2:3, 0:DIM_FF].set(lp["bf1"])
        vec = vec.at[3:4, :].set(
            jnp.concatenate([lp["bf2"], lp["ln2_g"], lp["ln2_b"]], axis=1))
        vecs.append(vec)

    enc_mat = jnp.concatenate(mats, axis=0)                      # (256, 768) bf16
    enc_wf2 = jnp.concatenate(wf2s, axis=0)                      # (512, 128) bf16
    enc_vec = jnp.concatenate(vecs, axis=0)                      # (16, 384) f32
    return stem, stem_w2, enc_mat, enc_wf2, enc_vec


# ---- wrapper: one pallas_call for the whole forward pass ---------------------
def mcnn_forward(x, params):
    B, L, cin = x.shape

    # Host-side im2col of the stem conv1 input -> lane-dense (B, L, K*CIN).
    xp = jnp.pad(x, ((0, 0), (PAD // 2, PAD - PAD // 2), (0, 0)))
    xcol = jnp.concatenate([xp[:, t:t + L, :] for t in range(K)], axis=-1)

    weights = _pack_params(params)
    # Constant-index specs: the 5 weight slabs are fetched to VMEM once and
    # stay resident across the (parallel) batch grid.
    w_specs = [pl.BlockSpec(w.shape, lambda b: (0, 0)) for w in weights]

    cost = pl.CostEstimate(flops=B * 23_000_000,
                           transcendentals=B * 31_000,
                           bytes_accessed=1_800_000)

    out = pl.pallas_call(
        mcnn_kernel,
        out_shape=jax.ShapeDtypeStruct((B, L, DIM), jnp.float32),
        grid=(B,),
        in_specs=[pl.BlockSpec((1, L, K * cin), lambda b: (b, 0, 0))] + w_specs,
        out_specs=pl.BlockSpec((1, L, DIM), lambda b: (b, 0, 0)),
        compiler_params=pltpu.CompilerParams(
            dimension_semantics=("parallel",)),
        cost_estimate=cost,
    )(xcol, *weights)
    return out.reshape(B, L * DIM)


# ---- deterministic parameter construction ------------------------------------
def init_params(key):
    keys = iter(jax.random.split(key, 96))

    def nrm(shape, scale=0.05):
        return scale * jax.random.normal(next(keys), shape, dtype=jnp.float32)

    p = {}
    # stem conv1: torch weight (DIM, CIN, K) laid out as w1col[t*CIN + c, d].
    p["w1col"] = nrm((K * CIN, DIM))
    p["b1"] = nrm((1, DIM))
    # BatchNorm1d(DIM), eval mode, folded into per-channel scale/shift.
    gamma = 1.0 + nrm((1, DIM))
    beta = nrm((1, DIM))
    run_mean = nrm((1, DIM))
    run_var = jnp.abs(nrm((1, DIM))) + 1.0
    bn_scale = gamma / jnp.sqrt(run_var + EPS_BN)
    p["bn_scale"] = bn_scale
    p["bn_shift"] = beta - run_mean * bn_scale
    # stem conv2: torch weight (DIM, DIM, K) laid out as w2col[t*DIM + c, d].
    p["w2col"] = nrm((K * DIM, DIM))
    p["b2"] = nrm((1, DIM))
    # positional encoding buffer (exactly as in PositionalEncoding.__init__).
    pos = jnp.arange(MAX_LEN, dtype=jnp.float32)[:, None]
    div = jnp.exp(jnp.arange(0, DIM, 2, dtype=jnp.float32)
                  * (-math.log(10000.0) / DIM))
    pe = jnp.zeros((MAX_LEN, DIM), jnp.float32)
    pe = pe.at[:, 0::2].set(jnp.sin(pos * div))
    pe = pe.at[:, 1::2].set(jnp.cos(pos * div))
    p["pe"] = pe

    # transformer encoder layers; linear weights stored pre-transposed (x @ W),
    # with 1/sqrt(head_dim) folded into the query projection.
    scale = 1.0 / math.sqrt(HEAD_DIM)
    layers = []
    for _ in range(NUM_LAYERS):
        layers.append({
            "wq": nrm((DIM, DIM)) * scale, "bq": nrm((1, DIM)) * scale,
            "wk": nrm((DIM, DIM)), "bk": nrm((1, DIM)),
            "wv": nrm((DIM, DIM)), "bv": nrm((1, DIM)),
            "wo": nrm((DIM, DIM)), "bo": nrm((1, DIM)),
            "ln1_g": 1.0 + nrm((1, DIM)), "ln1_b": nrm((1, DIM)),
            "wf1": nrm((DIM, DIM_FF)), "bf1": nrm((1, DIM_FF)),
            "wf2": nrm((DIM_FF, DIM)), "bf2": nrm((1, DIM)),
            "ln2_g": 1.0 + nrm((1, DIM)), "ln2_b": nrm((1, DIM)),
        })
    p["layers"] = layers
    return p


if __name__ == "__main__":
    key = jax.random.PRNGKey(0)
    pkey, xkey = jax.random.split(key)
    params = init_params(pkey)
    # mCNN.forward expects (B, L, 4) and permutes to NCW internally.
    x = jax.random.normal(xkey, (2, MAX_LEN, CIN), dtype=jnp.float32)
    fwd = jax.jit(mcnn_forward)
    out = jax.block_until_ready(fwd(x, params))
    assert out.shape == (2, MAX_LEN * DIM) and out.dtype == jnp.float32
    print("KERNEL_OK")
</pallas_src>

<mosaic_0001>
module attributes {stable_mosaic.version = 11 : i64} {
  func.func @mcnn_kernel(%arg0: i32, %arg1: memref<1x28x28xf32, #tpu.memory_space<vmem>>, %arg2: memref<72x128xf32, #tpu.memory_space<vmem>>, %arg3: memref<896x128xbf16, #tpu.memory_space<vmem>>, %arg4: memref<256x768xbf16, #tpu.memory_space<vmem>>, %arg5: memref<512x128xbf16, #tpu.memory_space<vmem>>, %arg6: memref<16x384xf32, #tpu.memory_space<vmem>>, %arg7: memref<1x28x128xf32, #tpu.memory_space<vmem>>) attributes {dimension_semantics = [#tpu.dimension_semantics<parallel>], iteration_bounds = array<i64: 2>, scalar_prefetch = 0 : i64, scratch_operands = 0 : i64, tpu.core_type = #tpu.core_type<tc>, window_params = [{transform_indices = @transform_0, window_bounds = array<i64: 1, 28, 28>}, {pipeline_mode = #tpu.pipeline_mode<synchronous>, transform_indices = @transform_1, window_bounds = array<i64: 72, 128>}, {pipeline_mode = #tpu.pipeline_mode<synchronous>, transform_indices = @transform_2, window_bounds = array<i64: 896, 128>}, {pipeline_mode = #tpu.pipeline_mode<synchronous>, transform_indices = @transform_3, window_bounds = array<i64: 256, 768>}, {pipeline_mode = #tpu.pipeline_mode<synchronous>, transform_indices = @transform_4, window_bounds = array<i64: 512, 128>}, {pipeline_mode = #tpu.pipeline_mode<synchronous>, transform_indices = @transform_5, window_bounds = array<i64: 16, 384>}, {transform_indices = @transform_6, window_bounds = array<i64: 1, 28, 128>}]} {
    %c0 = arith.constant 0 : index
    %c0_0 = arith.constant 0 : index
    %0 = vector.load %arg2[%c0, %c0_0] : memref<72x128xf32, #tpu.memory_space<vmem>>, vector<28x128xf32>
    %c32 = arith.constant 32 : index
    %c0_1 = arith.constant 0 : index
    %1 = vector.load %arg2[%c32, %c0_1] : memref<72x128xf32, #tpu.memory_space<vmem>>, vector<1x128xf32>
    %c33 = arith.constant 33 : index
    %c0_2 = arith.constant 0 : index
    %2 = vector.load %arg2[%c33, %c0_2] : memref<72x128xf32, #tpu.memory_space<vmem>>, vector<1x128xf32>
    %c34 = arith.constant 34 : index
    %c0_3 = arith.constant 0 : index
    %3 = vector.load %arg2[%c34, %c0_3] : memref<72x128xf32, #tpu.memory_space<vmem>>, vector<1x128xf32>
    %c35 = arith.constant 35 : index
    %c0_4 = arith.constant 0 : index
    %4 = vector.load %arg2[%c35, %c0_4] : memref<72x128xf32, #tpu.memory_space<vmem>>, vector<1x128xf32>
    %c40 = arith.constant 40 : index
    %c0_5 = arith.constant 0 : index
    %5 = vector.load %arg2[%c40, %c0_5] : memref<72x128xf32, #tpu.memory_space<vmem>>, vector<28x128xf32>
    %c0_6 = arith.constant 0 : index
    %c0_7 = arith.constant 0 : index
    %c0_8 = arith.constant 0 : index
    %6 = vector.load %arg1[%c0_6, %c0_7, %c0_8] : memref<1x28x28xf32, #tpu.memory_space<vmem>>, vector<1x28x28xf32>
    %7 = vector.shape_cast %6 : vector<1x28x28xf32> to vector<28x28xf32>
    %cst = arith.constant dense<0.000000e+00> : vector<28x128xf32>
    %8 = tpu.matmul %7, %0, %cst {dimension_numbers = #tpu.dot_dimension_numbers<[1], [0], [0], [1], [0, 0, 1, 1], [], []>} : vector<28x28xf32>, vector<28x128xf32>, vector<28x128xf32> -> vector<28x128xf32>
    %9 = vector.broadcast %1 : vector<1x128xf32> to vector<28x128xf32>
    %10 = arith.addf %8, %9 : vector<28x128xf32>
    %11 = vector.broadcast %2 : vector<1x128xf32> to vector<28x128xf32>
    %12 = arith.mulf %10, %11 : vector<28x128xf32>
    %13 = vector.broadcast %3 : vector<1x128xf32> to vector<28x128xf32>
    %14 = arith.addf %12, %13 : vector<28x128xf32>
    %cst_9 = arith.constant 5.000000e-01 : f32
    %15 = vector.broadcast %cst_9 : f32 to vector<28x128xf32>
    %16 = arith.mulf %15, %14 : vector<28x128xf32>
    %cst_10 = arith.constant 4.471500e-02 : f32
    %17 = vector.broadcast %cst_10 : f32 to vector<28x128xf32>
    %18 = arith.mulf %17, %14 : vector<28x128xf32>
    %19 = arith.mulf %18, %14 : vector<28x128xf32>
    %20 = arith.mulf %19, %14 : vector<28x128xf32>
    %21 = arith.addf %14, %20 : vector<28x128xf32>
    %cst_11 = arith.constant 0.797884583 : f32
    %22 = vector.broadcast %cst_11 : f32 to vector<28x128xf32>
    %23 = arith.mulf %22, %21 : vector<28x128xf32>
    %24 = math.tanh %23 : vector<28x128xf32>
    %cst_12 = arith.constant 1.000000e+00 : f32
    %25 = vector.broadcast %cst_12 : f32 to vector<28x128xf32>
    %26 = arith.addf %25, %24 : vector<28x128xf32>
    %27 = arith.mulf %16, %26 : vector<28x128xf32>
    %cst_13 = arith.constant 0.000000e+00 : f32
    %28 = vector.broadcast %cst_13 : f32 to vector<4x128xf32>
    %29 = tpu.concatenate %27, %28 in 0 : vector<28x128xf32>, vector<4x128xf32> -> vector<32x128xf32>
    %c3_i32 = arith.constant 3 : i32
    %30 = tpu.dynamic_rotate %29 by %c3_i32 dim 0 : vector<32x128xf32>, i32 -> vector<32x128xf32>
    %31 = arith.truncf %30 : vector<32x128xf32> to vector<32x128xbf16>
    %c0_14 = arith.constant 0 : index
    %c0_15 = arith.constant 0 : index
    %32 = vector.load %arg3[%c0_14, %c0_15] : memref<896x128xbf16, #tpu.memory_space<vmem>>, vector<128x128xbf16>
    %cst_16 = arith.constant dense<0.000000e+00> : vector<32x128xf32>
    %33 = tpu.matmul %31, %32, %cst_16 {dimension_numbers = #tpu.dot_dimension_numbers<[1], [0], [0], [1], [0, 0, 1, 1], [], []>} : vector<32x128xbf16>, vector<128x128xbf16>, vector<32x128xf32> -> vector<32x128xf32>
    %c2_i32 = arith.constant 2 : i32
    %34 = tpu.dynamic_rotate %29 by %c2_i32 dim 0 : vector<32x128xf32>, i32 -> vector<32x128xf32>
    %35 = arith.truncf %34 : vector<32x128xf32> to vector<32x128xbf16>
    %c128 = arith.constant 128 : index
    %c0_17 = arith.constant 0 : index
    %36 = vector.load %arg3[%c128, %c0_17] : memref<896x128xbf16, #tpu.memory_space<vmem>>, vector<128x128xbf16>
    %cst_18 = arith.constant dense<0.000000e+00> : vector<32x128xf32>
    %37 = tpu.matmul %35, %36, %cst_18 {dimension_numbers = #tpu.dot_dimension_numbers<[1], [0], [0], [1], [0, 0, 1, 1], [], []>} : vector<32x128xbf16>, vector<128x128xbf16>, vector<32x128xf32> -> vector<32x128xf32>
    %38 = arith.addf %33, %37 : vector<32x128xf32>
    %c1_i32 = arith.constant 1 : i32
    %39 = tpu.dynamic_rotate %29 by %c1_i32 dim 0 : vector<32x128xf32>, i32 -> vector<32x128xf32>
    %40 = arith.truncf %39 : vector<32x128xf32> to vector<32x128xbf16>
    %c256 = arith.constant 256 : index
    %c0_19 = arith.constant 0 : index
    %41 = vector.load %arg3[%c256, %c0_19] : memref<896x128xbf16, #tpu.memory_space<vmem>>, vector<128x128xbf16>
    %cst_20 = arith.constant dense<0.000000e+00> : vector<32x128xf32>
    %42 = tpu.matmul %40, %41, %cst_20 {dimension_numbers = #tpu.dot_dimension_numbers<[1], [0], [0], [1], [0, 0, 1, 1], [], []>} : vector<32x128xbf16>, vector<128x128xbf16>, vector<32x128xf32> -> vector<32x128xf32>
    %43 = arith.addf %38, %42 : vector<32x128xf32>
    %44 = arith.truncf %29 : vector<32x128xf32> to vector<32x128xbf16>
    %c384 = arith.constant 384 : index
    %c0_21 = arith.constant 0 : index
    %45 = vector.load %arg3[%c384, %c0_21] : memref<896x128xbf16, #tpu.memory_space<vmem>>, vector<128x128xbf16>
    %cst_22 = arith.constant dense<0.000000e+00> : vector<32x128xf32>
    %46 = tpu.matmul %44, %45, %cst_22 {dimension_numbers = #tpu.dot_dimension_numbers<[1], [0], [0], [1], [0, 0, 1, 1], [], []>} : vector<32x128xbf16>, vector<128x128xbf16>, vector<32x128xf32> -> vector<32x128xf32>
    %47 = arith.addf %43, %46 : vector<32x128xf32>
    %c31_i32 = arith.constant 31 : i32
    %48 = tpu.dynamic_rotate %29 by %c31_i32 dim 0 : vector<32x128xf32>, i32 -> vector<32x128xf32>
    %49 = arith.truncf %48 : vector<32x128xf32> to vector<32x128xbf16>
    %c512 = arith.constant 512 : index
    %c0_23 = arith.constant 0 : index
    %50 = vector.load %arg3[%c512, %c0_23] : memref<896x128xbf16, #tpu.memory_space<vmem>>, vector<128x128xbf16>
    %cst_24 = arith.constant dense<0.000000e+00> : vector<32x128xf32>
    %51 = tpu.matmul %49, %50, %cst_24 {dimension_numbers = #tpu.dot_dimension_numbers<[1], [0], [0], [1], [0, 0, 1, 1], [], []>} : vector<32x128xbf16>, vector<128x128xbf16>, vector<32x128xf32> -> vector<32x128xf32>
    %52 = arith.addf %47, %51 : vector<32x128xf32>
    %c30_i32 = arith.constant 30 : i32
    %53 = tpu.dynamic_rotate %29 by %c30_i32 dim 0 : vector<32x128xf32>, i32 -> vector<32x128xf32>
    %54 = arith.truncf %53 : vector<32x128xf32> to vector<32x128xbf16>
    %c640 = arith.constant 640 : index
    %c0_25 = arith.constant 0 : index
    %55 = vector.load %arg3[%c640, %c0_25] : memref<896x128xbf16, #tpu.memory_space<vmem>>, vector<128x128xbf16>
    %cst_26 = arith.constant dense<0.000000e+00> : vector<32x128xf32>
    %56 = tpu.matmul %54, %55, %cst_26 {dimension_numbers = #tpu.dot_dimension_numbers<[1], [0], [0], [1], [0, 0, 1, 1], [], []>} : vector<32x128xbf16>, vector<128x128xbf16>, vector<32x128xf32> -> vector<32x128xf32>
    %57 = arith.addf %52, %56 : vector<32x128xf32>
    %c29_i32 = arith.constant 29 : i32
    %58 = tpu.dynamic_rotate %29 by %c29_i32 dim 0 : vector<32x128xf32>, i32 -> vector<32x128xf32>
    %59 = arith.truncf %58 : vector<32x128xf32> to vector<32x128xbf16>
    %c768 = arith.constant 768 : index
    %c0_27 = arith.constant 0 : index
    %60 = vector.load %arg3[%c768, %c0_27] : memref<896x128xbf16, #tpu.memory_space<vmem>>, vector<128x128xbf16>
    %cst_28 = arith.constant dense<0.000000e+00> : vector<32x128xf32>
    %61 = tpu.matmul %59, %60, %cst_28 {dimension_numbers = #tpu.dot_dimension_numbers<[1], [0], [0], [1], [0, 0, 1, 1], [], []>} : vector<32x128xbf16>, vector<128x128xbf16>, vector<32x128xf32> -> vector<32x128xf32>
    %62 = arith.addf %57, %61 : vector<32x128xf32>
    %63 = vector.extract_strided_slice %62 {offsets = [0, 0], sizes = [28, 128], strides = [1, 1]} : vector<32x128xf32> to vector<28x128xf32>
    %64 = vector.broadcast %4 : vector<1x128xf32> to vector<28x128xf32>
    %65 = arith.addf %63, %64 : vector<28x128xf32>
    %66 = arith.addf %65, %10 : vector<28x128xf32>
    %67 = arith.addf %66, %5 : vector<28x128xf32>
    %c0_29 = arith.constant 0 : index
    %c0_30 = arith.constant 0 : index
    %68 = vector.load %arg4[%c0_29, %c0_30] : memref<256x768xbf16, #tpu.memory_space<vmem>>, vector<128x384xbf16>
    %c0_31 = arith.constant 0 : index
    %c384_32 = arith.constant 384 : index
    %69 = vector.load %arg4[%c0_31, %c384_32] : memref<256x768xbf16, #tpu.memory_space<vmem>>, vector<128x128xbf16>
    %c0_33 = arith.constant 0 : index
    %c512_34 = arith.constant 512 : index
    %70 = vector.load %arg4[%c0_33, %c512_34] : memref<256x768xbf16, #tpu.memory_space<vmem>>, vector<128x256xbf16>
    %c0_35 = arith.constant 0 : index
    %c0_36 = arith.constant 0 : index
    %71 = vector.load %arg5[%c0_35, %c0_36] : memref<512x128xbf16, #tpu.memory_space<vmem>>, vector<256x128xbf16>
    %c0_37 = arith.constant 0 : index
    %c0_38 = arith.constant 0 : index
    %72 = vector.load %arg6[%c0_37, %c0_38] : memref<16x384xf32, #tpu.memory_space<vmem>>, vector<1x384xf32>
    %c1 = arith.constant 1 : index
    %c0_39 = arith.constant 0 : index
    %73 = vector.load %arg6[%c1, %c0_39] : memref<16x384xf32, #tpu.memory_space<vmem>>, vector<1x128xf32>
    %c1_40 = arith.constant 1 : index
    %c128_41 = arith.constant 128 : index
    %74 = vector.load %arg6[%c1_40, %c128_41] : memref<16x384xf32, #tpu.memory_space<vmem>>, vector<1x128xf32>
    %c1_42 = arith.constant 1 : index
    %c256_43 = arith.constant 256 : index
    %75 = vector.load %arg6[%c1_42, %c256_43] : memref<16x384xf32, #tpu.memory_space<vmem>>, vector<1x128xf32>
    %c2 = arith.constant 2 : index
    %c0_44 = arith.constant 0 : index
    %76 = vector.load %arg6[%c2, %c0_44] : memref<16x384xf32, #tpu.memory_space<vmem>>, vector<1x256xf32>
    %c3 = arith.constant 3 : index
    %c0_45 = arith.constant 0 : index
    %77 = vector.load %arg6[%c3, %c0_45] : memref<16x384xf32, #tpu.memory_space<vmem>>, vector<1x128xf32>
    %c3_46 = arith.constant 3 : index
    %c128_47 = arith.constant 128 : index
    %78 = vector.load %arg6[%c3_46, %c128_47] : memref<16x384xf32, #tpu.memory_space<vmem>>, vector<1x128xf32>
    %c3_48 = arith.constant 3 : index
    %c256_49 = arith.constant 256 : index
    %79 = vector.load %arg6[%c3_48, %c256_49] : memref<16x384xf32, #tpu.memory_space<vmem>>, vector<1x128xf32>
    %80 = arith.truncf %67 : vector<28x128xf32> to vector<28x128xbf16>
    %cst_50 = arith.constant dense<0.000000e+00> : vector<28x384xf32>
    %81 = tpu.matmul %80, %68, %cst_50 {dimension_numbers = #tpu.dot_dimension_numbers<[1], [0], [0], [1], [0, 0, 1, 1], [], []>} : vector<28x128xbf16>, vector<128x384xbf16>, vector<28x384xf32> -> vector<28x384xf32>
    %82 = vector.broadcast %72 : vector<1x384xf32> to vector<28x384xf32>
    %83 = arith.addf %81, %82 : vector<28x384xf32>
    %84 = vector.extract_strided_slice %83 {offsets = [0, 0], sizes = [28, 128], strides = [1, 1]} : vector<28x384xf32> to vector<28x128xf32>
    %85 = arith.truncf %84 : vector<28x128xf32> to vector<28x128xbf16>
    %86 = vector.extract_strided_slice %83 {offsets = [0, 128], sizes = [28, 128], strides = [1, 1]} : vector<28x384xf32> to vector<28x128xf32>
    %87 = arith.truncf %86 : vector<28x128xf32> to vector<28x128xbf16>
    %88 = vector.extract_strided_slice %83 {offsets = [0, 256], sizes = [28, 128], strides = [1, 1]} : vector<28x384xf32> to vector<28x128xf32>
    %89 = arith.truncf %88 : vector<28x128xf32> to vector<28x128xbf16>
    %90 = vector.extract_strided_slice %85 {offsets = [0, 0], sizes = [28, 16], strides = [1, 1]} : vector<28x128xbf16> to vector<28x16xbf16>
    %91 = vector.extract_strided_slice %87 {offsets = [0, 0], sizes = [28, 16], strides = [1, 1]} : vector<28x128xbf16> to vector<28x16xbf16>
    %cst_51 = arith.constant dense<0.000000e+00> : vector<28x28xf32>
    %92 = tpu.matmul %90, %91, %cst_51 {dimension_numbers = #tpu.dot_dimension_numbers<[1], [1], [0], [0], [0, 0, 1, 0], [], []>} : vector<28x16xbf16>, vector<28x16xbf16>, vector<28x28xf32> -> vector<28x28xf32>
    %cst_52 = arith.constant dense<0xFF800000> : vector<28xf32>
    %93 = vector.multi_reduction <maximumf>, %92, %cst_52 [1] : vector<28x28xf32> to vector<28xf32>
    %94 = vector.shape_cast %93 : vector<28xf32> to vector<28x1xf32>
    %95 = vector.broadcast %94 : vector<28x1xf32> to vector<28x28xf32>
    %96 = arith.subf %92, %95 : vector<28x28xf32>
    %97 = math.exp %96 : vector<28x28xf32>
    %cst_53 = arith.constant dense<0.000000e+00> : vector<28xf32>
    %98 = vector.multi_reduction <add>, %97, %cst_53 [1] : vector<28x28xf32> to vector<28xf32>
    %99 = vector.shape_cast %98 : vector<28xf32> to vector<28x1xf32>
    %100 = tpu.reciprocal %99 {approx = true} : vector<28x1xf32> -> vector<28x1xf32>
    %101 = vector.broadcast %100 : vector<28x1xf32> to vector<28x28xf32>
    %102 = arith.mulf %97, %101 : vector<28x28xf32>
    %103 = arith.truncf %102 : vector<28x28xf32> to vector<28x28xbf16>
    %104 = vector.extract_strided_slice %89 {offsets = [0, 0], sizes = [28, 16], strides = [1, 1]} : vector<28x128xbf16> to vector<28x16xbf16>
    %cst_54 = arith.constant dense<0.000000e+00> : vector<28x16xf32>
    %105 = tpu.matmul %103, %104, %cst_54 {dimension_numbers = #tpu.dot_dimension_numbers<[1], [0], [0], [1], [0, 0, 1, 1], [], []>} : vector<28x28xbf16>, vector<28x16xbf16>, vector<28x16xf32> -> vector<28x16xf32>
    %106 = arith.truncf %105 : vector<28x16xf32> to vector<28x16xbf16>
    %107 = vector.extract_strided_slice %69 {offsets = [0, 0], sizes = [16, 128], strides = [1, 1]} : vector<128x128xbf16> to vector<16x128xbf16>
    %cst_55 = arith.constant dense<0.000000e+00> : vector<28x128xf32>
    %108 = tpu.matmul %106, %107, %cst_55 {dimension_numbers = #tpu.dot_dimension_numbers<[1], [0], [0], [1], [0, 0, 1, 1], [], []>} : vector<28x16xbf16>, vector<16x128xbf16>, vector<28x128xf32> -> vector<28x128xf32>
    %109 = vector.extract_strided_slice %85 {offsets = [0, 16], sizes = [28, 16], strides = [1, 1]} : vector<28x128xbf16> to vector<28x16xbf16>
    %110 = vector.extract_strided_slice %87 {offsets = [0, 16], sizes = [28, 16], strides = [1, 1]} : vector<28x128xbf16> to vector<28x16xbf16>
    %cst_56 = arith.constant dense<0.000000e+00> : vector<28x28xf32>
    %111 = tpu.matmul %109, %110, %cst_56 {dimension_numbers = #tpu.dot_dimension_numbers<[1], [1], [0], [0], [0, 0, 1, 0], [], []>} : vector<28x16xbf16>, vector<28x16xbf16>, vector<28x28xf32> -> vector<28x28xf32>
    %cst_57 = arith.constant dense<0xFF800000> : vector<28xf32>
    %112 = vector.multi_reduction <maximumf>, %111, %cst_57 [1] : vector<28x28xf32> to vector<28xf32>
    %113 = vector.shape_cast %112 : vector<28xf32> to vector<28x1xf32>
    %114 = vector.broadcast %113 : vector<28x1xf32> to vector<28x28xf32>
    %115 = arith.subf %111, %114 : vector<28x28xf32>
    %116 = math.exp %115 : vector<28x28xf32>
    %cst_58 = arith.constant dense<0.000000e+00> : vector<28xf32>
    %117 = vector.multi_reduction <add>, %116, %cst_58 [1] : vector<28x28xf32> to vector<28xf32>
    %118 = vector.shape_cast %117 : vector<28xf32> to vector<28x1xf32>
    %119 = tpu.reciprocal %118 {approx = true} : vector<28x1xf32> -> vector<28x1xf32>
    %120 = vector.broadcast %119 : vector<28x1xf32> to vector<28x28xf32>
    %121 = arith.mulf %116, %120 : vector<28x28xf32>
    %122 = arith.truncf %121 : vector<28x28xf32> to vector<28x28xbf16>
    %123 = vector.extract_strided_slice %89 {offsets = [0, 16], sizes = [28, 16], strides = [1, 1]} : vector<28x128xbf16> to vector<28x16xbf16>
    %cst_59 = arith.constant dense<0.000000e+00> : vector<28x16xf32>
    %124 = tpu.matmul %122, %123, %cst_59 {dimension_numbers = #tpu.dot_dimension_numbers<[1], [0], [0], [1], [0, 0, 1, 1], [], []>} : vector<28x28xbf16>, vector<28x16xbf16>, vector<28x16xf32> -> vector<28x16xf32>
    %125 = arith.truncf %124 : vector<28x16xf32> to vector<28x16xbf16>
    %126 = vector.extract_strided_slice %69 {offsets = [16, 0], sizes = [16, 128], strides = [1, 1]} : vector<128x128xbf16> to vector<16x128xbf16>
    %cst_60 = arith.constant dense<0.000000e+00> : vector<28x128xf32>
    %127 = tpu.matmul %125, %126, %cst_60 {dimension_numbers = #tpu.dot_dimension_numbers<[1], [0], [0], [1], [0, 0, 1, 1], [], []>} : vector<28x16xbf16>, vector<16x128xbf16>, vector<28x128xf32> -> vector<28x128xf32>
    %128 = arith.addf %108, %127 : vector<28x128xf32>
    %129 = vector.extract_strided_slice %85 {offsets = [0, 32], sizes = [28, 16], strides = [1, 1]} : vector<28x128xbf16> to vector<28x16xbf16>
    %130 = vector.extract_strided_slice %87 {offsets = [0, 32], sizes = [28, 16], strides = [1, 1]} : vector<28x128xbf16> to vector<28x16xbf16>
    %cst_61 = arith.constant dense<0.000000e+00> : vector<28x28xf32>
    %131 = tpu.matmul %129, %130, %cst_61 {dimension_numbers = #tpu.dot_dimension_numbers<[1], [1], [0], [0], [0, 0, 1, 0], [], []>} : vector<28x16xbf16>, vector<28x16xbf16>, vector<28x28xf32> -> vector<28x28xf32>
    %cst_62 = arith.constant dense<0xFF800000> : vector<28xf32>
    %132 = vector.multi_reduction <maximumf>, %131, %cst_62 [1] : vector<28x28xf32> to vector<28xf32>
    %133 = vector.shape_cast %132 : vector<28xf32> to vector<28x1xf32>
    %134 = vector.broadcast %133 : vector<28x1xf32> to vector<28x28xf32>
    %135 = arith.subf %131, %134 : vector<28x28xf32>
    %136 = math.exp %135 : vector<28x28xf32>
    %cst_63 = arith.constant dense<0.000000e+00> : vector<28xf32>
    %137 = vector.multi_reduction <add>, %136, %cst_63 [1] : vector<28x28xf32> to vector<28xf32>
    %138 = vector.shape_cast %137 : vector<28xf32> to vector<28x1xf32>
    %139 = tpu.reciprocal %138 {approx = true} : vector<28x1xf32> -> vector<28x1xf32>
    %140 = vector.broadcast %139 : vector<28x1xf32> to vector<28x28xf32>
    %141 = arith.mulf %136, %140 : vector<28x28xf32>
    %142 = arith.truncf %141 : vector<28x28xf32> to vector<28x28xbf16>
    %143 = vector.extract_strided_slice %89 {offsets = [0, 32], sizes = [28, 16], strides = [1, 1]} : vector<28x128xbf16> to vector<28x16xbf16>
    %cst_64 = arith.constant dense<0.000000e+00> : vector<28x16xf32>
    %144 = tpu.matmul %142, %143, %cst_64 {dimension_numbers = #tpu.dot_dimension_numbers<[1], [0], [0], [1], [0, 0, 1, 1], [], []>} : vector<28x28xbf16>, vector<28x16xbf16>, vector<28x16xf32> -> vector<28x16xf32>
    %145 = arith.truncf %144 : vector<28x16xf32> to vector<28x16xbf16>
    %146 = vector.extract_strided_slice %69 {offsets = [32, 0], sizes = [16, 128], strides = [1, 1]} : vector<128x128xbf16> to vector<16x128xbf16>
    %cst_65 = arith.constant dense<0.000000e+00> : vector<28x128xf32>
    %147 = tpu.matmul %145, %146, %cst_65 {dimension_numbers = #tpu.dot_dimension_numbers<[1], [0], [0], [1], [0, 0, 1, 1], [], []>} : vector<28x16xbf16>, vector<16x128xbf16>, vector<28x128xf32> -> vector<28x128xf32>
    %148 = arith.addf %128, %147 : vector<28x128xf32>
    %149 = vector.extract_strided_slice %85 {offsets = [0, 48], sizes = [28, 16], strides = [1, 1]} : vector<28x128xbf16> to vector<28x16xbf16>
    %150 = vector.extract_strided_slice %87 {offsets = [0, 48], sizes = [28, 16], strides = [1, 1]} : vector<28x128xbf16> to vector<28x16xbf16>
    %cst_66 = arith.constant dense<0.000000e+00> : vector<28x28xf32>
    %151 = tpu.matmul %149, %150, %cst_66 {dimension_numbers = #tpu.dot_dimension_numbers<[1], [1], [0], [0], [0, 0, 1, 0], [], []>} : vector<28x16xbf16>, vector<28x16xbf16>, vector<28x28xf32> -> vector<28x28xf32>
    %cst_67 = arith.constant dense<0xFF800000> : vector<28xf32>
    %152 = vector.multi_reduction <maximumf>, %151, %cst_67 [1] : vector<28x28xf32> to vector<28xf32>
    %153 = vector.shape_cast %152 : vector<28xf32> to vector<28x1xf32>
    %154 = vector.broadcast %153 : vector<28x1xf32> to vector<28x28xf32>
    %155 = arith.subf %151, %154 : vector<28x28xf32>
    %156 = math.exp %155 : vector<28x28xf32>
    %cst_68 = arith.constant dense<0.000000e+00> : vector<28xf32>
    %157 = vector.multi_reduction <add>, %156, %cst_68 [1] : vector<28x28xf32> to vector<28xf32>
    %158 = vector.shape_cast %157 : vector<28xf32> to vector<28x1xf32>
    %159 = tpu.reciprocal %158 {approx = true} : vector<28x1xf32> -> vector<28x1xf32>
    %160 = vector.broadcast %159 : vector<28x1xf32> to vector<28x28xf32>
    %161 = arith.mulf %156, %160 : vector<28x28xf32>
    %162 = arith.truncf %161 : vector<28x28xf32> to vector<28x28xbf16>
    %163 = vector.extract_strided_slice %89 {offsets = [0, 48], sizes = [28, 16], strides = [1, 1]} : vector<28x128xbf16> to vector<28x16xbf16>
    %cst_69 = arith.constant dense<0.000000e+00> : vector<28x16xf32>
    %164 = tpu.matmul %162, %163, %cst_69 {dimension_numbers = #tpu.dot_dimension_numbers<[1], [0], [0], [1], [0, 0, 1, 1], [], []>} : vector<28x28xbf16>, vector<28x16xbf16>, vector<28x16xf32> -> vector<28x16xf32>
    %165 = arith.truncf %164 : vector<28x16xf32> to vector<28x16xbf16>
    %166 = vector.extract_strided_slice %69 {offsets = [48, 0], sizes = [16, 128], strides = [1, 1]} : vector<128x128xbf16> to vector<16x128xbf16>
    %cst_70 = arith.constant dense<0.000000e+00> : vector<28x128xf32>
    %167 = tpu.matmul %165, %166, %cst_70 {dimension_numbers = #tpu.dot_dimension_numbers<[1], [0], [0], [1], [0, 0, 1, 1], [], []>} : vector<28x16xbf16>, vector<16x128xbf16>, vector<28x128xf32> -> vector<28x128xf32>
    %168 = arith.addf %148, %167 : vector<28x128xf32>
    %169 = vector.extract_strided_slice %85 {offsets = [0, 64], sizes = [28, 16], strides = [1, 1]} : vector<28x128xbf16> to vector<28x16xbf16>
    %170 = vector.extract_strided_slice %87 {offsets = [0, 64], sizes = [28, 16], strides = [1, 1]} : vector<28x128xbf16> to vector<28x16xbf16>
    %cst_71 = arith.constant dense<0.000000e+00> : vector<28x28xf32>
    %171 = tpu.matmul %169, %170, %cst_71 {dimension_numbers = #tpu.dot_dimension_numbers<[1], [1], [0], [0], [0, 0, 1, 0], [], []>} : vector<28x16xbf16>, vector<28x16xbf16>, vector<28x28xf32> -> vector<28x28xf32>
    %cst_72 = arith.constant dense<0xFF800000> : vector<28xf32>
    %172 = vector.multi_reduction <maximumf>, %171, %cst_72 [1] : vector<28x28xf32> to vector<28xf32>
    %173 = vector.shape_cast %172 : vector<28xf32> to vector<28x1xf32>
    %174 = vector.broadcast %173 : vector<28x1xf32> to vector<28x28xf32>
    %175 = arith.subf %171, %174 : vector<28x28xf32>
    %176 = math.exp %175 : vector<28x28xf32>
    %cst_73 = arith.constant dense<0.000000e+00> : vector<28xf32>
    %177 = vector.multi_reduction <add>, %176, %cst_73 [1] : vector<28x28xf32> to vector<28xf32>
    %178 = vector.shape_cast %177 : vector<28xf32> to vector<28x1xf32>
    %179 = tpu.reciprocal %178 {approx = true} : vector<28x1xf32> -> vector<28x1xf32>
    %180 = vector.broadcast %179 : vector<28x1xf32> to vector<28x28xf32>
    %181 = arith.mulf %176, %180 : vector<28x28xf32>
    %182 = arith.truncf %181 : vector<28x28xf32> to vector<28x28xbf16>
    %183 = vector.extract_strided_slice %89 {offsets = [0, 64], sizes = [28, 16], strides = [1, 1]} : vector<28x128xbf16> to vector<28x16xbf16>
    %cst_74 = arith.constant dense<0.000000e+00> : vector<28x16xf32>
    %184 = tpu.matmul %182, %183, %cst_74 {dimension_numbers = #tpu.dot_dimension_numbers<[1], [0], [0], [1], [0, 0, 1, 1], [], []>} : vector<28x28xbf16>, vector<28x16xbf16>, vector<28x16xf32> -> vector<28x16xf32>
    %185 = arith.truncf %184 : vector<28x16xf32> to vector<28x16xbf16>
    %186 = vector.extract_strided_slice %69 {offsets = [64, 0], sizes = [16, 128], strides = [1, 1]} : vector<128x128xbf16> to vector<16x128xbf16>
    %cst_75 = arith.constant dense<0.000000e+00> : vector<28x128xf32>
    %187 = tpu.matmul %185, %186, %cst_75 {dimension_numbers = #tpu.dot_dimension_numbers<[1], [0], [0], [1], [0, 0, 1, 1], [], []>} : vector<28x16xbf16>, vector<16x128xbf16>, vector<28x128xf32> -> vector<28x128xf32>
    %188 = arith.addf %168, %187 : vector<28x128xf32>
    %189 = vector.extract_strided_slice %85 {offsets = [0, 80], sizes = [28, 16], strides = [1, 1]} : vector<28x128xbf16> to vector<28x16xbf16>
    %190 = vector.extract_strided_slice %87 {offsets = [0, 80], sizes = [28, 16], strides = [1, 1]} : vector<28x128xbf16> to vector<28x16xbf16>
    %cst_76 = arith.constant dense<0.000000e+00> : vector<28x28xf32>
    %191 = tpu.matmul %189, %190, %cst_76 {dimension_numbers = #tpu.dot_dimension_numbers<[1], [1], [0], [0], [0, 0, 1, 0], [], []>} : vector<28x16xbf16>, vector<28x16xbf16>, vector<28x28xf32> -> vector<28x28xf32>
    %cst_77 = arith.constant dense<0xFF800000> : vector<28xf32>
    %192 = vector.multi_reduction <maximumf>, %191, %cst_77 [1] : vector<28x28xf32> to vector<28xf32>
    %193 = vector.shape_cast %192 : vector<28xf32> to vector<28x1xf32>
    %194 = vector.broadcast %193 : vector<28x1xf32> to vector<28x28xf32>
    %195 = arith.subf %191, %194 : vector<28x28xf32>
    %196 = math.exp %195 : vector<28x28xf32>
    %cst_78 = arith.constant dense<0.000000e+00> : vector<28xf32>
    %197 = vector.multi_reduction <add>, %196, %cst_78 [1] : vector<28x28xf32> to vector<28xf32>
    %198 = vector.shape_cast %197 : vector<28xf32> to vector<28x1xf32>
    %199 = tpu.reciprocal %198 {approx = true} : vector<28x1xf32> -> vector<28x1xf32>
    %200 = vector.broadcast %199 : vector<28x1xf32> to vector<28x28xf32>
    %201 = arith.mulf %196, %200 : vector<28x28xf32>
    %202 = arith.truncf %201 : vector<28x28xf32> to vector<28x28xbf16>
    %203 = vector.extract_strided_slice %89 {offsets = [0, 80], sizes = [28, 16], strides = [1, 1]} : vector<28x128xbf16> to vector<28x16xbf16>
    %cst_79 = arith.constant dense<0.000000e+00> : vector<28x16xf32>
    %204 = tpu.matmul %202, %203, %cst_79 {dimension_numbers = #tpu.dot_dimension_numbers<[1], [0], [0], [1], [0, 0, 1, 1], [], []>} : vector<28x28xbf16>, vector<28x16xbf16>, vector<28x16xf32> -> vector<28x16xf32>
    %205 = arith.truncf %204 : vector<28x16xf32> to vector<28x16xbf16>
    %206 = vector.extract_strided_slice %69 {offsets = [80, 0], sizes = [16, 128], strides = [1, 1]} : vector<128x128xbf16> to vector<16x128xbf16>
    %cst_80 = arith.constant dense<0.000000e+00> : vector<28x128xf32>
    %207 = tpu.matmul %205, %206, %cst_80 {dimension_numbers = #tpu.dot_dimension_numbers<[1], [0], [0], [1], [0, 0, 1, 1], [], []>} : vector<28x16xbf16>, vector<16x128xbf16>, vector<28x128xf32> -> vector<28x128xf32>
    %208 = arith.addf %188, %207 : vector<28x128xf32>
    %209 = vector.extract_strided_slice %85 {offsets = [0, 96], sizes = [28, 16], strides = [1, 1]} : vector<28x128xbf16> to vector<28x16xbf16>
    %210 = vector.extract_strided_slice %87 {offsets = [0, 96], sizes = [28, 16], strides = [1, 1]} : vector<28x128xbf16> to vector<28x16xbf16>
    %cst_81 = arith.constant dense<0.000000e+00> : vector<28x28xf32>
    %211 = tpu.matmul %209, %210, %cst_81 {dimension_numbers = #tpu.dot_dimension_numbers<[1], [1], [0], [0], [0, 0, 1, 0], [], []>} : vector<28x16xbf16>, vector<28x16xbf16>, vector<28x28xf32> -> vector<28x28xf32>
    %cst_82 = arith.constant dense<0xFF800000> : vector<28xf32>
    %212 = vector.multi_reduction <maximumf>, %211, %cst_82 [1] : vector<28x28xf32> to vector<28xf32>
    %213 = vector.shape_cast %212 : vector<28xf32> to vector<28x1xf32>
    %214 = vector.broadcast %213 : vector<28x1xf32> to vector<28x28xf32>
    %215 = arith.subf %211, %214 : vector<28x28xf32>
    %216 = math.exp %215 : vector<28x28xf32>
    %cst_83 = arith.constant dense<0.000000e+00> : vector<28xf32>
    %217 = vector.multi_reduction <add>, %216, %cst_83 [1] : vector<28x28xf32> to vector<28xf32>
    %218 = vector.shape_cast %217 : vector<28xf32> to vector<28x1xf32>
    %219 = tpu.reciprocal %218 {approx = true} : vector<28x1xf32> -> vector<28x1xf32>
    %220 = vector.broadcast %219 : vector<28x1xf32> to vector<28x28xf32>
    %221 = arith.mulf %216, %220 : vector<28x28xf32>
    %222 = arith.truncf %221 : vector<28x28xf32> to vector<28x28xbf16>
    %223 = vector.extract_strided_slice %89 {offsets = [0, 96], sizes = [28, 16], strides = [1, 1]} : vector<28x128xbf16> to vector<28x16xbf16>
    %cst_84 = arith.constant dense<0.000000e+00> : vector<28x16xf32>
    %224 = tpu.matmul %222, %223, %cst_84 {dimension_numbers = #tpu.dot_dimension_numbers<[1], [0], [0], [1], [0, 0, 1, 1], [], []>} : vector<28x28xbf16>, vector<28x16xbf16>, vector<28x16xf32> -> vector<28x16xf32>
    %225 = arith.truncf %224 : vector<28x16xf32> to vector<28x16xbf16>
    %226 = vector.extract_strided_slice %69 {offsets = [96, 0], sizes = [16, 128], strides = [1, 1]} : vector<128x128xbf16> to vector<16x128xbf16>
    %cst_85 = arith.constant dense<0.000000e+00> : vector<28x128xf32>
    %227 = tpu.matmul %225, %226, %cst_85 {dimension_numbers = #tpu.dot_dimension_numbers<[1], [0], [0], [1], [0, 0, 1, 1], [], []>} : vector<28x16xbf16>, vector<16x128xbf16>, vector<28x128xf32> -> vector<28x128xf32>
    %228 = arith.addf %208, %227 : vector<28x128xf32>
    %229 = vector.extract_strided_slice %85 {offsets = [0, 112], sizes = [28, 16], strides = [1, 1]} : vector<28x128xbf16> to vector<28x16xbf16>
    %230 = vector.extract_strided_slice %87 {offsets = [0, 112], sizes = [28, 16], strides = [1, 1]} : vector<28x128xbf16> to vector<28x16xbf16>
    %cst_86 = arith.constant dense<0.000000e+00> : vector<28x28xf32>
    %231 = tpu.matmul %229, %230, %cst_86 {dimension_numbers = #tpu.dot_dimension_numbers<[1], [1], [0], [0], [0, 0, 1, 0], [], []>} : vector<28x16xbf16>, vector<28x16xbf16>, vector<28x28xf32> -> vector<28x28xf32>
    %cst_87 = arith.constant dense<0xFF800000> : vector<28xf32>
    %232 = vector.multi_reduction <maximumf>, %231, %cst_87 [1] : vector<28x28xf32> to vector<28xf32>
    %233 = vector.shape_cast %232 : vector<28xf32> to vector<28x1xf32>
    %234 = vector.broadcast %233 : vector<28x1xf32> to vector<28x28xf32>
    %235 = arith.subf %231, %234 : vector<28x28xf32>
    %236 = math.exp %235 : vector<28x28xf32>
    %cst_88 = arith.constant dense<0.000000e+00> : vector<28xf32>
    %237 = vector.multi_reduction <add>, %236, %cst_88 [1] : vector<28x28xf32> to vector<28xf32>
    %238 = vector.shape_cast %237 : vector<28xf32> to vector<28x1xf32>
    %239 = tpu.reciprocal %238 {approx = true} : vector<28x1xf32> -> vector<28x1xf32>
    %240 = vector.broadcast %239 : vector<28x1xf32> to vector<28x28xf32>
    %241 = arith.mulf %236, %240 : vector<28x28xf32>
    %242 = arith.truncf %241 : vector<28x28xf32> to vector<28x28xbf16>
    %243 = vector.extract_strided_slice %89 {offsets = [0, 112], sizes = [28, 16], strides = [1, 1]} : vector<28x128xbf16> to vector<28x16xbf16>
    %cst_89 = arith.constant dense<0.000000e+00> : vector<28x16xf32>
    %244 = tpu.matmul %242, %243, %cst_89 {dimension_numbers = #tpu.dot_dimension_numbers<[1], [0], [0], [1], [0, 0, 1, 1], [], []>} : vector<28x28xbf16>, vector<28x16xbf16>, vector<28x16xf32> -> vector<28x16xf32>
    %245 = arith.truncf %244 : vector<28x16xf32> to vector<28x16xbf16>
    %246 = vector.extract_strided_slice %69 {offsets = [112, 0], sizes = [16, 128], strides = [1, 1]} : vector<128x128xbf16> to vector<16x128xbf16>
    %cst_90 = arith.constant dense<0.000000e+00> : vector<28x128xf32>
    %247 = tpu.matmul %245, %246, %cst_90 {dimension_numbers = #tpu.dot_dimension_numbers<[1], [0], [0], [1], [0, 0, 1, 1], [], []>} : vector<28x16xbf16>, vector<16x128xbf16>, vector<28x128xf32> -> vector<28x128xf32>
    %248 = arith.addf %228, %247 : vector<28x128xf32>
    %249 = vector.broadcast %73 : vector<1x128xf32> to vector<28x128xf32>
    %250 = arith.addf %248, %249 : vector<28x128xf32>
    %251 = arith.addf %67, %250 : vector<28x128xf32>
    %cst_91 = arith.constant dense<0.000000e+00> : vector<28xf32>
    %252 = vector.multi_reduction <add>, %251, %cst_91 [1] : vector<28x128xf32> to vector<28xf32>
    %253 = vector.shape_cast %252 : vector<28xf32> to vector<28x1xf32>
    %cst_92 = arith.constant 1.280000e+02 : f32
    %254 = vector.broadcast %cst_92 : f32 to vector<28x1xf32>
    %255 = arith.divf %253, %254 : vector<28x1xf32>
    %256 = vector.broadcast %255 : vector<28x1xf32> to vector<28x128xf32>
    %257 = arith.subf %251, %256 : vector<28x128xf32>
    %258 = arith.mulf %257, %257 : vector<28x128xf32>
    %cst_93 = arith.constant dense<0.000000e+00> : vector<28xf32>
    %259 = vector.multi_reduction <add>, %258, %cst_93 [1] : vector<28x128xf32> to vector<28xf32>
    %260 = vector.shape_cast %259 : vector<28xf32> to vector<28x1xf32>
    %cst_94 = arith.constant 1.280000e+02 : f32
    %261 = vector.broadcast %cst_94 : f32 to vector<28x1xf32>
    %262 = arith.divf %260, %261 : vector<28x1xf32>
    %cst_95 = arith.constant 9.99999974E-6 : f32
    %263 = vector.broadcast %cst_95 : f32 to vector<28x1xf32>
    %264 = arith.addf %262, %263 : vector<28x1xf32>
    %265 = math.rsqrt %264 : vector<28x1xf32>
    %266 = vector.broadcast %265 : vector<28x1xf32> to vector<28x128xf32>
    %267 = arith.mulf %257, %266 : vector<28x128xf32>
    %268 = vector.broadcast %74 : vector<1x128xf32> to vector<28x128xf32>
    %269 = arith.mulf %267, %268 : vector<28x128xf32>
    %270 = vector.broadcast %75 : vector<1x128xf32> to vector<28x128xf32>
    %271 = arith.addf %269, %270 : vector<28x128xf32>
    %272 = arith.truncf %271 : vector<28x128xf32> to vector<28x128xbf16>
    %cst_96 = arith.constant dense<0.000000e+00> : vector<28x256xf32>
    %273 = tpu.matmul %272, %70, %cst_96 {dimension_numbers = #tpu.dot_dimension_numbers<[1], [0], [0], [1], [0, 0, 1, 1], [], []>} : vector<28x128xbf16>, vector<128x256xbf16>, vector<28x256xf32> -> vector<28x256xf32>
    %274 = vector.broadcast %76 : vector<1x256xf32> to vector<28x256xf32>
    %275 = arith.addf %273, %274 : vector<28x256xf32>
    %cst_97 = arith.constant 5.000000e-01 : f32
    %276 = vector.broadcast %cst_97 : f32 to vector<28x256xf32>
    %277 = arith.mulf %276, %275 : vector<28x256xf32>
    %cst_98 = arith.constant 4.471500e-02 : f32
    %278 = vector.broadcast %cst_98 : f32 to vector<28x256xf32>
    %279 = arith.mulf %278, %275 : vector<28x256xf32>
    %280 = arith.mulf %279, %275 : vector<28x256xf32>
    %281 = arith.mulf %280, %275 : vector<28x256xf32>
    %282 = arith.addf %275, %281 : vector<28x256xf32>
    %cst_99 = arith.constant 0.797884583 : f32
    %283 = vector.broadcast %cst_99 : f32 to vector<28x256xf32>
    %284 = arith.mulf %283, %282 : vector<28x256xf32>
    %285 = math.tanh %284 : vector<28x256xf32>
    %cst_100 = arith.constant 1.000000e+00 : f32
    %286 = vector.broadcast %cst_100 : f32 to vector<28x256xf32>
    %287 = arith.addf %286, %285 : vector<28x256xf32>
    %288 = arith.mulf %277, %287 : vector<28x256xf32>
    %289 = arith.truncf %288 : vector<28x256xf32> to vector<28x256xbf16>
    %cst_101 = arith.constant dense<0.000000e+00> : vector<28x128xf32>
    %290 = tpu.matmul %289, %71, %cst_101 {dimension_numbers = #tpu.dot_dimension_numbers<[1], [0], [0], [1], [0, 0, 1, 1], [], []>} : vector<28x256xbf16>, vector<256x128xbf16>, vector<28x128xf32> -> vector<28x128xf32>
    %291 = vector.broadcast %77 : vector<1x128xf32> to vector<28x128xf32>
    %292 = arith.addf %290, %291 : vector<28x128xf32>
    %293 = arith.addf %271, %292 : vector<28x128xf32>
    %cst_102 = arith.constant dense<0.000000e+00> : vector<28xf32>
    %294 = vector.multi_reduction <add>, %293, %cst_102 [1] : vector<28x128xf32> to vector<28xf32>
    %295 = vector.shape_cast %294 : vector<28xf32> to vector<28x1xf32>
    %cst_103 = arith.constant 1.280000e+02 : f32
    %296 = vector.broadcast %cst_103 : f32 to vector<28x1xf32>
    %297 = arith.divf %295, %296 : vector<28x1xf32>
    %298 = vector.broadcast %297 : vector<28x1xf32> to vector<28x128xf32>
    %299 = arith.subf %293, %298 : vector<28x128xf32>
    %300 = arith.mulf %299, %299 : vector<28x128xf32>
    %cst_104 = arith.constant dense<0.000000e+00> : vector<28xf32>
    %301 = vector.multi_reduction <add>, %300, %cst_104 [1] : vector<28x128xf32> to vector<28xf32>
    %302 = vector.shape_cast %301 : vector<28xf32> to vector<28x1xf32>
    %cst_105 = arith.constant 1.280000e+02 : f32
    %303 = vector.broadcast %cst_105 : f32 to vector<28x1xf32>
    %304 = arith.divf %302, %303 : vector<28x1xf32>
    %cst_106 = arith.constant 9.99999974E-6 : f32
    %305 = vector.broadcast %cst_106 : f32 to vector<28x1xf32>
    %306 = arith.addf %304, %305 : vector<28x1xf32>
    %307 = math.rsqrt %306 : vector<28x1xf32>
    %308 = vector.broadcast %307 : vector<28x1xf32> to vector<28x128xf32>
    %309 = arith.mulf %299, %308 : vector<28x128xf32>
    %310 = vector.broadcast %78 : vector<1x128xf32> to vector<28x128xf32>
    %311 = arith.mulf %309, %310 : vector<28x128xf32>
    %312 = vector.broadcast %79 : vector<1x128xf32> to vector<28x128xf32>
    %313 = arith.addf %311, %312 : vector<28x128xf32>
    %c128_107 = arith.constant 128 : index
    %c0_108 = arith.constant 0 : index
    %314 = vector.load %arg4[%c128_107, %c0_108] : memref<256x768xbf16, #tpu.memory_space<vmem>>, vector<128x384xbf16>
    %c128_109 = arith.constant 128 : index
    %c384_110 = arith.constant 384 : index
    %315 = vector.load %arg4[%c128_109, %c384_110] : memref<256x768xbf16, #tpu.memory_space<vmem>>, vector<128x128xbf16>
    %c128_111 = arith.constant 128 : index
    %c512_112 = arith.constant 512 : index
    %316 = vector.load %arg4[%c128_111, %c512_112] : memref<256x768xbf16, #tpu.memory_space<vmem>>, vector<128x256xbf16>
    %c256_113 = arith.constant 256 : index
    %c0_114 = arith.constant 0 : index
    %317 = vector.load %arg5[%c256_113, %c0_114] : memref<512x128xbf16, #tpu.memory_space<vmem>>, vector<256x128xbf16>
    %c8 = arith.constant 8 : index
    %c0_115 = arith.constant 0 : index
    %318 = vector.load %arg6[%c8, %c0_115] : memref<16x384xf32, #tpu.memory_space<vmem>>, vector<1x384xf32>
    %c9 = arith.constant 9 : index
    %c0_116 = arith.constant 0 : index
    %319 = vector.load %arg6[%c9, %c0_116] : memref<16x384xf32, #tpu.memory_space<vmem>>, vector<1x128xf32>
    %c9_117 = arith.constant 9 : index
    %c128_118 = arith.constant 128 : index
    %320 = vector.load %arg6[%c9_117, %c128_118] : memref<16x384xf32, #tpu.memory_space<vmem>>, vector<1x128xf32>
    %c9_119 = arith.constant 9 : index
    %c256_120 = arith.constant 256 : index
    %321 = vector.load %arg6[%c9_119, %c256_120] : memref<16x384xf32, #tpu.memory_space<vmem>>, vector<1x128xf32>
    %c10 = arith.constant 10 : index
    %c0_121 = arith.constant 0 : index
    %322 = vector.load %arg6[%c10, %c0_121] : memref<16x384xf32, #tpu.memory_space<vmem>>, vector<1x256xf32>
    %c11 = arith.constant 11 : index
    %c0_122 = arith.constant 0 : index
    %323 = vector.load %arg6[%c11, %c0_122] : memref<16x384xf32, #tpu.memory_space<vmem>>, vector<1x128xf32>
    %c11_123 = arith.constant 11 : index
    %c128_124 = arith.constant 128 : index
    %324 = vector.load %arg6[%c11_123, %c128_124] : memref<16x384xf32, #tpu.memory_space<vmem>>, vector<1x128xf32>
    %c11_125 = arith.constant 11 : index
    %c256_126 = arith.constant 256 : index
    %325 = vector.load %arg6[%c11_125, %c256_126] : memref<16x384xf32, #tpu.memory_space<vmem>>, vector<1x128xf32>
    %326 = arith.truncf %313 : vector<28x128xf32> to vector<28x128xbf16>
    %cst_127 = arith.constant dense<0.000000e+00> : vector<28x384xf32>
    %327 = tpu.matmul %326, %314, %cst_127 {dimension_numbers = #tpu.dot_dimension_numbers<[1], [0], [0], [1], [0, 0, 1, 1], [], []>} : vector<28x128xbf16>, vector<128x384xbf16>, vector<28x384xf32> -> vector<28x384xf32>
    %328 = vector.broadcast %318 : vector<1x384xf32> to vector<28x384xf32>
    %329 = arith.addf %327, %328 : vector<28x384xf32>
    %330 = vector.extract_strided_slice %329 {offsets = [0, 0], sizes = [28, 128], strides = [1, 1]} : vector<28x384xf32> to vector<28x128xf32>
    %331 = arith.truncf %330 : vector<28x128xf32> to vector<28x128xbf16>
    %332 = vector.extract_strided_slice %329 {offsets = [0, 128], sizes = [28, 128], strides = [1, 1]} : vector<28x384xf32> to vector<28x128xf32>
    %333 = arith.truncf %332 : vector<28x128xf32> to vector<28x128xbf16>
    %334 = vector.extract_strided_slice %329 {offsets = [0, 256], sizes = [28, 128], strides = [1, 1]} : vector<28x384xf32> to vector<28x128xf32>
    %335 = arith.truncf %334 : vector<28x128xf32> to vector<28x128xbf16>
    %336 = vector.extract_strided_slice %331 {offsets = [0, 0], sizes = [28, 16], strides = [1, 1]} : vector<28x128xbf16> to vector<28x16xbf16>
    %337 = vector.extract_strided_slice %333 {offsets = [0, 0], sizes = [28, 16], strides = [1, 1]} : vector<28x128xbf16> to vector<28x16xbf16>
    %cst_128 = arith.constant dense<0.000000e+00> : vector<28x28xf32>
    %338 = tpu.matmul %336, %337, %cst_128 {dimension_numbers = #tpu.dot_dimension_numbers<[1], [1], [0], [0], [0, 0, 1, 0], [], []>} : vector<28x16xbf16>, vector<28x16xbf16>, vector<28x28xf32> -> vector<28x28xf32>
    %cst_129 = arith.constant dense<0xFF800000> : vector<28xf32>
    %339 = vector.multi_reduction <maximumf>, %338, %cst_129 [1] : vector<28x28xf32> to vector<28xf32>
    %340 = vector.shape_cast %339 : vector<28xf32> to vector<28x1xf32>
    %341 = vector.broadcast %340 : vector<28x1xf32> to vector<28x28xf32>
    %342 = arith.subf %338, %341 : vector<28x28xf32>
    %343 = math.exp %342 : vector<28x28xf32>
    %cst_130 = arith.constant dense<0.000000e+00> : vector<28xf32>
    %344 = vector.multi_reduction <add>, %343, %cst_130 [1] : vector<28x28xf32> to vector<28xf32>
    %345 = vector.shape_cast %344 : vector<28xf32> to vector<28x1xf32>
    %346 = tpu.reciprocal %345 {approx = true} : vector<28x1xf32> -> vector<28x1xf32>
    %347 = vector.broadcast %346 : vector<28x1xf32> to vector<28x28xf32>
    %348 = arith.mulf %343, %347 : vector<28x28xf32>
    %349 = arith.truncf %348 : vector<28x28xf32> to vector<28x28xbf16>
    %350 = vector.extract_strided_slice %335 {offsets = [0, 0], sizes = [28, 16], strides = [1, 1]} : vector<28x128xbf16> to vector<28x16xbf16>
    %cst_131 = arith.constant dense<0.000000e+00> : vector<28x16xf32>
    %351 = tpu.matmul %349, %350, %cst_131 {dimension_numbers = #tpu.dot_dimension_numbers<[1], [0], [0], [1], [0, 0, 1, 1], [], []>} : vector<28x28xbf16>, vector<28x16xbf16>, vector<28x16xf32> -> vector<28x16xf32>
    %352 = arith.truncf %351 : vector<28x16xf32> to vector<28x16xbf16>
    %353 = vector.extract_strided_slice %315 {offsets = [0, 0], sizes = [16, 128], strides = [1, 1]} : vector<128x128xbf16> to vector<16x128xbf16>
    %cst_132 = arith.constant dense<0.000000e+00> : vector<28x128xf32>
    %354 = tpu.matmul %352, %353, %cst_132 {dimension_numbers = #tpu.dot_dimension_numbers<[1], [0], [0], [1], [0, 0, 1, 1], [], []>} : vector<28x16xbf16>, vector<16x128xbf16>, vector<28x128xf32> -> vector<28x128xf32>
    %355 = vector.extract_strided_slice %331 {offsets = [0, 16], sizes = [28, 16], strides = [1, 1]} : vector<28x128xbf16> to vector<28x16xbf16>
    %356 = vector.extract_strided_slice %333 {offsets = [0, 16], sizes = [28, 16], strides = [1, 1]} : vector<28x128xbf16> to vector<28x16xbf16>
    %cst_133 = arith.constant dense<0.000000e+00> : vector<28x28xf32>
    %357 = tpu.matmul %355, %356, %cst_133 {dimension_numbers = #tpu.dot_dimension_numbers<[1], [1], [0], [0], [0, 0, 1, 0], [], []>} : vector<28x16xbf16>, vector<28x16xbf16>, vector<28x28xf32> -> vector<28x28xf32>
    %cst_134 = arith.constant dense<0xFF800000> : vector<28xf32>
    %358 = vector.multi_reduction <maximumf>, %357, %cst_134 [1] : vector<28x28xf32> to vector<28xf32>
    %359 = vector.shape_cast %358 : vector<28xf32> to vector<28x1xf32>
    %360 = vector.broadcast %359 : vector<28x1xf32> to vector<28x28xf32>
    %361 = arith.subf %357, %360 : vector<28x28xf32>
    %362 = math.exp %361 : vector<28x28xf32>
    %cst_135 = arith.constant dense<0.000000e+00> : vector<28xf32>
    %363 = vector.multi_reduction <add>, %362, %cst_135 [1] : vector<28x28xf32> to vector<28xf32>
    %364 = vector.shape_cast %363 : vector<28xf32> to vector<28x1xf32>
    %365 = tpu.reciprocal %364 {approx = true} : vector<28x1xf32> -> vector<28x1xf32>
    %366 = vector.broadcast %365 : vector<28x1xf32> to vector<28x28xf32>
    %367 = arith.mulf %362, %366 : vector<28x28xf32>
    %368 = arith.truncf %367 : vector<28x28xf32> to vector<28x28xbf16>
    %369 = vector.extract_strided_slice %335 {offsets = [0, 16], sizes = [28, 16], strides = [1, 1]} : vector<28x128xbf16> to vector<28x16xbf16>
    %cst_136 = arith.constant dense<0.000000e+00> : vector<28x16xf32>
    %370 = tpu.matmul %368, %369, %cst_136 {dimension_numbers = #tpu.dot_dimension_numbers<[1], [0], [0], [1], [0, 0, 1, 1], [], []>} : vector<28x28xbf16>, vector<28x16xbf16>, vector<28x16xf32> -> vector<28x16xf32>
    %371 = arith.truncf %370 : vector<28x16xf32> to vector<28x16xbf16>
    %372 = vector.extract_strided_slice %315 {offsets = [16, 0], sizes = [16, 128], strides = [1, 1]} : vector<128x128xbf16> to vector<16x128xbf16>
    %cst_137 = arith.constant dense<0.000000e+00> : vector<28x128xf32>
    %373 = tpu.matmul %371, %372, %cst_137 {dimension_numbers = #tpu.dot_dimension_numbers<[1], [0], [0], [1], [0, 0, 1, 1], [], []>} : vector<28x16xbf16>, vector<16x128xbf16>, vector<28x128xf32> -> vector<28x128xf32>
    %374 = arith.addf %354, %373 : vector<28x128xf32>
    %375 = vector.extract_strided_slice %331 {offsets = [0, 32], sizes = [28, 16], strides = [1, 1]} : vector<28x128xbf16> to vector<28x16xbf16>
    %376 = vector.extract_strided_slice %333 {offsets = [0, 32], sizes = [28, 16], strides = [1, 1]} : vector<28x128xbf16> to vector<28x16xbf16>
    %cst_138 = arith.constant dense<0.000000e+00> : vector<28x28xf32>
    %377 = tpu.matmul %375, %376, %cst_138 {dimension_numbers = #tpu.dot_dimension_numbers<[1], [1], [0], [0], [0, 0, 1, 0], [], []>} : vector<28x16xbf16>, vector<28x16xbf16>, vector<28x28xf32> -> vector<28x28xf32>
    %cst_139 = arith.constant dense<0xFF800000> : vector<28xf32>
    %378 = vector.multi_reduction <maximumf>, %377, %cst_139 [1] : vector<28x28xf32> to vector<28xf32>
    %379 = vector.shape_cast %378 : vector<28xf32> to vector<28x1xf32>
    %380 = vector.broadcast %379 : vector<28x1xf32> to vector<28x28xf32>
    %381 = arith.subf %377, %380 : vector<28x28xf32>
    %382 = math.exp %381 : vector<28x28xf32>
    %cst_140 = arith.constant dense<0.000000e+00> : vector<28xf32>
    %383 = vector.multi_reduction <add>, %382, %cst_140 [1] : vector<28x28xf32> to vector<28xf32>
    %384 = vector.shape_cast %383 : vector<28xf32> to vector<28x1xf32>
    %385 = tpu.reciprocal %384 {approx = true} : vector<28x1xf32> -> vector<28x1xf32>
    %386 = vector.broadcast %385 : vector<28x1xf32> to vector<28x28xf32>
    %387 = arith.mulf %382, %386 : vector<28x28xf32>
    %388 = arith.truncf %387 : vector<28x28xf32> to vector<28x28xbf16>
    %389 = vector.extract_strided_slice %335 {offsets = [0, 32], sizes = [28, 16], strides = [1, 1]} : vector<28x128xbf16> to vector<28x16xbf16>
    %cst_141 = arith.constant dense<0.000000e+00> : vector<28x16xf32>
    %390 = tpu.matmul %388, %389, %cst_141 {dimension_numbers = #tpu.dot_dimension_numbers<[1], [0], [0], [1], [0, 0, 1, 1], [], []>} : vector<28x28xbf16>, vector<28x16xbf16>, vector<28x16xf32> -> vector<28x16xf32>
    %391 = arith.truncf %390 : vector<28x16xf32> to vector<28x16xbf16>
    %392 = vector.extract_strided_slice %315 {offsets = [32, 0], sizes = [16, 128], strides = [1, 1]} : vector<128x128xbf16> to vector<16x128xbf16>
    %cst_142 = arith.constant dense<0.000000e+00> : vector<28x128xf32>
    %393 = tpu.matmul %391, %392, %cst_142 {dimension_numbers = #tpu.dot_dimension_numbers<[1], [0], [0], [1], [0, 0, 1, 1], [], []>} : vector<28x16xbf16>, vector<16x128xbf16>, vector<28x128xf32> -> vector<28x128xf32>
    %394 = arith.addf %374, %393 : vector<28x128xf32>
    %395 = vector.extract_strided_slice %331 {offsets = [0, 48], sizes = [28, 16], strides = [1, 1]} : vector<28x128xbf16> to vector<28x16xbf16>
    %396 = vector.extract_strided_slice %333 {offsets = [0, 48], sizes = [28, 16], strides = [1, 1]} : vector<28x128xbf16> to vector<28x16xbf16>
    %cst_143 = arith.constant dense<0.000000e+00> : vector<28x28xf32>
    %397 = tpu.matmul %395, %396, %cst_143 {dimension_numbers = #tpu.dot_dimension_numbers<[1], [1], [0], [0], [0, 0, 1, 0], [], []>} : vector<28x16xbf16>, vector<28x16xbf16>, vector<28x28xf32> -> vector<28x28xf32>
    %cst_144 = arith.constant dense<0xFF800000> : vector<28xf32>
    %398 = vector.multi_reduction <maximumf>, %397, %cst_144 [1] : vector<28x28xf32> to vector<28xf32>
    %399 = vector.shape_cast %398 : vector<28xf32> to vector<28x1xf32>
    %400 = vector.broadcast %399 : vector<28x1xf32> to vector<28x28xf32>
    %401 = arith.subf %397, %400 : vector<28x28xf32>
    %402 = math.exp %401 : vector<28x28xf32>
    %cst_145 = arith.constant dense<0.000000e+00> : vector<28xf32>
    %403 = vector.multi_reduction <add>, %402, %cst_145 [1] : vector<28x28xf32> to vector<28xf32>
    %404 = vector.shape_cast %403 : vector<28xf32> to vector<28x1xf32>
    %405 = tpu.reciprocal %404 {approx = true} : vector<28x1xf32> -> vector<28x1xf32>
    %406 = vector.broadcast %405 : vector<28x1xf32> to vector<28x28xf32>
    %407 = arith.mulf %402, %406 : vector<28x28xf32>
    %408 = arith.truncf %407 : vector<28x28xf32> to vector<28x28xbf16>
    %409 = vector.extract_strided_slice %335 {offsets = [0, 48], sizes = [28, 16], strides = [1, 1]} : vector<28x128xbf16> to vector<28x16xbf16>
    %cst_146 = arith.constant dense<0.000000e+00> : vector<28x16xf32>
    %410 = tpu.matmul %408, %409, %cst_146 {dimension_numbers = #tpu.dot_dimension_numbers<[1], [0], [0], [1], [0, 0, 1, 1], [], []>} : vector<28x28xbf16>, vector<28x16xbf16>, vector<28x16xf32> -> vector<28x16xf32>
    %411 = arith.truncf %410 : vector<28x16xf32> to vector<28x16xbf16>
    %412 = vector.extract_strided_slice %315 {offsets = [48, 0], sizes = [16, 128], strides = [1, 1]} : vector<128x128xbf16> to vector<16x128xbf16>
    %cst_147 = arith.constant dense<0.000000e+00> : vector<28x128xf32>
    %413 = tpu.matmul %411, %412, %cst_147 {dimension_numbers = #tpu.dot_dimension_numbers<[1], [0], [0], [1], [0, 0, 1, 1], [], []>} : vector<28x16xbf16>, vector<16x128xbf16>, vector<28x128xf32> -> vector<28x128xf32>
    %414 = arith.addf %394, %413 : vector<28x128xf32>
    %415 = vector.extract_strided_slice %331 {offsets = [0, 64], sizes = [28, 16], strides = [1, 1]} : vector<28x128xbf16> to vector<28x16xbf16>
    %416 = vector.extract_strided_slice %333 {offsets = [0, 64], sizes = [28, 16], strides = [1, 1]} : vector<28x128xbf16> to vector<28x16xbf16>
    %cst_148 = arith.constant dense<0.000000e+00> : vector<28x28xf32>
    %417 = tpu.matmul %415, %416, %cst_148 {dimension_numbers = #tpu.dot_dimension_numbers<[1], [1], [0], [0], [0, 0, 1, 0], [], []>} : vector<28x16xbf16>, vector<28x16xbf16>, vector<28x28xf32> -> vector<28x28xf32>
    %cst_149 = arith.constant dense<0xFF800000> : vector<28xf32>
    %418 = vector.multi_reduction <maximumf>, %417, %cst_149 [1] : vector<28x28xf32> to vector<28xf32>
    %419 = vector.shape_cast %418 : vector<28xf32> to vector<28x1xf32>
    %420 = vector.broadcast %419 : vector<28x1xf32> to vector<28x28xf32>
    %421 = arith.subf %417, %420 : vector<28x28xf32>
    %422 = math.exp %421 : vector<28x28xf32>
    %cst_150 = arith.constant dense<0.000000e+00> : vector<28xf32>
    %423 = vector.multi_reduction <add>, %422, %cst_150 [1] : vector<28x28xf32> to vector<28xf32>
    %424 = vector.shape_cast %423 : vector<28xf32> to vector<28x1xf32>
    %425 = tpu.reciprocal %424 {approx = true} : vector<28x1xf32> -> vector<28x1xf32>
    %426 = vector.broadcast %425 : vector<28x1xf32> to vector<28x28xf32>
    %427 = arith.mulf %422, %426 : vector<28x28xf32>
    %428 = arith.truncf %427 : vector<28x28xf32> to vector<28x28xbf16>
    %429 = vector.extract_strided_slice %335 {offsets = [0, 64], sizes = [28, 16], strides = [1, 1]} : vector<28x128xbf16> to vector<28x16xbf16>
    %cst_151 = arith.constant dense<0.000000e+00> : vector<28x16xf32>
    %430 = tpu.matmul %428, %429, %cst_151 {dimension_numbers = #tpu.dot_dimension_numbers<[1], [0], [0], [1], [0, 0, 1, 1], [], []>} : vector<28x28xbf16>, vector<28x16xbf16>, vector<28x16xf32> -> vector<28x16xf32>
    %431 = arith.truncf %430 : vector<28x16xf32> to vector<28x16xbf16>
    %432 = vector.extract_strided_slice %315 {offsets = [64, 0], sizes = [16, 128], strides = [1, 1]} : vector<128x128xbf16> to vector<16x128xbf16>
    %cst_152 = arith.constant dense<0.000000e+00> : vector<28x128xf32>
    %433 = tpu.matmul %431, %432, %cst_152 {dimension_numbers = #tpu.dot_dimension_numbers<[1], [0], [0], [1], [0, 0, 1, 1], [], []>} : vector<28x16xbf16>, vector<16x128xbf16>, vector<28x128xf32> -> vector<28x128xf32>
    %434 = arith.addf %414, %433 : vector<28x128xf32>
    %435 = vector.extract_strided_slice %331 {offsets = [0, 80], sizes = [28, 16], strides = [1, 1]} : vector<28x128xbf16> to vector<28x16xbf16>
    %436 = vector.extract_strided_slice %333 {offsets = [0, 80], sizes = [28, 16], strides = [1, 1]} : vector<28x128xbf16> to vector<28x16xbf16>
    %cst_153 = arith.constant dense<0.000000e+00> : vector<28x28xf32>
    %437 = tpu.matmul %435, %436, %cst_153 {dimension_numbers = #tpu.dot_dimension_numbers<[1], [1], [0], [0], [0, 0, 1, 0], [], []>} : vector<28x16xbf16>, vector<28x16xbf16>, vector<28x28xf32> -> vector<28x28xf32>
    %cst_154 = arith.constant dense<0xFF800000> : vector<28xf32>
    %438 = vector.multi_reduction <maximumf>, %437, %cst_154 [1] : vector<28x28xf32> to vector<28xf32>
    %439 = vector.shape_cast %438 : vector<28xf32> to vector<28x1xf32>
    %440 = vector.broadcast %439 : vector<28x1xf32> to vector<28x28xf32>
    %441 = arith.subf %437, %440 : vector<28x28xf32>
    %442 = math.exp %441 : vector<28x28xf32>
    %cst_155 = arith.constant dense<0.000000e+00> : vector<28xf32>
    %443 = vector.multi_reduction <add>, %442, %cst_155 [1] : vector<28x28xf32> to vector<28xf32>
    %444 = vector.shape_cast %443 : vector<28xf32> to vector<28x1xf32>
    %445 = tpu.reciprocal %444 {approx = true} : vector<28x1xf32> -> vector<28x1xf32>
    %446 = vector.broadcast %445 : vector<28x1xf32> to vector<28x28xf32>
    %447 = arith.mulf %442, %446 : vector<28x28xf32>
    %448 = arith.truncf %447 : vector<28x28xf32> to vector<28x28xbf16>
    %449 = vector.extract_strided_slice %335 {offsets = [0, 80], sizes = [28, 16], strides = [1, 1]} : vector<28x128xbf16> to vector<28x16xbf16>
    %cst_156 = arith.constant dense<0.000000e+00> : vector<28x16xf32>
    %450 = tpu.matmul %448, %449, %cst_156 {dimension_numbers = #tpu.dot_dimension_numbers<[1], [0], [0], [1], [0, 0, 1, 1], [], []>} : vector<28x28xbf16>, vector<28x16xbf16>, vector<28x16xf32> -> vector<28x16xf32>
    %451 = arith.truncf %450 : vector<28x16xf32> to vector<28x16xbf16>
    %452 = vector.extract_strided_slice %315 {offsets = [80, 0], sizes = [16, 128], strides = [1, 1]} : vector<128x128xbf16> to vector<16x128xbf16>
    %cst_157 = arith.constant dense<0.000000e+00> : vector<28x128xf32>
    %453 = tpu.matmul %451, %452, %cst_157 {dimension_numbers = #tpu.dot_dimension_numbers<[1], [0], [0], [1], [0, 0, 1, 1], [], []>} : vector<28x16xbf16>, vector<16x128xbf16>, vector<28x128xf32> -> vector<28x128xf32>
    %454 = arith.addf %434, %453 : vector<28x128xf32>
    %455 = vector.extract_strided_slice %331 {offsets = [0, 96], sizes = [28, 16], strides = [1, 1]} : vector<28x128xbf16> to vector<28x16xbf16>
    %456 = vector.extract_strided_slice %333 {offsets = [0, 96], sizes = [28, 16], strides = [1, 1]} : vector<28x128xbf16> to vector<28x16xbf16>
    %cst_158 = arith.constant dense<0.000000e+00> : vector<28x28xf32>
    %457 = tpu.matmul %455, %456, %cst_158 {dimension_numbers = #tpu.dot_dimension_numbers<[1], [1], [0], [0], [0, 0, 1, 0], [], []>} : vector<28x16xbf16>, vector<28x16xbf16>, vector<28x28xf32> -> vector<28x28xf32>
    %cst_159 = arith.constant dense<0xFF800000> : vector<28xf32>
    %458 = vector.multi_reduction <maximumf>, %457, %cst_159 [1] : vector<28x28xf32> to vector<28xf32>
    %459 = vector.shape_cast %458 : vector<28xf32> to vector<28x1xf32>
    %460 = vector.broadcast %459 : vector<28x1xf32> to vector<28x28xf32>
    %461 = arith.subf %457, %460 : vector<28x28xf32>
    %462 = math.exp %461 : vector<28x28xf32>
    %cst_160 = arith.constant dense<0.000000e+00> : vector<28xf32>
    %463 = vector.multi_reduction <add>, %462, %cst_160 [1] : vector<28x28xf32> to vector<28xf32>
    %464 = vector.shape_cast %463 : vector<28xf32> to vector<28x1xf32>
    %465 = tpu.reciprocal %464 {approx = true} : vector<28x1xf32> -> vector<28x1xf32>
    %466 = vector.broadcast %465 : vector<28x1xf32> to vector<28x28xf32>
    %467 = arith.mulf %462, %466 : vector<28x28xf32>
    %468 = arith.truncf %467 : vector<28x28xf32> to vector<28x28xbf16>
    %469 = vector.extract_strided_slice %335 {offsets = [0, 96], sizes = [28, 16], strides = [1, 1]} : vector<28x128xbf16> to vector<28x16xbf16>
    %cst_161 = arith.constant dense<0.000000e+00> : vector<28x16xf32>
    %470 = tpu.matmul %468, %469, %cst_161 {dimension_numbers = #tpu.dot_dimension_numbers<[1], [0], [0], [1], [0, 0, 1, 1], [], []>} : vector<28x28xbf16>, vector<28x16xbf16>, vector<28x16xf32> -> vector<28x16xf32>
    %471 = arith.truncf %470 : vector<28x16xf32> to vector<28x16xbf16>
    %472 = vector.extract_strided_slice %315 {offsets = [96, 0], sizes = [16, 128], strides = [1, 1]} : vector<128x128xbf16> to vector<16x128xbf16>
    %cst_162 = arith.constant dense<0.000000e+00> : vector<28x128xf32>
    %473 = tpu.matmul %471, %472, %cst_162 {dimension_numbers = #tpu.dot_dimension_numbers<[1], [0], [0], [1], [0, 0, 1, 1], [], []>} : vector<28x16xbf16>, vector<16x128xbf16>, vector<28x128xf32> -> vector<28x128xf32>
    %474 = arith.addf %454, %473 : vector<28x128xf32>
    %475 = vector.extract_strided_slice %331 {offsets = [0, 112], sizes = [28, 16], strides = [1, 1]} : vector<28x128xbf16> to vector<28x16xbf16>
    %476 = vector.extract_strided_slice %333 {offsets = [0, 112], sizes = [28, 16], strides = [1, 1]} : vector<28x128xbf16> to vector<28x16xbf16>
    %cst_163 = arith.constant dense<0.000000e+00> : vector<28x28xf32>
    %477 = tpu.matmul %475, %476, %cst_163 {dimension_numbers = #tpu.dot_dimension_numbers<[1], [1], [0], [0], [0, 0, 1, 0], [], []>} : vector<28x16xbf16>, vector<28x16xbf16>, vector<28x28xf32> -> vector<28x28xf32>
    %cst_164 = arith.constant dense<0xFF800000> : vector<28xf32>
    %478 = vector.multi_reduction <maximumf>, %477, %cst_164 [1] : vector<28x28xf32> to vector<28xf32>
    %479 = vector.shape_cast %478 : vector<28xf32> to vector<28x1xf32>
    %480 = vector.broadcast %479 : vector<28x1xf32> to vector<28x28xf32>
    %481 = arith.subf %477, %480 : vector<28x28xf32>
    %482 = math.exp %481 : vector<28x28xf32>
    %cst_165 = arith.constant dense<0.000000e+00> : vector<28xf32>
    %483 = vector.multi_reduction <add>, %482, %cst_165 [1] : vector<28x28xf32> to vector<28xf32>
    %484 = vector.shape_cast %483 : vector<28xf32> to vector<28x1xf32>
    %485 = tpu.reciprocal %484 {approx = true} : vector<28x1xf32> -> vector<28x1xf32>
    %486 = vector.broadcast %485 : vector<28x1xf32> to vector<28x28xf32>
    %487 = arith.mulf %482, %486 : vector<28x28xf32>
    %488 = arith.truncf %487 : vector<28x28xf32> to vector<28x28xbf16>
    %489 = vector.extract_strided_slice %335 {offsets = [0, 112], sizes = [28, 16], strides = [1, 1]} : vector<28x128xbf16> to vector<28x16xbf16>
    %cst_166 = arith.constant dense<0.000000e+00> : vector<28x16xf32>
    %490 = tpu.matmul %488, %489, %cst_166 {dimension_numbers = #tpu.dot_dimension_numbers<[1], [0], [0], [1], [0, 0, 1, 1], [], []>} : vector<28x28xbf16>, vector<28x16xbf16>, vector<28x16xf32> -> vector<28x16xf32>
    %491 = arith.truncf %490 : vector<28x16xf32> to vector<28x16xbf16>
    %492 = vector.extract_strided_slice %315 {offsets = [112, 0], sizes = [16, 128], strides = [1, 1]} : vector<128x128xbf16> to vector<16x128xbf16>
    %cst_167 = arith.constant dense<0.000000e+00> : vector<28x128xf32>
    %493 = tpu.matmul %491, %492, %cst_167 {dimension_numbers = #tpu.dot_dimension_numbers<[1], [0], [0], [1], [0, 0, 1, 1], [], []>} : vector<28x16xbf16>, vector<16x128xbf16>, vector<28x128xf32> -> vector<28x128xf32>
    %494 = arith.addf %474, %493 : vector<28x128xf32>
    %495 = vector.broadcast %319 : vector<1x128xf32> to vector<28x128xf32>
    %496 = arith.addf %494, %495 : vector<28x128xf32>
    %497 = arith.addf %313, %496 : vector<28x128xf32>
    %cst_168 = arith.constant dense<0.000000e+00> : vector<28xf32>
    %498 = vector.multi_reduction <add>, %497, %cst_168 [1] : vector<28x128xf32> to vector<28xf32>
    %499 = vector.shape_cast %498 : vector<28xf32> to vector<28x1xf32>
    %cst_169 = arith.constant 1.280000e+02 : f32
    %500 = vector.broadcast %cst_169 : f32 to vector<28x1xf32>
    %501 = arith.divf %499, %500 : vector<28x1xf32>
    %502 = vector.broadcast %501 : vector<28x1xf32> to vector<28x128xf32>
    %503 = arith.subf %497, %502 : vector<28x128xf32>
    %504 = arith.mulf %503, %503 : vector<28x128xf32>
    %cst_170 = arith.constant dense<0.000000e+00> : vector<28xf32>
    %505 = vector.multi_reduction <add>, %504, %cst_170 [1] : vector<28x128xf32> to vector<28xf32>
    %506 = vector.shape_cast %505 : vector<28xf32> to vector<28x1xf32>
    %cst_171 = arith.constant 1.280000e+02 : f32
    %507 = vector.broadcast %cst_171 : f32 to vector<28x1xf32>
    %508 = arith.divf %506, %507 : vector<28x1xf32>
    %cst_172 = arith.constant 9.99999974E-6 : f32
    %509 = vector.broadcast %cst_172 : f32 to vector<28x1xf32>
    %510 = arith.addf %508, %509 : vector<28x1xf32>
    %511 = math.rsqrt %510 : vector<28x1xf32>
    %512 = vector.broadcast %511 : vector<28x1xf32> to vector<28x128xf32>
    %513 = arith.mulf %503, %512 : vector<28x128xf32>
    %514 = vector.broadcast %320 : vector<1x128xf32> to vector<28x128xf32>
    %515 = arith.mulf %513, %514 : vector<28x128xf32>
    %516 = vector.broadcast %321 : vector<1x128xf32> to vector<28x128xf32>
    %517 = arith.addf %515, %516 : vector<28x128xf32>
    %518 = arith.truncf %517 : vector<28x128xf32> to vector<28x128xbf16>
    %cst_173 = arith.constant dense<0.000000e+00> : vector<28x256xf32>
    %519 = tpu.matmul %518, %316, %cst_173 {dimension_numbers = #tpu.dot_dimension_numbers<[1], [0], [0], [1], [0, 0, 1, 1], [], []>} : vector<28x128xbf16>, vector<128x256xbf16>, vector<28x256xf32> -> vector<28x256xf32>
    %520 = vector.broadcast %322 : vector<1x256xf32> to vector<28x256xf32>
    %521 = arith.addf %519, %520 : vector<28x256xf32>
    %cst_174 = arith.constant 5.000000e-01 : f32
    %522 = vector.broadcast %cst_174 : f32 to vector<28x256xf32>
    %523 = arith.mulf %522, %521 : vector<28x256xf32>
    %cst_175 = arith.constant 4.471500e-02 : f32
    %524 = vector.broadcast %cst_175 : f32 to vector<28x256xf32>
    %525 = arith.mulf %524, %521 : vector<28x256xf32>
    %526 = arith.mulf %525, %521 : vector<28x256xf32>
    %527 = arith.mulf %526, %521 : vector<28x256xf32>
    %528 = arith.addf %521, %527 : vector<28x256xf32>
    %cst_176 = arith.constant 0.797884583 : f32
    %529 = vector.broadcast %cst_176 : f32 to vector<28x256xf32>
    %530 = arith.mulf %529, %528 : vector<28x256xf32>
    %531 = math.tanh %530 : vector<28x256xf32>
    %cst_177 = arith.constant 1.000000e+00 : f32
    %532 = vector.broadcast %cst_177 : f32 to vector<28x256xf32>
    %533 = arith.addf %532, %531 : vector<28x256xf32>
    %534 = arith.mulf %523, %533 : vector<28x256xf32>
    %535 = arith.truncf %534 : vector<28x256xf32> to vector<28x256xbf16>
    %cst_178 = arith.constant dense<0.000000e+00> : vector<28x128xf32>
    %536 = tpu.matmul %535, %317, %cst_178 {dimension_numbers = #tpu.dot_dimension_numbers<[1], [0], [0], [1], [0, 0, 1, 1], [], []>} : vector<28x256xbf16>, vector<256x128xbf16>, vector<28x128xf32> -> vector<28x128xf32>
    %537 = vector.broadcast %323 : vector<1x128xf32> to vector<28x128xf32>
    %538 = arith.addf %536, %537 : vector<28x128xf32>
    %539 = arith.addf %517, %538 : vector<28x128xf32>
    %cst_179 = arith.constant dense<0.000000e+00> : vector<28xf32>
    %540 = vector.multi_reduction <add>, %539, %cst_179 [1] : vector<28x128xf32> to vector<28xf32>
    %541 = vector.shape_cast %540 : vector<28xf32> to vector<28x1xf32>
    %cst_180 = arith.constant 1.280000e+02 : f32
    %542 = vector.broadcast %cst_180 : f32 to vector<28x1xf32>
    %543 = arith.divf %541, %542 : vector<28x1xf32>
    %544 = vector.broadcast %543 : vector<28x1xf32> to vector<28x128xf32>
    %545 = arith.subf %539, %544 : vector<28x128xf32>
    %546 = arith.mulf %545, %545 : vector<28x128xf32>
    %cst_181 = arith.constant dense<0.000000e+00> : vector<28xf32>
    %547 = vector.multi_reduction <add>, %546, %cst_181 [1] : vector<28x128xf32> to vector<28xf32>
    %548 = vector.shape_cast %547 : vector<28xf32> to vector<28x1xf32>
    %cst_182 = arith.constant 1.280000e+02 : f32
    %549 = vector.broadcast %cst_182 : f32 to vector<28x1xf32>
    %550 = arith.divf %548, %549 : vector<28x1xf32>
    %cst_183 = arith.constant 9.99999974E-6 : f32
    %551 = vector.broadcast %cst_183 : f32 to vector<28x1xf32>
    %552 = arith.addf %550, %551 : vector<28x1xf32>
    %553 = math.rsqrt %552 : vector<28x1xf32>
    %554 = vector.broadcast %553 : vector<28x1xf32> to vector<28x128xf32>
    %555 = arith.mulf %545, %554 : vector<28x128xf32>
    %556 = vector.broadcast %324 : vector<1x128xf32> to vector<28x128xf32>
    %557 = arith.mulf %555, %556 : vector<28x128xf32>
    %558 = vector.broadcast %325 : vector<1x128xf32> to vector<28x128xf32>
    %559 = arith.addf %557, %558 : vector<28x128xf32>
    %c0_184 = arith.constant 0 : index
    %c0_185 = arith.constant 0 : index
    %c0_186 = arith.constant 0 : index
    %560 = vector.load %arg7[%c0_184, %c0_185, %c0_186] : memref<1x28x128xf32, #tpu.memory_space<vmem>>, vector<1x28x128xf32>
    %561 = vector.shape_cast %560 : vector<1x28x128xf32> to vector<28x128xf32>
    %562 = vector.shape_cast %559 : vector<28x128xf32> to vector<1x28x128xf32>
    tpu.vector_store %arg7[%c0_184, %c0_185, %c0_186], %562 {strides = array<i32>} : memref<1x28x128xf32, #tpu.memory_space<vmem>>, vector<1x28x128xf32>,
    return
  }
  func.func @transform_0(%arg0: i32) -> (i32, i32, i32) {
    %c0_i32 = arith.constant 0 : i32
    %c0_i32_0 = arith.constant 0 : i32
    %c0_i32_1 = arith.constant 0 : i32
    return %arg0, %c0_i32, %c0_i32_0 : i32, i32, i32
  }
  func.func @transform_1(%arg0: i32) -> (i32, i32) {
    %c0_i32 = arith.constant 0 : i32
    %c0_i32_0 = arith.constant 0 : i32
    %c0_i32_1 = arith.constant 0 : i32
    return %c0_i32, %c0_i32_0 : i32, i32
  }
  func.func @transform_2(%arg0: i32) -> (i32, i32) {
    %c0_i32 = arith.constant 0 : i32
    %c0_i32_0 = arith.constant 0 : i32
    %c0_i32_1 = arith.constant 0 : i32
    return %c0_i32, %c0_i32_0 : i32, i32
  }
  func.func @transform_3(%arg0: i32) -> (i32, i32) {
    %c0_i32 = arith.constant 0 : i32
    %c0_i32_0 = arith.constant 0 : i32
    %c0_i32_1 = arith.constant 0 : i32
    return %c0_i32, %c0_i32_0 : i32, i32
  }
  func.func @transform_4(%arg0: i32) -> (i32, i32) {
    %c0_i32 = arith.constant 0 : i32
    %c0_i32_0 = arith.constant 0 : i32
    %c0_i32_1 = arith.constant 0 : i32
    return %c0_i32, %c0_i32_0 : i32, i32
  }
  func.func @transform_5(%arg0: i32) -> (i32, i32) {
    %c0_i32 = arith.constant 0 : i32
    %c0_i32_0 = arith.constant 0 : i32
    %c0_i32_1 = arith.constant 0 : i32
    return %c0_i32, %c0_i32_0 : i32, i32
  }
  func.func @transform_6(%arg0: i32) -> (i32, i32, i32) {
    %c0_i32 = arith.constant 0 : i32
    %c0_i32_0 = arith.constant 0 : i32
    %c0_i32_1 = arith.constant 0 : i32
    return %arg0, %c0_i32, %c0_i32_0 : i32, i32, i32
  }
}

</mosaic_0001>

<llo_original>
// kernel: mcnn_forward.1
$region0: #{mcnn_forward.1}
  #allocation0 [shape = 'u32[]', space=smem, size = 0x4, offset = 0x4, fixed_abs, tag = 'smem constant byte address 0x4 - core index']
  #allocation1 [shape = 'u32[72,128]{1,0:T(1,128)}', space=vmem, size = 0x9000, scoped, tag = 'internal scratch']
  %s0 = inlined_call_operand.vmem [shape: f32[2,28,28], index: 0, kind: input, shape index: {}]
  %s1 = inlined_call_operand.vmem [shape: f32[72,128], index: 1, kind: input, shape index: {}]
  %s2 = inlined_call_operand.vmem [shape: bf16[896,128], index: 2, kind: input, shape index: {}]
  %s3 = inlined_call_operand.vmem [shape: bf16[256,768], index: 3, kind: input, shape index: {}]
  %s4 = inlined_call_operand.vmem [shape: bf16[512,128], index: 4, kind: input, shape index: {}]
  %s5 = inlined_call_operand.vmem [shape: f32[16,384], index: 5, kind: input, shape index: {}]
  %s6 = inlined_call_operand.vmem [shape: f32[2,28,128], index: 6, kind: output, shape index: {}]
  %s7 = sld [smem:[#allocation0]]
  $region57: #{mcnn_forward.1} parent=0
    _
  %s9 = ssub.s32 1, %s7
  %s10 = scalar_select 0, %s9, %s7
  loop: start=0, step=1, limit=4
  $region2: #{mcnn_forward.1} parent=0 // loop_pre_header
    _
  $region3: #{mcnn_forward.1} parent=0 // loop_header
    %s12 = sphi 0, %s16
    %p13 = scmp.ge.s32.totalorder %s12, 4
    %s22 = sphi 0, %s24
    %s25 = sphi 0, %s22
    %s26 = sphi 0, %s25
    %s42 = sphi 0, %s26
    %s46 = sphi 0, %s46
    %s48 = sphi 0, %s46
    %s49 = sphi 0, %s48
    %s63 = sphi 0, %s49
    %s67 = sphi 0, %s67
    %s69 = sphi 0, %s67
    %s70 = sphi 0, %s69
    %s84 = sphi 0, %s70
    %s88 = sphi 0, %s88
    %s90 = sphi 0, %s88
    %s91 = sphi 0, %s90
    %s105 = sphi 0, %s91
    %s109 = sphi 0, %s109
    %s111 = sphi 0, %s109
    %s112 = sphi 0, %s111
    %s126 = sphi 0, %s112
    %s130 = sphi 0, %s130
    %s132 = sphi 0, %s130
    %s133 = sphi 0, %s132
    %s147 = sphi 0, %s133
    %s153 = sphi 0, %s155
    %s156 = sphi 0, %s153
    %s157 = sphi 0, %s156
    %s173 = sphi 0, %s157
  $region4: #{mcnn_forward.1} parent=0 // loop_header_branch
    %15 = sbr.rel (%p13) target = $region8
  $region5: #{mcnn_forward.1} parent=0 // loop_body
    %s17 = ssub.s32 %s12, 1
    %s18 = ssub.s32 %s12, 2
    %s19 = sadd.s32 %s12, 1
    %s20 = ssub.s32 %s12, %s19
    %p21 = scmp.eq.s32.totalorder %s20, 0
    %s23 = sadd.s32 %s22, 1
    %s24 = scalar_select %p21, %s22, %s23
    %p27 = pneg %p21
    %p28 = scmp.eq.s32.totalorder %s12, 1
    %p29 = por %p27, %p28
    %p30 = scmp.ne.s32.totalorder %s22, %s25
    %p31 = scmp.eq.s32.totalorder %s12, 0
    %p32 = por %p30, %p31
    %p33 = scmp.ne.s32.totalorder %s22, %s25
    %p34 = scmp.eq.s32.totalorder %s17, 1
    %p35 = por %p33, %p34
    %p36 = scmp.ne.s32.totalorder %s25, %s26
    %p37 = scmp.eq.s32.totalorder %s17, 0
    %p38 = por %p36, %p37
    %p39 = scmp.ne.s32.totalorder %s25, %s26
    %p40 = scmp.eq.s32.totalorder %s18, 1
    %p41 = por %p39, %p40
    %p43 = scmp.ne.s32.totalorder %s26, %s42
    %p44 = scmp.eq.s32.totalorder %s18, 0
    %p45 = por %p43, %p44
    %s47 = sadd.s32 %s46, 1
    %p50 = scmp.eq.s32.totalorder %s12, 1
    %p51 = scmp.ne.s32.totalorder %s46, %s48
    %p52 = scmp.eq.s32.totalorder %s12, 0
    %p53 = por %p51, %p52
    %p54 = scmp.ne.s32.totalorder %s46, %s48
    %p55 = scmp.eq.s32.totalorder %s17, 1
    %p56 = por %p54, %p55
    %p57 = scmp.ne.s32.totalorder %s48, %s49
    %p58 = scmp.eq.s32.totalorder %s17, 0
    %p59 = por %p57, %p58
    %p60 = scmp.ne.s32.totalorder %s48, %s49
    %p61 = scmp.eq.s32.totalorder %s18, 1
    %p62 = por %p60, %p61
    %p64 = scmp.ne.s32.totalorder %s49, %s63
    %p65 = scmp.eq.s32.totalorder %s18, 0
    %p66 = por %p64, %p65
    %s68 = sadd.s32 %s67, 1
    %p71 = scmp.eq.s32.totalorder %s12, 1
    %p72 = scmp.ne.s32.totalorder %s67, %s69
    %p73 = scmp.eq.s32.totalorder %s12, 0
    %p74 = por %p72, %p73
    %p75 = scmp.ne.s32.totalorder %s67, %s69
    %p76 = scmp.eq.s32.totalorder %s17, 1
    %p77 = por %p75, %p76
    %p78 = scmp.ne.s32.totalorder %s69, %s70
    %p79 = scmp.eq.s32.totalorder %s17, 0
    %p80 = por %p78, %p79
    %p81 = scmp.ne.s32.totalorder %s69, %s70
    %p82 = scmp.eq.s32.totalorder %s18, 1
    %p83 = por %p81, %p82
    %p85 = scmp.ne.s32.totalorder %s70, %s84
    %p86 = scmp.eq.s32.totalorder %s18, 0
    %p87 = por %p85, %p86
    %s89 = sadd.s32 %s88, 1
    %p92 = scmp.eq.s32.totalorder %s12, 1
    %p93 = scmp.ne.s32.totalorder %s88, %s90
    %p94 = scmp.eq.s32.totalorder %s12, 0
    %p95 = por %p93, %p94
    %p96 = scmp.ne.s32.totalorder %s88, %s90
    %p97 = scmp.eq.s32.totalorder %s17, 1
    %p98 = por %p96, %p97
    %p99 = scmp.ne.s32.totalorder %s90, %s91
    %p100 = scmp.eq.s32.totalorder %s17, 0
    %p101 = por %p99, %p100
    %p102 = scmp.ne.s32.totalorder %s90, %s91
    %p103 = scmp.eq.s32.totalorder %s18, 1
    %p104 = por %p102, %p103
    %p106 = scmp.ne.s32.totalorder %s91, %s105
    %p107 = scmp.eq.s32.totalorder %s18, 0
    %p108 = por %p106, %p107
    %s110 = sadd.s32 %s109, 1
    %p113 = scmp.eq.s32.totalorder %s12, 1
    %p114 = scmp.ne.s32.totalorder %s109, %s111
    %p115 = scmp.eq.s32.totalorder %s12, 0
    %p116 = por %p114, %p115
    %p117 = scmp.ne.s32.totalorder %s109, %s111
    %p118 = scmp.eq.s32.totalorder %s17, 1
    %p119 = por %p117, %p118
    %p120 = scmp.ne.s32.totalorder %s111, %s112
    %p121 = scmp.eq.s32.totalorder %s17, 0
    %p122 = por %p120, %p121
    %p123 = scmp.ne.s32.totalorder %s111, %s112
    %p124 = scmp.eq.s32.totalorder %s18, 1
    %p125 = por %p123, %p124
    %p127 = scmp.ne.s32.totalorder %s112, %s126
    %p128 = scmp.eq.s32.totalorder %s18, 0
    %p129 = por %p127, %p128
    %s131 = sadd.s32 %s130, 1
    %p134 = scmp.eq.s32.totalorder %s12, 1
    %p135 = scmp.ne.s32.totalorder %s130, %s132
    %p136 = scmp.eq.s32.totalorder %s12, 0
    %p137 = por %p135, %p136
    %p138 = scmp.ne.s32.totalorder %s130, %s132
    %p139 = scmp.eq.s32.totalorder %s17, 1
    %p140 = por %p138, %p139
    %p141 = scmp.ne.s32.totalorder %s132, %s133
    %p142 = scmp.eq.s32.totalorder %s17, 0
    %p143 = por %p141, %p142
    %p144 = scmp.ne.s32.totalorder %s132, %s133
    %p145 = scmp.eq.s32.totalorder %s18, 1
    %p146 = por %p144, %p145
    %p148 = scmp.ne.s32.totalorder %s133, %s147
    %p149 = scmp.eq.s32.totalorder %s18, 0
    %p150 = por %p148, %p149
    %s151 = ssub.s32 %s12, %s19
    %p152 = scmp.eq.s32.totalorder %s151, 0
    %s154 = sadd.s32 %s153, 1
    %s155 = scalar_select %p152, %s153, %s154
    %p158 = pneg %p152
    %p159 = scmp.eq.s32.totalorder %s12, 1
    %p160 = por %p158, %p159
    %p161 = scmp.ne.s32.totalorder %s153, %s156
    %p162 = scmp.eq.s32.totalorder %s12, 0
    %p163 = por %p161, %p162
    %p164 = scmp.ne.s32.totalorder %s153, %s156
    %p165 = scmp.eq.s32.totalorder %s17, 1
    %p166 = por %p164, %p165
    %p167 = scmp.ne.s32.totalorder %s156, %s157
    %p168 = scmp.eq.s32.totalorder %s17, 0
    %p169 = por %p167, %p168
    %p170 = scmp.ne.s32.totalorder %s156, %s157
    %p171 = scmp.eq.s32.totalorder %s18, 1
    %p172 = por %p170, %p171
    %p174 = scmp.ne.s32.totalorder %s157, %s173
    %p175 = scmp.eq.s32.totalorder %s18, 0
    %p176 = por %p174, %p175
    %p177 = scmp.le.s32.totalorder 1, %s12
    %p178 = scmp.lt.s32.totalorder %s12, 3
    %p179 = pnand %p177, %p178
    %p180 = pneg %p179
    // Predicated region
    $region9: #{mcnn_forward.1} parent=5 // pred_check
      _
    $region10: #{mcnn_forward.1} parent=5 // pred_check_branch
      %182 = sbr.rel (%p179) target = $region12
    $region11: #{mcnn_forward.1} parent=5 // pred_region
      %s183 = ssub.s32 %s12, 1
      // Predicated region
      $region13: #{mcnn_forward.1} parent=11 // pred_check
        %p184 = pneg %p59
      $region14: #{mcnn_forward.1} parent=11 // pred_check_branch
        %186 = sbr.rel (%p184) target = $region16
      $region15: #{mcnn_forward.1} parent=11 // pred_region
        _
      $region16: #{mcnn_forward.1} parent=11 // pred_fallthru
        _
      // Predicated region
      $region17: #{mcnn_forward.1} parent=11 // pred_check
        %p187 = pneg %p80
      $region18: #{mcnn_forward.1} parent=11 // pred_check_branch
        %189 = sbr.rel (%p187) target = $region20
      $region19: #{mcnn_forward.1} parent=11 // pred_region
        _
      $region20: #{mcnn_forward.1} parent=11 // pred_fallthru
        _
      // Predicated region
      $region21: #{mcnn_forward.1} parent=11 // pred_check
        %p190 = pneg %p101
      $region22: #{mcnn_forward.1} parent=11 // pred_check_branch
        %192 = sbr.rel (%p190) target = $region24
      $region23: #{mcnn_forward.1} parent=11 // pred_region
        _
      $region24: #{mcnn_forward.1} parent=11 // pred_fallthru
        _
      // Predicated region
      $region25: #{mcnn_forward.1} parent=11 // pred_check
        %p193 = pneg %p122
      $region26: #{mcnn_forward.1} parent=11 // pred_check_branch
        %195 = sbr.rel (%p193) target = $region28
      $region27: #{mcnn_forward.1} parent=11 // pred_region
        _
      $region28: #{mcnn_forward.1} parent=11 // pred_fallthru
        _
      // Predicated region
      $region29: #{mcnn_forward.1} parent=11 // pred_check
        %p196 = pneg %p143
      $region30: #{mcnn_forward.1} parent=11 // pred_check_branch
        %198 = sbr.rel (%p196) target = $region32
      $region31: #{mcnn_forward.1} parent=11 // pred_region
        _
      $region32: #{mcnn_forward.1} parent=11 // pred_fallthru
        _
    $region12: #{mcnn_forward.1} parent=5 // pred_fallthru
      _
    %p199 = scmp.lt.s32.totalorder %s12, 2
    // Predicated region
    $region33: #{mcnn_forward.1} parent=5 // pred_check
      %p200 = pneg %p199
    $region34: #{mcnn_forward.1} parent=5 // pred_check_branch
      %202 = sbr.rel (%p200) target = $region36
    $region35: #{mcnn_forward.1} parent=5 // pred_region
      // Predicated region
      $region37: #{mcnn_forward.1} parent=35 // pred_check
        %p203 = pneg %p32
      $region38: #{mcnn_forward.1} parent=35 // pred_check_branch
        %205 = sbr.rel (%p203) target = $region40
      $region39: #{mcnn_forward.1} parent=35 // pred_region
        %p206 = scmp.lt.s32.totalorder %s12, 1
        %s207 = scalar_select %p206, %s12, 1
        %s208 = smul.addr %s207, 4
        %s209 = smul.addr %s208, 8
        %s210 = scalar_lea.vmem %s0, %s209
      $region40: #{mcnn_forward.1} parent=35 // pred_fallthru
        _
    $region36: #{mcnn_forward.1} parent=5 // pred_fallthru
      _
    %p211 = scmp.le.s32.totalorder 1, %s12
    %p212 = scmp.lt.s32.totalorder %s12, 3
    %p213 = pnand %p211, %p212
    %p214 = pneg %p213
    // Predicated region
    $region41: #{mcnn_forward.1} parent=5 // pred_check
      _
    $region42: #{mcnn_forward.1} parent=5 // pred_check_branch
      %216 = sbr.rel (%p213) target = $region44
    $region43: #{mcnn_forward.1} parent=5 // pred_region
      %s217 = ssub.s32 %s12, 1
      %p218 = scmp.lt.s32.totalorder %s17, 1
      %s219 = scalar_select %p218, %s17, 1
      %s220 = smul.addr %s219, 4
      %s221 = smul.addr %s220, 8
      %s222 = scalar_lea.vmem %s0, %s221
      %p223 = pneg %p38
      %p224 = pneg %p35
      %p225 = pneg %p59
      %p226 = pneg %p56
      %p227 = pneg %p80
      %p228 = pneg %p77
      %p229 = pneg %p101
      %p230 = pneg %p98
      %p231 = pneg %p122
      %p232 = pneg %p119
      %p233 = pneg %p143
      %p234 = pneg %p140
      %p235 = pneg %p169
      %p236 = pneg %p166
      %p237 = scmp.lt.s32.totalorder %s17, 1
      %s238 = scalar_select %p237, %s17, 1
      %s239 = smul.addr %s238, 4
      %s240 = smul.addr %s239, 8
      %s241 = scalar_lea.vmem %s6, %s240
      %p242 = scmp.lt.s32.totalorder %s17, 1
      %s243 = scalar_select %p242, %s17, 1
      %s244 = smul.addr %s243, 4
      %s245 = smul.addr %s244, 8
      %s246 = scalar_lea.vmem %s0, %s245
      %p247 = scmp.lt.s32.totalorder %s17, 1
      %s248 = scalar_select %p247, %s17, 1
      %s249 = smul.addr %s248, 4
      %s250 = smul.addr %s249, 8
      %s251 = scalar_lea.vmem %s6, %s250
      %v253 = vld [vmem:[%s1] sm:$0xff]
      %v254 = vld [vmem:[%s1 + $0x8] sm:$0xff]
      %v255 = vld [vmem:[%s1 + $0x10] sm:$0xff]
      %v256 = vld [vmem:[%s1 + $0x18] sm:$0xf]
      %v257 = vld [vmem:[%s1 + $0x20] sm:$0x1]
      %v258 = vld [vmem:[%s1 + $0x21] sm:$0x1]
      %v259 = vld [vmem:[%s1 + $0x22] sm:$0x1]
      %v260 = vld [vmem:[%s1 + $0x23] sm:$0x1]
      %v261 = vld [vmem:[%s1 + $0x28] sm:$0xff]
      %v262 = vld [vmem:[%s1 + $0x30] sm:$0xff]
      %v263 = vld [vmem:[%s1 + $0x38] sm:$0xff]
      %v264 = vld [vmem:[%s1 + $0x40] sm:$0xf]
      %v265 = vld [vmem:[%s246] sm:$0xff]
      %v266 = vld [vmem:[%s246 + $0x8] sm:$0xff]
      %v267 = vld [vmem:[%s246 + $0x10] sm:$0xff]
      %v268 = vld [vmem:[%s246 + $0x18] sm:$0xf]
      %v269 = vperm.slane %v257, 0
      %vm270 = vcmask 228352
      %v272 = vsel %vm270, %v265, 0
      %v275 = vsel %vm270, %v266, 0
      %v278 = vsel %vm270, %v267, 0
      %v281 = vsel %vm270, %v268, 0
      %vm283 = vcmask 1043456
      %v285 = vsel %vm283, %v256, 0
      %287 = vmatpush.msra.mxu0 0.0
      %288 = vmatpush.msra.mxu0 0.0
      %289 = vmatpush.msra.mxu0 0.0
      %290 = vmatpush.msra.mxu0 0.0
      %291 = vmatpush.msra.mxu0 0.0
      %292 = vmatpush.msra.mxu0 0.0
      %293 = vmatpush.msra.mxu0 0.0
      %294 = vmatpush.msra.mxu0 0.0
      %295 = vmatpush.msra.mxu0 0.0
      %296 = vmatpush.msra.mxu0 0.0
      %297 = vmatpush.msra.mxu0 0.0
      %298 = vmatpush.msra.mxu0 0.0
      %299 = vmatpush.msra.mxu0 %v285
      %300 = vmatpush.msra.mxu0 %v255
      %301 = vmatpush.msra.mxu0 %v254
      %302 = vmatpush.msra.mxu0 %v253
      %303 = vmatmul.f32.gmra.mxu0 %v272
      %v304 = vpop.f32.mrf.mxu0
      %v305 = vadd.f32 %v269, %v304
      %306 = vmatmul.f32.gmra.mxu0 %v275
      %v307 = vpop.f32.mrf.mxu0
      %v308 = vadd.f32 %v269, %v307
      %309 = vmatmul.f32.gmra.mxu0 %v278
      %v310 = vpop.f32.mrf.mxu0
      %v311 = vadd.f32 %v269, %v310
      %312 = vmatmul.f32.gmra.mxu0 %v281
      %v313 = vpop.f32.mrf.mxu0
      %v314 = vadd.f32 %v269, %v313
      %315 = vdwg.mxu0
      %v316 = vperm.slane %v258, 0
      %v317 = vmul.f32 %v305, %v316
      %v318 = vmul.f32 %v308, %v316
      %v319 = vmul.f32 %v311, %v316
      %v320 = vmul.f32 %v314, %v316
      %v321 = vperm.slane %v259, 0
      %v322 = vadd.f32 %v317, %v321
      %v323 = vadd.f32 %v318, %v321
      %v324 = vadd.f32 %v319, %v321
      %v325 = vadd.f32 %v320, %v321
      %v326 = vmul.f32 %v322, 0.5
      %v327 = vmul.f32 %v323, 0.5
      %v328 = vmul.f32 %v324, 0.5
      %v329 = vmul.f32 %v325, 0.5
      %v330 = vmul.f32 %v322, 0.044715
      %v331 = vmul.f32 %v323, 0.044715
      %v332 = vmul.f32 %v324, 0.044715
      %v333 = vmul.f32 %v325, 0.044715
      %v334 = vmul.f32 %v330, %v322
      %v335 = vmul.f32 %v331, %v323
      %v336 = vmul.f32 %v332, %v324
      %v337 = vmul.f32 %v333, %v325
      %v338 = vmul.f32 %v334, %v322
      %v339 = vmul.f32 %v335, %v323
      %v340 = vmul.f32 %v336, %v324
      %v341 = vmul.f32 %v337, %v325
      %v342 = vadd.f32 %v322, %v338
      %v343 = vadd.f32 %v323, %v339
      %v344 = vadd.f32 %v324, %v340
      %v345 = vadd.f32 %v325, %v341
      %v346 = vmul.f32 %v342, 0.7978846
      %v347 = vmul.f32 %v343, 0.7978846
      %v348 = vmul.f32 %v344, 0.7978846
      %v349 = vmul.f32 %v345, 0.7978846
      %v350 = vtanh.pop %v346
      %v351 = vtanh.pop %v347
      %v352 = vtanh.pop %v348
      %v353 = vtanh.pop %v349
      %v354 = vadd.f32 %v350, 1.0
      %v355 = vadd.f32 %v351, 1.0
      %v356 = vadd.f32 %v352, 1.0
      %v357 = vadd.f32 %v353, 1.0
      %v358 = vmul.f32 %v326, %v354
      %v359 = vmul.f32 %v327, %v355
      %v360 = vmul.f32 %v328, %v356
      %v361 = vmul.f32 %v329, %v357
      %v362 = vsel %vm283, %v361, 0.0
      %v363 = vrot.slane %v358, 5
      %v364 = vrot.slane %v359, 5
      %v365 = vrot.slane %v360, 5
      %v366 = vrot.slane %v362, 5
      %v367 = vlaneseq
      %v368 = vshrl.u32 %v367, 7
      %vm369 = vcmp.lt.s32.totalorder %v368, 3
      %v370 = vsel %vm369, %v365, %v366
      %v371 = vsel %vm369, %v364, %v365
      %v372 = vsel %vm369, %v363, %v364
      %v373 = vsel %vm369, %v366, %v363
      %v374 = vpack.c.bf16 %v372, %v373
      %v375 = vpack.c.bf16 %v370, %v371
      %v376 = vld [vmem:[%s2] sm:$0xf]
      %v377 = vld [vmem:[%s2 + $0x4] sm:$0xf]
      %v378 = vld [vmem:[%s2 + $0x8] sm:$0xf]
      %v379 = vld [vmem:[%s2 + $0xc] sm:$0xf]
      %v380 = vld [vmem:[%s2 + $0x10] sm:$0xf]
      %v381 = vld [vmem:[%s2 + $0x14] sm:$0xf]
      %v382 = vld [vmem:[%s2 + $0x18] sm:$0xf]
      %v383 = vld [vmem:[%s2 + $0x1c] sm:$0xf]
      %v384 = vld [vmem:[%s2 + $0x20] sm:$0xf]
      %v385 = vld [vmem:[%s2 + $0x24] sm:$0xf]
      %v386 = vld [vmem:[%s2 + $0x28] sm:$0xf]
      %v387 = vld [vmem:[%s2 + $0x2c] sm:$0xf]
      %v388 = vld [vmem:[%s2 + $0x30] sm:$0xf]
      %v389 = vld [vmem:[%s2 + $0x34] sm:$0xf]
      %v390 = vld [vmem:[%s2 + $0x38] sm:$0xf]
      %v391 = vld [vmem:[%s2 + $0x3c] sm:$0xf]
      %v392 = vrot.slane %v358, 6
      %v393 = vrot.slane %v359, 6
      %v394 = vrot.slane %v360, 6
      %v395 = vrot.slane %v362, 6
      %vm396 = vcmp.lt.s32.totalorder %v368, 2
      %v397 = vsel %vm396, %v394, %v395
      %v398 = vsel %vm396, %v393, %v394
      %v399 = vsel %vm396, %v392, %v393
      %v400 = vsel %vm396, %v395, %v392
      %v401 = vpack.c.bf16 %v399, %v400
      %v402 = vpack.c.bf16 %v397, %v398
      %v403 = vld [vmem:[%s2 + $0x40] sm:$0xf]
      %v404 = vld [vmem:[%s2 + $0x44] sm:$0xf]
      %v405 = vld [vmem:[%s2 + $0x48] sm:$0xf]
      %v406 = vld [vmem:[%s2 + $0x4c] sm:$0xf]
      %v407 = vld [vmem:[%s2 + $0x50] sm:$0xf]
      %v408 = vld [vmem:[%s2 + $0x54] sm:$0xf]
      %v409 = vld [vmem:[%s2 + $0x58] sm:$0xf]
      %v410 = vld [vmem:[%s2 + $0x5c] sm:$0xf]
      %v411 = vld [vmem:[%s2 + $0x60] sm:$0xf]
      %v412 = vld [vmem:[%s2 + $0x64] sm:$0xf]
      %v413 = vld [vmem:[%s2 + $0x68] sm:$0xf]
      %v414 = vld [vmem:[%s2 + $0x6c] sm:$0xf]
      %v415 = vld [vmem:[%s2 + $0x70] sm:$0xf]
      %v416 = vld [vmem:[%s2 + $0x74] sm:$0xf]
      %v417 = vld [vmem:[%s2 + $0x78] sm:$0xf]
      %v418 = vld [vmem:[%s2 + $0x7c] sm:$0xf]
      %v435 = vunpack.c.l.b16 %v403
      %v436 = vunpack.c.l.b16 %v404
      %v437 = vunpack.c.l.b16 %v405
      %v438 = vunpack.c.l.b16 %v406
      %v439 = vunpack.c.l.b16 %v407
      %v440 = vunpack.c.l.b16 %v408
      %v441 = vunpack.c.l.b16 %v409
      %v442 = vunpack.c.l.b16 %v410
      %v443 = vunpack.c.l.b16 %v411
      %v444 = vunpack.c.l.b16 %v412
      %v445 = vunpack.c.l.b16 %v413
      %v446 = vunpack.c.l.b16 %v414
      %v447 = vunpack.c.l.b16 %v415
      %v448 = vunpack.c.l.b16 %v416
      %v449 = vunpack.c.l.b16 %v417
      %v450 = vunpack.c.l.b16 %v418
      %v451 = vpack.c.b16 %v436, %v435
      %v452 = vpack.c.b16 %v438, %v437
      %v453 = vpack.c.b16 %v440, %v439
      %v454 = vpack.c.b16 %v442, %v441
      %v455 = vpack.c.b16 %v444, %v443
      %v456 = vpack.c.b16 %v446, %v445
      %v457 = vpack.c.b16 %v448, %v447
      %v458 = vpack.c.b16 %v450, %v449
      %467 = vmatpush.bf16.msra.mxu0 %v458
      %468 = vmatpush.bf16.msra.mxu0 %v457
      %469 = vmatpush.bf16.msra.mxu0 %v456
      %470 = vmatpush.bf16.msra.mxu0 %v455
      %471 = vmatpush.bf16.msra.mxu0 %v454
      %472 = vmatpush.bf16.msra.mxu0 %v453
      %473 = vmatpush.bf16.msra.mxu0 %v452
      %474 = vmatpush.bf16.msra.mxu0 %v451
      %475 = vmatmul.bf16.gmra.mxu0 %v401
      %v476 = vpop.f32.mrf.mxu0
      %v477 = vadd.f32 0.0, %v476
      %v478 = vpop.f32.mrf.mxu0
      %v479 = vadd.f32 0.0, %v478
      %480 = vmatmul.bf16.gmra.mxu0 %v402
      %v481 = vpop.f32.mrf.mxu0
      %v482 = vadd.f32 0.0, %v481
      %v483 = vpop.f32.mrf.mxu0
      %v484 = vadd.f32 0.0, %v483
      %485 = vdwg.mxu0
      %v502 = vunpack.c.l.b16 %v376
      %v503 = vunpack.c.l.b16 %v377
      %v504 = vunpack.c.l.b16 %v378
      %v505 = vunpack.c.l.b16 %v379
      %v506 = vunpack.c.l.b16 %v380
      %v507 = vunpack.c.l.b16 %v381
      %v508 = vunpack.c.l.b16 %v382
      %v509 = vunpack.c.l.b16 %v383
      %v510 = vunpack.c.l.b16 %v384
      %v511 = vunpack.c.l.b16 %v385
      %v512 = vunpack.c.l.b16 %v386
      %v513 = vunpack.c.l.b16 %v387
      %v514 = vunpack.c.l.b16 %v388
      %v515 = vunpack.c.l.b16 %v389
      %v516 = vunpack.c.l.b16 %v390
      %v517 = vunpack.c.l.b16 %v391
      %v518 = vpack.c.b16 %v503, %v502
      %v519 = vpack.c.b16 %v505, %v504
      %v520 = vpack.c.b16 %v507, %v506
      %v521 = vpack.c.b16 %v509, %v508
      %v522 = vpack.c.b16 %v511, %v510
      %v523 = vpack.c.b16 %v513, %v512
      %v524 = vpack.c.b16 %v515, %v514
      %v525 = vpack.c.b16 %v517, %v516
      %534 = vmatpush.bf16.msra.mxu0 %v525
      %535 = vmatpush.bf16.msra.mxu0 %v524
      %536 = vmatpush.bf16.msra.mxu0 %v523
      %537 = vmatpush.bf16.msra.mxu0 %v522
      %538 = vmatpush.bf16.msra.mxu0 %v521
      %539 = vmatpush.bf16.msra.mxu0 %v520
      %540 = vmatpush.bf16.msra.mxu0 %v519
      %541 = vmatpush.bf16.msra.mxu0 %v518
      %542 = vmatmul.bf16.gmra.mxu0 %v374
      %v543 = vpop.f32.mrf.mxu0
      %v544 = vadd.f32 %v477, %v543
      %v545 = vpop.f32.mrf.mxu0
      %v546 = vadd.f32 %v479, %v545
      %547 = vmatmul.bf16.gmra.mxu0 %v375
      %v548 = vpop.f32.mrf.mxu0
      %v549 = vadd.f32 %v482, %v548
      %v550 = vpop.f32.mrf.mxu0
      %v551 = vadd.f32 %v484, %v550
      %552 = vdwg.mxu0
      %v553 = vrot.slane %v358, 7
      %v554 = vrot.slane %v359, 7
      %v555 = vrot.slane %v360, 7
      %v556 = vrot.slane %v362, 7
      %vm557 = vcmp.lt.s32.totalorder %v368, 1
      %v558 = vsel %vm557, %v555, %v556
      %v559 = vsel %vm557, %v554, %v555
      %v560 = vsel %vm557, %v553, %v554
      %v561 = vsel %vm557, %v556, %v553
      %v562 = vpack.c.bf16 %v560, %v561
      %v563 = vpack.c.bf16 %v558, %v559
      %v564 = vld [vmem:[%s2 + $0x80] sm:$0xf]
      %v565 = vld [vmem:[%s2 + $0x84] sm:$0xf]
      %v566 = vld [vmem:[%s2 + $0x88] sm:$0xf]
      %v567 = vld [vmem:[%s2 + $0x8c] sm:$0xf]
      %v568 = vld [vmem:[%s2 + $0x90] sm:$0xf]
      %v569 = vld [vmem:[%s2 + $0x94] sm:$0xf]
      %v570 = vld [vmem:[%s2 + $0x98] sm:$0xf]
      %v571 = vld [vmem:[%s2 + $0x9c] sm:$0xf]
      %v572 = vld [vmem:[%s2 + $0xa0] sm:$0xf]
      %v573 = vld [vmem:[%s2 + $0xa4] sm:$0xf]
      %v574 = vld [vmem:[%s2 + $0xa8] sm:$0xf]
      %v575 = vld [vmem:[%s2 + $0xac] sm:$0xf]
      %v576 = vld [vmem:[%s2 + $0xb0] sm:$0xf]
      %v577 = vld [vmem:[%s2 + $0xb4] sm:$0xf]
      %v578 = vld [vmem:[%s2 + $0xb8] sm:$0xf]
      %v579 = vld [vmem:[%s2 + $0xbc] sm:$0xf]
      %v596 = vunpack.c.l.b16 %v564
      %v597 = vunpack.c.l.b16 %v565
      %v598 = vunpack.c.l.b16 %v566
      %v599 = vunpack.c.l.b16 %v567
      %v600 = vunpack.c.l.b16 %v568
      %v601 = vunpack.c.l.b16 %v569
      %v602 = vunpack.c.l.b16 %v570
      %v603 = vunpack.c.l.b16 %v571
      %v604 = vunpack.c.l.b16 %v572
      %v605 = vunpack.c.l.b16 %v573
      %v606 = vunpack.c.l.b16 %v574
      %v607 = vunpack.c.l.b16 %v575
      %v608 = vunpack.c.l.b16 %v576
      %v609 = vunpack.c.l.b16 %v577
      %v610 = vunpack.c.l.b16 %v578
      %v611 = vunpack.c.l.b16 %v579
      %v612 = vpack.c.b16 %v597, %v596
      %v613 = vpack.c.b16 %v599, %v598
      %v614 = vpack.c.b16 %v601, %v600
      %v615 = vpack.c.b16 %v603, %v602
      %v616 = vpack.c.b16 %v605, %v604
      %v617 = vpack.c.b16 %v607, %v606
      %v618 = vpack.c.b16 %v609, %v608
      %v619 = vpack.c.b16 %v611, %v610
      %628 = vmatpush.bf16.msra.mxu0 %v619
      %629 = vmatpush.bf16.msra.mxu0 %v618
      %630 = vmatpush.bf16.msra.mxu0 %v617
      %631 = vmatpush.bf16.msra.mxu0 %v616
      %632 = vmatpush.bf16.msra.mxu0 %v615
      %633 = vmatpush.bf16.msra.mxu0 %v614
      %634 = vmatpush.bf16.msra.mxu0 %v613
      %635 = vmatpush.bf16.msra.mxu0 %v612
      %636 = vmatmul.bf16.gmra.mxu0 %v562
      %v637 = vpop.f32.mrf.mxu0
      %v638 = vadd.f32 0.0, %v637
      %v639 = vpop.f32.mrf.mxu0
      %v640 = vadd.f32 0.0, %v639
      %641 = vmatmul.bf16.gmra.mxu0 %v563
      %v642 = vpop.f32.mrf.mxu0
      %v643 = vadd.f32 0.0, %v642
      %v644 = vpop.f32.mrf.mxu0
      %v645 = vadd.f32 0.0, %v644
      %646 = vdwg.mxu0
      %v647 = vadd.f32 %v544, %v638
      %v648 = vadd.f32 %v546, %v640
      %v649 = vadd.f32 %v549, %v643
      %v650 = vadd.f32 %v551, %v645
      %v651 = vpack.c.bf16 %v359, %v358
      %v652 = vpack.c.bf16 %v362, %v360
      %v653 = vld [vmem:[%s2 + $0xc0] sm:$0xf]
      %v654 = vld [vmem:[%s2 + $0xc4] sm:$0xf]
      %v655 = vld [vmem:[%s2 + $0xc8] sm:$0xf]
      %v656 = vld [vmem:[%s2 + $0xcc] sm:$0xf]
      %v657 = vld [vmem:[%s2 + $0xd0] sm:$0xf]
      %v658 = vld [vmem:[%s2 + $0xd4] sm:$0xf]
      %v659 = vld [vmem:[%s2 + $0xd8] sm:$0xf]
      %v660 = vld [vmem:[%s2 + $0xdc] sm:$0xf]
      %v661 = vld [vmem:[%s2 + $0xe0] sm:$0xf]
      %v662 = vld [vmem:[%s2 + $0xe4] sm:$0xf]
      %v663 = vld [vmem:[%s2 + $0xe8] sm:$0xf]
      %v664 = vld [vmem:[%s2 + $0xec] sm:$0xf]
      %v665 = vld [vmem:[%s2 + $0xf0] sm:$0xf]
      %v666 = vld [vmem:[%s2 + $0xf4] sm:$0xf]
      %v667 = vld [vmem:[%s2 + $0xf8] sm:$0xf]
      %v668 = vld [vmem:[%s2 + $0xfc] sm:$0xf]
      %v685 = vunpack.c.l.b16 %v653
      %v686 = vunpack.c.l.b16 %v654
      %v687 = vunpack.c.l.b16 %v655
      %v688 = vunpack.c.l.b16 %v656
      %v689 = vunpack.c.l.b16 %v657
      %v690 = vunpack.c.l.b16 %v658
      %v691 = vunpack.c.l.b16 %v659
      %v692 = vunpack.c.l.b16 %v660
      %v693 = vunpack.c.l.b16 %v661
      %v694 = vunpack.c.l.b16 %v662
      %v695 = vunpack.c.l.b16 %v663
      %v696 = vunpack.c.l.b16 %v664
      %v697 = vunpack.c.l.b16 %v665
      %v698 = vunpack.c.l.b16 %v666
      %v699 = vunpack.c.l.b16 %v667
      %v700 = vunpack.c.l.b16 %v668
      %v701 = vpack.c.b16 %v686, %v685
      %v702 = vpack.c.b16 %v688, %v687
      %v703 = vpack.c.b16 %v690, %v689
      %v704 = vpack.c.b16 %v692, %v691
      %v705 = vpack.c.b16 %v694, %v693
      %v706 = vpack.c.b16 %v696, %v695
      %v707 = vpack.c.b16 %v698, %v697
      %v708 = vpack.c.b16 %v700, %v699
      %717 = vmatpush.bf16.msra.mxu0 %v708
      %718 = vmatpush.bf16.msra.mxu0 %v707
      %719 = vmatpush.bf16.msra.mxu0 %v706
      %720 = vmatpush.bf16.msra.mxu0 %v705
      %721 = vmatpush.bf16.msra.mxu0 %v704
      %722 = vmatpush.bf16.msra.mxu0 %v703
      %723 = vmatpush.bf16.msra.mxu0 %v702
      %724 = vmatpush.bf16.msra.mxu0 %v701
      %725 = vmatmul.bf16.gmra.mxu0 %v651
      %v726 = vpop.f32.mrf.mxu0
      %v727 = vadd.f32 0.0, %v726
      %v728 = vpop.f32.mrf.mxu0
      %v729 = vadd.f32 0.0, %v728
      %730 = vmatmul.bf16.gmra.mxu0 %v652
      %v731 = vpop.f32.mrf.mxu0
      %v732 = vadd.f32 0.0, %v731
      %v733 = vpop.f32.mrf.mxu0
      %v734 = vadd.f32 0.0, %v733
      %735 = vdwg.mxu0
      %v736 = vadd.f32 %v647, %v727
      %v737 = vadd.f32 %v648, %v729
      %v738 = vadd.f32 %v649, %v732
      %v739 = vadd.f32 %v650, %v734
      %v740 = vrot.slane %v358, 1
      %v741 = vrot.slane %v359, 1
      %v742 = vrot.slane %v360, 1
      %v743 = vrot.slane %v362, 1
      %vm744 = vcmp.lt.s32.totalorder %v368, 7
      %v745 = vsel %vm744, %v742, %v743
      %v746 = vsel %vm744, %v741, %v742
      %v747 = vsel %vm744, %v740, %v741
      %v748 = vsel %vm744, %v743, %v740
      %v749 = vpack.c.bf16 %v746, %v747
      %v750 = vpack.c.bf16 %v748, %v745
      %v751 = vld [vmem:[%s2 + $0x100] sm:$0xf]
      %v752 = vld [vmem:[%s2 + $0x104] sm:$0xf]
      %v753 = vld [vmem:[%s2 + $0x108] sm:$0xf]
      %v754 = vld [vmem:[%s2 + $0x10c] sm:$0xf]
      %v755 = vld [vmem:[%s2 + $0x110] sm:$0xf]
      %v756 = vld [vmem:[%s2 + $0x114] sm:$0xf]
      %v757 = vld [vmem:[%s2 + $0x118] sm:$0xf]
      %v758 = vld [vmem:[%s2 + $0x11c] sm:$0xf]
      %v759 = vld [vmem:[%s2 + $0x120] sm:$0xf]
      %v760 = vld [vmem:[%s2 + $0x124] sm:$0xf]
      %v761 = vld [vmem:[%s2 + $0x128] sm:$0xf]
      %v762 = vld [vmem:[%s2 + $0x12c] sm:$0xf]
      %v763 = vld [vmem:[%s2 + $0x130] sm:$0xf]
      %v764 = vld [vmem:[%s2 + $0x134] sm:$0xf]
      %v765 = vld [vmem:[%s2 + $0x138] sm:$0xf]
      %v766 = vld [vmem:[%s2 + $0x13c] sm:$0xf]
      %v783 = vunpack.c.l.b16 %v751
      %v784 = vunpack.c.l.b16 %v752
      %v785 = vunpack.c.l.b16 %v753
      %v786 = vunpack.c.l.b16 %v754
      %v787 = vunpack.c.l.b16 %v755
      %v788 = vunpack.c.l.b16 %v756
      %v789 = vunpack.c.l.b16 %v757
      %v790 = vunpack.c.l.b16 %v758
      %v791 = vunpack.c.l.b16 %v759
      %v792 = vunpack.c.l.b16 %v760
      %v793 = vunpack.c.l.b16 %v761
      %v794 = vunpack.c.l.b16 %v762
      %v795 = vunpack.c.l.b16 %v763
      %v796 = vunpack.c.l.b16 %v764
      %v797 = vunpack.c.l.b16 %v765
      %v798 = vunpack.c.l.b16 %v766
      %v799 = vpack.c.b16 %v784, %v783
      %v800 = vpack.c.b16 %v786, %v785
      %v801 = vpack.c.b16 %v788, %v787
      %v802 = vpack.c.b16 %v790, %v789
      %v803 = vpack.c.b16 %v792, %v791
      %v804 = vpack.c.b16 %v794, %v793
      %v805 = vpack.c.b16 %v796, %v795
      %v806 = vpack.c.b16 %v798, %v797
      %815 = vmatpush.bf16.msra.mxu0 %v806
      %816 = vmatpush.bf16.msra.mxu0 %v805
      %817 = vmatpush.bf16.msra.mxu0 %v804
      %818 = vmatpush.bf16.msra.mxu0 %v803
      %819 = vmatpush.bf16.msra.mxu0 %v802
      %820 = vmatpush.bf16.msra.mxu0 %v801
      %821 = vmatpush.bf16.msra.mxu0 %v800
      %822 = vmatpush.bf16.msra.mxu0 %v799
      %823 = vmatmul.bf16.gmra.mxu0 %v749
      %v824 = vpop.f32.mrf.mxu0
      %v825 = vadd.f32 0.0, %v824
      %v826 = vpop.f32.mrf.mxu0
      %v827 = vadd.f32 0.0, %v826
      %828 = vmatmul.bf16.gmra.mxu0 %v750
      %v829 = vpop.f32.mrf.mxu0
      %v830 = vadd.f32 0.0, %v829
      %v831 = vpop.f32.mrf.mxu0
      %v832 = vadd.f32 0.0, %v831
      %833 = vdwg.mxu0
      %v834 = vadd.f32 %v736, %v825
      %v835 = vadd.f32 %v737, %v827
      %v836 = vadd.f32 %v738, %v830
      %v837 = vadd.f32 %v739, %v832
      %v838 = vrot.slane %v358, 2
      %v839 = vrot.slane %v359, 2
      %v840 = vrot.slane %v360, 2
      %v841 = vrot.slane %v362, 2
      %vm842 = vcmp.lt.s32.totalorder %v368, 6
      %v843 = vsel %vm842, %v840, %v841
      %v844 = vsel %vm842, %v839, %v840
      %v845 = vsel %vm842, %v838, %v839
      %v846 = vsel %vm842, %v841, %v838
      %v847 = vpack.c.bf16 %v844, %v845
      %v848 = vpack.c.bf16 %v846, %v843
      %v849 = vld [vmem:[%s2 + $0x140] sm:$0xf]
      %v850 = vld [vmem:[%s2 + $0x144] sm:$0xf]
      %v851 = vld [vmem:[%s2 + $0x148] sm:$0xf]
      %v852 = vld [vmem:[%s2 + $0x14c] sm:$0xf]
      %v853 = vld [vmem:[%s2 + $0x150] sm:$0xf]
      %v854 = vld [vmem:[%s2 + $0x154] sm:$0xf]
      %v855 = vld [vmem:[%s2 + $0x158] sm:$0xf]
      %v856 = vld [vmem:[%s2 + $0x15c] sm:$0xf]
      %v857 = vld [vmem:[%s2 + $0x160] sm:$0xf]
      %v858 = vld [vmem:[%s2 + $0x164] sm:$0xf]
      %v859 = vld [vmem:[%s2 + $0x168] sm:$0xf]
      %v860 = vld [vmem:[%s2 + $0x16c] sm:$0xf]
      %v861 = vld [vmem:[%s2 + $0x170] sm:$0xf]
      %v862 = vld [vmem:[%s2 + $0x174] sm:$0xf]
      %v863 = vld [vmem:[%s2 + $0x178] sm:$0xf]
      %v864 = vld [vmem:[%s2 + $0x17c] sm:$0xf]
      %v881 = vunpack.c.l.b16 %v849
      %v882 = vunpack.c.l.b16 %v850
      %v883 = vunpack.c.l.b16 %v851
      %v884 = vunpack.c.l.b16 %v852
      %v885 = vunpack.c.l.b16 %v853
      %v886 = vunpack.c.l.b16 %v854
      %v887 = vunpack.c.l.b16 %v855
      %v888 = vunpack.c.l.b16 %v856
      %v889 = vunpack.c.l.b16 %v857
      %v890 = vunpack.c.l.b16 %v858
      %v891 = vunpack.c.l.b16 %v859
      %v892 = vunpack.c.l.b16 %v860
      %v893 = vunpack.c.l.b16 %v861
      %v894 = vunpack.c.l.b16 %v862
      %v895 = vunpack.c.l.b16 %v863
      %v896 = vunpack.c.l.b16 %v864
      %v897 = vpack.c.b16 %v882, %v881
      %v898 = vpack.c.b16 %v884, %v883
      %v899 = vpack.c.b16 %v886, %v885
      %v900 = vpack.c.b16 %v888, %v887
      %v901 = vpack.c.b16 %v890, %v889
      %v902 = vpack.c.b16 %v892, %v891
      %v903 = vpack.c.b16 %v894, %v893
      %v904 = vpack.c.b16 %v896, %v895
      %913 = vmatpush.bf16.msra.mxu0 %v904
      %914 = vmatpush.bf16.msra.mxu0 %v903
      %915 = vmatpush.bf16.msra.mxu0 %v902
      %916 = vmatpush.bf16.msra.mxu0 %v901
      %917 = vmatpush.bf16.msra.mxu0 %v900
      %918 = vmatpush.bf16.msra.mxu0 %v899
      %919 = vmatpush.bf16.msra.mxu0 %v898
      %920 = vmatpush.bf16.msra.mxu0 %v897
      %921 = vmatmul.bf16.gmra.mxu0 %v847
      %v922 = vpop.f32.mrf.mxu0
      %v923 = vadd.f32 0.0, %v922
      %v924 = vpop.f32.mrf.mxu0
      %v925 = vadd.f32 0.0, %v924
      %926 = vmatmul.bf16.gmra.mxu0 %v848
      %v927 = vpop.f32.mrf.mxu0
      %v928 = vadd.f32 0.0, %v927
      %v929 = vpop.f32.mrf.mxu0
      %v930 = vadd.f32 0.0, %v929
      %931 = vdwg.mxu0
      %v932 = vadd.f32 %v834, %v923
      %v933 = vadd.f32 %v835, %v925
      %v934 = vadd.f32 %v836, %v928
      %v935 = vadd.f32 %v837, %v930
      %v936 = vrot.slane %v358, 3
      %v937 = vrot.slane %v359, 3
      %v938 = vrot.slane %v360, 3
      %v939 = vrot.slane %v362, 3
      %vm940 = vcmp.lt.s32.totalorder %v368, 5
      %v941 = vsel %vm940, %v938, %v939
      %v942 = vsel %vm940, %v937, %v938
      %v943 = vsel %vm940, %v936, %v937
      %v944 = vsel %vm940, %v939, %v936
      %v945 = vpack.c.bf16 %v942, %v943
      %v946 = vpack.c.bf16 %v944, %v941
      %v947 = vld [vmem:[%s2 + $0x180] sm:$0xf]
      %v948 = vld [vmem:[%s2 + $0x184] sm:$0xf]
      %v949 = vld [vmem:[%s2 + $0x188] sm:$0xf]
      %v950 = vld [vmem:[%s2 + $0x18c] sm:$0xf]
      %v951 = vld [vmem:[%s2 + $0x190] sm:$0xf]
      %v952 = vld [vmem:[%s2 + $0x194] sm:$0xf]
      %v953 = vld [vmem:[%s2 + $0x198] sm:$0xf]
      %v954 = vld [vmem:[%s2 + $0x19c] sm:$0xf]
      %v955 = vld [vmem:[%s2 + $0x1a0] sm:$0xf]
      %v956 = vld [vmem:[%s2 + $0x1a4] sm:$0xf]
      %v957 = vld [vmem:[%s2 + $0x1a8] sm:$0xf]
      %v958 = vld [vmem:[%s2 + $0x1ac] sm:$0xf]
      %v959 = vld [vmem:[%s2 + $0x1b0] sm:$0xf]
      %v960 = vld [vmem:[%s2 + $0x1b4] sm:$0xf]
      %v961 = vld [vmem:[%s2 + $0x1b8] sm:$0xf]
      %v962 = vld [vmem:[%s2 + $0x1bc] sm:$0xf]
      %v979 = vunpack.c.l.b16 %v947
      %v980 = vunpack.c.l.b16 %v948
      %v981 = vunpack.c.l.b16 %v949
      %v982 = vunpack.c.l.b16 %v950
      %v983 = vunpack.c.l.b16 %v951
      %v984 = vunpack.c.l.b16 %v952
      %v985 = vunpack.c.l.b16 %v953
      %v986 = vunpack.c.l.b16 %v954
      %v987 = vunpack.c.l.b16 %v955
      %v988 = vunpack.c.l.b16 %v956
      %v989 = vunpack.c.l.b16 %v957
      %v990 = vunpack.c.l.b16 %v958
      %v991 = vunpack.c.l.b16 %v959
      %v992 = vunpack.c.l.b16 %v960
      %v993 = vunpack.c.l.b16 %v961
      %v994 = vunpack.c.l.b16 %v962
      %v995 = vpack.c.b16 %v980, %v979
      %v996 = vpack.c.b16 %v982, %v981
      %v997 = vpack.c.b16 %v984, %v983
      %v998 = vpack.c.b16 %v986, %v985
      %v999 = vpack.c.b16 %v988, %v987
      %v1000 = vpack.c.b16 %v990, %v989
      %v1001 = vpack.c.b16 %v992, %v991
      %v1002 = vpack.c.b16 %v994, %v993
      %1011 = vmatpush.bf16.msra.mxu0 %v1002
      %1012 = vmatpush.bf16.msra.mxu0 %v1001
      %1013 = vmatpush.bf16.msra.mxu0 %v1000
      %1014 = vmatpush.bf16.msra.mxu0 %v999
      %1015 = vmatpush.bf16.msra.mxu0 %v998
      %1016 = vmatpush.bf16.msra.mxu0 %v997
      %1017 = vmatpush.bf16.msra.mxu0 %v996
      %1018 = vmatpush.bf16.msra.mxu0 %v995
      %1019 = vmatmul.bf16.gmra.mxu0 %v945
      %v1020 = vpop.f32.mrf.mxu0
      %v1021 = vadd.f32 0.0, %v1020
      %v1022 = vpop.f32.mrf.mxu0
      %v1023 = vadd.f32 0.0, %v1022
      %1024 = vmatmul.bf16.gmra.mxu0 %v946
      %v1025 = vpop.f32.mrf.mxu0
      %v1026 = vadd.f32 0.0, %v1025
      %v1027 = vpop.f32.mrf.mxu0
      %v1028 = vadd.f32 0.0, %v1027
      %1029 = vdwg.mxu0
      %v1030 = vadd.f32 %v932, %v1021
      %v1031 = vadd.f32 %v933, %v1023
      %v1032 = vadd.f32 %v934, %v1026
      %v1033 = vadd.f32 %v935, %v1028
      %v1034 = vperm.slane %v260, 0
      %v1035 = vadd.f32 %v1030, %v1034
      %v1036 = vadd.f32 %v1031, %v1034
      %v1037 = vadd.f32 %v1032, %v1034
      %v1038 = vadd.f32 %v1033, %v1034
      %v1039 = vadd.f32 %v1035, %v305
      %v1040 = vadd.f32 %v1036, %v308
      %v1041 = vadd.f32 %v1037, %v311
      %v1042 = vadd.f32 %v1038, %v314
      %v1043 = vadd.f32 %v1039, %v261
      %v1044 = vadd.f32 %v1040, %v262
      %v1045 = vadd.f32 %v1041, %v263
      %v1046 = vadd.f32 %v1042, %v264
      %v1047 = vld [vmem:[%s3] sm:$0xff]
      %v1048 = vld [vmem:[%s3 + $0x8] sm:$0xf]
      %v1049 = vld [vmem:[%s3 + $0x18] sm:$0xff]
      %v1050 = vld [vmem:[%s3 + $0x20] sm:$0xf]
      %v1051 = vld [vmem:[%s3 + $0x30] sm:$0xff]
      %v1052 = vld [vmem:[%s3 + $0x38] sm:$0xf]
      %v1053 = vld [vmem:[%s3 + $0x48] sm:$0xff]
      %v1054 = vld [vmem:[%s3 + $0x50] sm:$0xf]
      %v1055 = vld [vmem:[%s3 + $0x60] sm:$0xff]
      %v1056 = vld [vmem:[%s3 + $0x68] sm:$0xf]
      %v1057 = vld [vmem:[%s3 + $0x78] sm:$0xff]
      %v1058 = vld [vmem:[%s3 + $0x80] sm:$0xf]
      %v1059 = vld [vmem:[%s3 + $0x90] sm:$0xff]
      %v1060 = vld [vmem:[%s3 + $0x98] sm:$0xf]
      %v1061 = vld [vmem:[%s3 + $0xa8] sm:$0xff]
      %v1062 = vld [vmem:[%s3 + $0xb0] sm:$0xf]
      %v1063 = vld [vmem:[%s3 + $0xc0] sm:$0xff]
      %v1064 = vld [vmem:[%s3 + $0xc8] sm:$0xf]
      %v1065 = vld [vmem:[%s3 + $0xd8] sm:$0xff]
      %v1066 = vld [vmem:[%s3 + $0xe0] sm:$0xf]
      %v1067 = vld [vmem:[%s3 + $0xf0] sm:$0xff]
      %v1068 = vld [vmem:[%s3 + $0xf8] sm:$0xf]
      %v1069 = vld [vmem:[%s3 + $0x108] sm:$0xff]
      %v1070 = vld [vmem:[%s3 + $0x110] sm:$0xf]
      %v1071 = vld [vmem:[%s3 + $0x120] sm:$0xff]
      %v1072 = vld [vmem:[%s3 + $0x128] sm:$0xf]
      %v1073 = vld [vmem:[%s3 + $0x138] sm:$0xff]
      %v1074 = vld [vmem:[%s3 + $0x140] sm:$0xf]
      %v1075 = vld [vmem:[%s3 + $0x150] sm:$0xff]
      %v1076 = vld [vmem:[%s3 + $0x158] sm:$0xf]
      %v1077 = vld [vmem:[%s3 + $0x168] sm:$0xff]
      %v1078 = vld [vmem:[%s3 + $0x170] sm:$0xf]
      %v1079 = vld [vmem:[%s3 + $0xc] sm:$0xf]
      %v1080 = vld [vmem:[%s3 + $0x24] sm:$0xf]
      %v1081 = vld [vmem:[%s3 + $0x3c] sm:$0xf]
      %v1082 = vld [vmem:[%s3 + $0x54] sm:$0xf]
      %v1083 = vld [vmem:[%s3 + $0x6c] sm:$0xf]
      %v1084 = vld [vmem:[%s3 + $0x84] sm:$0xf]
      %v1085 = vld [vmem:[%s3 + $0x9c] sm:$0xf]
      %v1086 = vld [vmem:[%s3 + $0xb4] sm:$0xf]
      %v1087 = vld [vmem:[%s3 + $0xcc] sm:$0xf]
      %v1088 = vld [vmem:[%s3 + $0xe4] sm:$0xf]
      %v1089 = vld [vmem:[%s3 + $0xfc] sm:$0xf]
      %v1090 = vld [vmem:[%s3 + $0x114] sm:$0xf]
      %v1091 = vld [vmem:[%s3 + $0x12c] sm:$0xf]
      %v1092 = vld [vmem:[%s3 + $0x144] sm:$0xf]
      %v1093 = vld [vmem:[%s3 + $0x15c] sm:$0xf]
      %v1094 = vld [vmem:[%s3 + $0x174] sm:$0xf]
      %v1095 = vld [vmem:[%s3 + $0x10] sm:$0xff]
      %v1096 = vld [vmem:[%s3 + $0x28] sm:$0xff]
      %v1097 = vld [vmem:[%s3 + $0x40] sm:$0xff]
      %v1098 = vld [vmem:[%s3 + $0x58] sm:$0xff]
      %v1099 = vld [vmem:[%s3 + $0x70] sm:$0xff]
      %v1100 = vld [vmem:[%s3 + $0x88] sm:$0xff]
      %v1101 = vld [vmem:[%s3 + $0xa0] sm:$0xff]
      %v1102 = vld [vmem:[%s3 + $0xb8] sm:$0xff]
      %v1103 = vld [vmem:[%s3 + $0xd0] sm:$0xff]
      %v1104 = vld [vmem:[%s3 + $0xe8] sm:$0xff]
      %v1105 = vld [vmem:[%s3 + $0x100] sm:$0xff]
      %v1106 = vld [vmem:[%s3 + $0x118] sm:$0xff]
      %v1107 = vld [vmem:[%s3 + $0x130] sm:$0xff]
      %v1108 = vld [vmem:[%s3 + $0x148] sm:$0xff]
      %v1109 = vld [vmem:[%s3 + $0x160] sm:$0xff]
      %v1110 = vld [vmem:[%s3 + $0x178] sm:$0xff]
      %v1111 = vld [vmem:[%s4] sm:$0xf]
      %v1112 = vld [vmem:[%s4 + $0x4] sm:$0xf]
      %v1113 = vld [vmem:[%s4 + $0x8] sm:$0xf]
      %v1114 = vld [vmem:[%s4 + $0xc] sm:$0xf]
      %v1115 = vld [vmem:[%s4 + $0x10] sm:$0xf]
      %v1116 = vld [vmem:[%s4 + $0x14] sm:$0xf]
      %v1117 = vld [vmem:[%s4 + $0x18] sm:$0xf]
      %v1118 = vld [vmem:[%s4 + $0x1c] sm:$0xf]
      %v1119 = vld [vmem:[%s4 + $0x20] sm:$0xf]
      %v1120 = vld [vmem:[%s4 + $0x24] sm:$0xf]
      %v1121 = vld [vmem:[%s4 + $0x28] sm:$0xf]
      %v1122 = vld [vmem:[%s4 + $0x2c] sm:$0xf]
      %v1123 = vld [vmem:[%s4 + $0x30] sm:$0xf]
      %v1124 = vld [vmem:[%s4 + $0x34] sm:$0xf]
      %v1125 = vld [vmem:[%s4 + $0x38] sm:$0xf]
      %v1126 = vld [vmem:[%s4 + $0x3c] sm:$0xf]
      %v1127 = vld [vmem:[%s4 + $0x40] sm:$0xf]
      %v1128 = vld [vmem:[%s4 + $0x44] sm:$0xf]
      %v1129 = vld [vmem:[%s4 + $0x48] sm:$0xf]
      %v1130 = vld [vmem:[%s4 + $0x4c] sm:$0xf]
      %v1131 = vld [vmem:[%s4 + $0x50] sm:$0xf]
      %v1132 = vld [vmem:[%s4 + $0x54] sm:$0xf]
      %v1133 = vld [vmem:[%s4 + $0x58] sm:$0xf]
      %v1134 = vld [vmem:[%s4 + $0x5c] sm:$0xf]
      %v1135 = vld [vmem:[%s4 + $0x60] sm:$0xf]
      %v1136 = vld [vmem:[%s4 + $0x64] sm:$0xf]
      %v1137 = vld [vmem:[%s4 + $0x68] sm:$0xf]
      %v1138 = vld [vmem:[%s4 + $0x6c] sm:$0xf]
      %v1139 = vld [vmem:[%s4 + $0x70] sm:$0xf]
      %v1140 = vld [vmem:[%s4 + $0x74] sm:$0xf]
      %v1141 = vld [vmem:[%s4 + $0x78] sm:$0xf]
      %v1142 = vld [vmem:[%s4 + $0x7c] sm:$0xf]
      %v1143 = vld [vmem:[%s5] ss:$8 sm:$0x7]
      %v1144 = vld [vmem:[%s5 + $0x1] ss:$0 sm:$0xff]
      %v1145 = vld [vmem:[%s5 + $0x9] ss:$0 sm:$0xff]
      %v1146 = vld [vmem:[%s5 + $0x11] ss:$0 sm:$0xff]
      %s1147 = scalar_lea.vmem %s5, 2
      %v1148 = vld [vmem:[%s1147] ss:$8 sm:$0x3]
      %v1149 = vld [vmem:[%s5 + $0x3] ss:$0 sm:$0xff]
      %v1150 = vld [vmem:[%s5 + $0xb] ss:$0 sm:$0xff]
      %v1151 = vld [vmem:[%s5 + $0x13] ss:$0 sm:$0xff]
      %v1152 = vpack.c.bf16 %v1044, %v1043
      %v1153 = vpack.c.bf16 %v1046, %v1045
      %v1155 = vperm.slane %v1143, 0
      %v1156 = vperm.slane %v1143, 1
      %v1157 = vperm.slane %v1143, 2
      %v1193 = vunpack.c.l.b16 %v1047
      %v1194 = vunpack.c.h.b16 %v1047
      %v1195 = vunpack.c.l.b16 %v1048
      %v1196 = vunpack.c.l.b16 %v1049
      %v1197 = vunpack.c.h.b16 %v1049
      %v1198 = vunpack.c.l.b16 %v1050
      %v1199 = vunpack.c.l.b16 %v1051
      %v1200 = vunpack.c.h.b16 %v1051
      %v1201 = vunpack.c.l.b16 %v1052
      %v1202 = vunpack.c.l.b16 %v1053
      %v1203 = vunpack.c.h.b16 %v1053
      %v1204 = vunpack.c.l.b16 %v1054
      %v1205 = vunpack.c.l.b16 %v1055
      %v1206 = vunpack.c.h.b16 %v1055
      %v1207 = vunpack.c.l.b16 %v1056
      %v1208 = vunpack.c.l.b16 %v1057
      %v1209 = vunpack.c.h.b16 %v1057
      %v1210 = vunpack.c.l.b16 %v1058
      %v1211 = vunpack.c.l.b16 %v1059
      %v1212 = vunpack.c.h.b16 %v1059
      %v1213 = vunpack.c.l.b16 %v1060
      %v1214 = vunpack.c.l.b16 %v1061
      %v1215 = vunpack.c.h.b16 %v1061
      %v1216 = vunpack.c.l.b16 %v1062
      %v1217 = vunpack.c.l.b16 %v1063
      %v1218 = vunpack.c.h.b16 %v1063
      %v1219 = vunpack.c.l.b16 %v1064
      %v1220 = vunpack.c.l.b16 %v1065
      %v1221 = vunpack.c.h.b16 %v1065
      %v1222 = vunpack.c.l.b16 %v1066
      %v1223 = vunpack.c.l.b16 %v1067
      %v1224 = vunpack.c.h.b16 %v1067
      %v1225 = vunpack.c.l.b16 %v1068
      %v1226 = vunpack.c.l.b16 %v1069
      %v1227 = vunpack.c.h.b16 %v1069
      %v1228 = vunpack.c.l.b16 %v1070
      %v1229 = vunpack.c.l.b16 %v1071
      %v1230 = vunpack.c.h.b16 %v1071
      %v1231 = vunpack.c.l.b16 %v1072
      %v1232 = vunpack.c.l.b16 %v1073
      %v1233 = vunpack.c.h.b16 %v1073
      %v1234 = vunpack.c.l.b16 %v1074
      %v1235 = vunpack.c.l.b16 %v1075
      %v1236 = vunpack.c.h.b16 %v1075
      %v1237 = vunpack.c.l.b16 %v1076
      %v1238 = vunpack.c.l.b16 %v1077
      %v1239 = vunpack.c.h.b16 %v1077
      %v1240 = vunpack.c.l.b16 %v1078
      %v1241 = vpack.c.b16 %v1196, %v1193
      %v1242 = vpack.c.b16 %v1197, %v1194
      %v1243 = vpack.c.b16 %v1198, %v1195
      %v1244 = vpack.c.b16 %v1202, %v1199
      %v1245 = vpack.c.b16 %v1203, %v1200
      %v1246 = vpack.c.b16 %v1204, %v1201
      %v1247 = vpack.c.b16 %v1208, %v1205
      %v1248 = vpack.c.b16 %v1209, %v1206
      %v1249 = vpack.c.b16 %v1210, %v1207
      %v1250 = vpack.c.b16 %v1214, %v1211
      %v1251 = vpack.c.b16 %v1215, %v1212
      %v1252 = vpack.c.b16 %v1216, %v1213
      %v1253 = vpack.c.b16 %v1220, %v1217
      %v1254 = vpack.c.b16 %v1221, %v1218
      %v1255 = vpack.c.b16 %v1222, %v1219
      %v1256 = vpack.c.b16 %v1226, %v1223
      %v1257 = vpack.c.b16 %v1227, %v1224
      %v1258 = vpack.c.b16 %v1228, %v1225
      %v1259 = vpack.c.b16 %v1232, %v1229
      %v1260 = vpack.c.b16 %v1233, %v1230
      %v1261 = vpack.c.b16 %v1234, %v1231
      %v1262 = vpack.c.b16 %v1238, %v1235
      %v1263 = vpack.c.b16 %v1239, %v1236
      %v1264 = vpack.c.b16 %v1240, %v1237
      %1289 = vmatpush.bf16.msra.mxu0 %v1262
      %1290 = vmatpush.bf16.msra.mxu0 %v1259
      %1291 = vmatpush.bf16.msra.mxu0 %v1256
      %1292 = vmatpush.bf16.msra.mxu0 %v1253
      %1293 = vmatpush.bf16.msra.mxu0 %v1250
      %1294 = vmatpush.bf16.msra.mxu0 %v1247
      %1295 = vmatpush.bf16.msra.mxu0 %v1244
      %1296 = vmatpush.bf16.msra.mxu0 %v1241
      %1297 = vmatmul.bf16.gmra.mxu0 %v1152
      %v1298 = vpop.f32.mrf.mxu0
      %v1299 = vadd.f32 %v1155, %v1298
      %v1300 = vpop.f32.mrf.mxu0
      %v1301 = vadd.f32 %v1155, %v1300
      %1302 = vmatmul.bf16.gmra.mxu0 %v1153
      %v1303 = vpop.f32.mrf.mxu0
      %v1304 = vadd.f32 %v1155, %v1303
      %v1305 = vpop.f32.mrf.mxu0
      %v1306 = vadd.f32 %v1155, %v1305
      %1307 = vdwg.mxu0
      %1308 = vmatpush.bf16.msra.mxu0 %v1263
      %1309 = vmatpush.bf16.msra.mxu0 %v1260
      %1310 = vmatpush.bf16.msra.mxu0 %v1257
      %1311 = vmatpush.bf16.msra.mxu0 %v1254
      %1312 = vmatpush.bf16.msra.mxu0 %v1251
      %1313 = vmatpush.bf16.msra.mxu0 %v1248
      %1314 = vmatpush.bf16.msra.mxu0 %v1245
      %1315 = vmatpush.bf16.msra.mxu0 %v1242
      %1316 = vmatmul.bf16.gmra.mxu0 %v1152
      %v1317 = vpop.f32.mrf.mxu0
      %v1318 = vadd.f32 %v1156, %v1317
      %v1319 = vpop.f32.mrf.mxu0
      %v1320 = vadd.f32 %v1156, %v1319
      %1321 = vmatmul.bf16.gmra.mxu0 %v1153
      %v1322 = vpop.f32.mrf.mxu0
      %v1323 = vadd.f32 %v1156, %v1322
      %v1324 = vpop.f32.mrf.mxu0
      %v1325 = vadd.f32 %v1156, %v1324
      %1326 = vdwg.mxu0
      %1327 = vmatpush.bf16.msra.mxu0 %v1264
      %1328 = vmatpush.bf16.msra.mxu0 %v1261
      %1329 = vmatpush.bf16.msra.mxu0 %v1258
      %1330 = vmatpush.bf16.msra.mxu0 %v1255
      %1331 = vmatpush.bf16.msra.mxu0 %v1252
      %1332 = vmatpush.bf16.msra.mxu0 %v1249
      %1333 = vmatpush.bf16.msra.mxu0 %v1246
      %1334 = vmatpush.bf16.msra.mxu0 %v1243
      %1335 = vmatmul.bf16.gmra.mxu0 %v1152
      %v1336 = vpop.f32.mrf.mxu0
      %v1337 = vadd.f32 %v1157, %v1336
      %v1338 = vpop.f32.mrf.mxu0
      %v1339 = vadd.f32 %v1157, %v1338
      %1340 = vmatmul.bf16.gmra.mxu0 %v1153
      %v1341 = vpop.f32.mrf.mxu0
      %v1342 = vadd.f32 %v1157, %v1341
      %v1343 = vpop.f32.mrf.mxu0
      %v1344 = vadd.f32 %v1157, %v1343
      %1345 = vdwg.mxu0
      %v1346 = vpack.c.bf16 %v1299, %v1299
      %v1347 = vpack.c.bf16 %v1301, %v1301
      %v1348 = vpack.c.bf16 %v1304, %v1304
      %v1349 = vpack.c.bf16 %v1306, %v1306
      %v1350 = vpack.c.bf16 %v1318, %v1318
      %v1351 = vpack.c.bf16 %v1320, %v1320
      %v1352 = vpack.c.bf16 %v1323, %v1323
      %v1353 = vpack.c.bf16 %v1325, %v1325
      %v1354 = vpack.c.bf16 %v1337, %v1337
      %v1355 = vpack.c.bf16 %v1339, %v1339
      %v1356 = vpack.c.bf16 %v1342, %v1342
      %v1357 = vpack.c.bf16 %v1344, %v1344
      %v1362 = vunpack.c.l.b16 %v1346
      %v1363 = vunpack.c.l.b16 %v1347
      %v1364 = vunpack.c.l.b16 %v1348
      %v1365 = vunpack.c.l.b16 %v1349
      %v1366 = vpack.c.b16 %v1363, %v1362
      %v1367 = vpack.c.b16 %v1365, %v1364
      %v1372 = vunpack.c.l.b16 %v1350
      %v1373 = vunpack.c.l.b16 %v1351
      %v1374 = vunpack.c.l.b16 %v1352
      %v1375 = vunpack.c.l.b16 %v1353
      %v1376 = vpack.c.b16 %v1373, %v1372
      %v1377 = vpack.c.b16 %v1375, %v1374
      %vm1378 = vcmask 130048
      %v1380 = vsel %vm1378, %v1366, 0
      %v1383 = vsel %vm1378, %v1367, 0
      %v1386 = vsel %vm1378, %v1376, 0
      %v1389 = vsel %vm1378, %v1377, 0
      %1391 = vmatpush.bf16.xpose.msra.mxu0 0
      %1392 = vmatpush.bf16.xpose.msra.mxu0 0
      %1393 = vmatpush.bf16.xpose.msra.mxu0 0
      %1394 = vmatpush.bf16.xpose.msra.mxu0 0
      %1395 = vmatpush.bf16.xpose.msra.mxu0 0
      %1396 = vmatpush.bf16.xpose.msra.mxu0 0
      %1397 = vmatpush.bf16.xpose.msra.mxu0 %v1389
      %1398 = vmatpush.bf16.xpose.msra.mxu0 %v1386
      %1399 = vmatmul.bf16.gmra.mxu0 %v1380
      %v1400 = vpop.f32.mrf.mxu0
      %v1401 = vadd.f32 0.0, %v1400
      %v1402 = vpop.f32.mrf.mxu0
      %v1403 = vadd.f32 0.0, %v1402
      %1404 = vmatmul.bf16.gmra.mxu0 %v1383
      %v1405 = vpop.f32.mrf.mxu0
      %v1406 = vadd.f32 0.0, %v1405
      %v1407 = vpop.f32.mrf.mxu0
      %v1408 = vadd.f32 0.0, %v1407
      %1409 = vdwg.mxu0
      %v1410 = vsel %vm270, %v1401, -inf
      %1411 = vmax.xlane.f32.xlu0 %v1410
      %v1412 = vpop.xlane.xlu0 %1411
      %v1413 = vsel %vm270, %v1403, -inf
      %1414 = vmax.xlane.f32.xlu0 %v1413
      %v1415 = vpop.xlane.xlu0 %1414
      %v1416 = vsel %vm270, %v1406, -inf
      %1417 = vmax.xlane.f32.xlu0 %v1416
      %v1418 = vpop.xlane.xlu0 %1417
      %vm1419 = vcmask 224256
      %v1420 = vsel %vm1419, %v1408, -inf
      %1421 = vmax.xlane.f32.xlu0 %v1420
      %v1422 = vpop.xlane.xlu0 %1421
      %v1423 = vsub.f32 %v1401, %v1412
      %v1424 = vsub.f32 %v1403, %v1415
      %v1425 = vsub.f32 %v1406, %v1418
      %v1426 = vsub.f32 %v1408, %v1422
      %v1427 = vmul.f32 %v1423, 1.442695
      %v1428 = vpow.pop %v1427
      %v1429 = vmul.f32 %v1424, 1.442695
      %v1430 = vpow.pop %v1429
      %v1431 = vmul.f32 %v1425, 1.442695
      %v1432 = vpow.pop %v1431
      %v1433 = vmul.f32 %v1426, 1.442695
      %v1434 = vpow.pop %v1433
      %v1435 = vsel %vm270, %v1428, 0.0
      %1436 = vadd.xlane.f32.xlu0 %v1435
      %v1437 = vpop.xlane.xlu0 %1436
      %v1438 = vsel %vm270, %v1430, 0.0
      %1439 = vadd.xlane.f32.xlu0 %v1438
      %v1440 = vpop.xlane.xlu0 %1439
      %v1441 = vsel %vm270, %v1432, 0.0
      %1442 = vadd.xlane.f32.xlu0 %v1441
      %v1443 = vpop.xlane.xlu0 %1442
      %v1444 = vsel %vm1419, %v1434, 0.0
      %1445 = vadd.xlane.f32.xlu0 %v1444
      %v1446 = vpop.xlane.xlu0 %1445
      %v1447 = vrcp.pop %v1437
      %v1448 = vrcp.pop %v1440
      %v1449 = vrcp.pop %v1443
      %v1450 = vrcp.pop %v1446
      %v1451 = vmul.f32 %v1428, %v1447
      %v1452 = vmul.f32 %v1430, %v1448
      %v1453 = vmul.f32 %v1432, %v1449
      %v1454 = vmul.f32 %v1434, %v1450
      %v1455 = vpack.c.bf16 %v1452, %v1451
      %v1456 = vpack.c.bf16 %v1454, %v1453
      %v1461 = vunpack.c.l.b16 %v1354
      %v1462 = vunpack.c.l.b16 %v1355
      %v1463 = vunpack.c.l.b16 %v1356
      %v1464 = vunpack.c.l.b16 %v1357
      %v1465 = vpack.c.b16 %v1462, %v1461
      %v1466 = vpack.c.b16 %v1464, %v1463
      %v1469 = vsel %vm270, %v1455, 0
      %v1472 = vsel %vm270, %v1456, 0
      %vm1474 = vcmask 1045504
      %v1476 = vsel %vm1474, %v1466, 0
      %1478 = vmatpush.bf16.msra.mxu0 0
      %1479 = vmatpush.bf16.msra.mxu0 0
      %1480 = vmatpush.bf16.msra.mxu0 0
      %1481 = vmatpush.bf16.msra.mxu0 0
      %1482 = vmatpush.bf16.msra.mxu0 0
      %1483 = vmatpush.bf16.msra.mxu0 0
      %1484 = vmatpush.bf16.msra.mxu0 %v1476
      %1485 = vmatpush.bf16.msra.mxu0 %v1465
      %1486 = vmatmul.bf16.gmra.mxu0 %v1469
      %v1487 = vpop.f32.mrf.mxu0
      %v1488 = vadd.f32 0.0, %v1487
      %v1489 = vpop.f32.mrf.mxu0
      %v1490 = vadd.f32 0.0, %v1489
      %1491 = vmatmul.bf16.gmra.mxu0 %v1472
      %v1492 = vpop.f32.mrf.mxu0
      %v1493 = vadd.f32 0.0, %v1492
      %v1494 = vpop.f32.mrf.mxu0
      %v1495 = vadd.f32 0.0, %v1494
      %1496 = vdwg.mxu0
      %v1497 = vpack.c.bf16 %v1490, %v1488
      %v1498 = vpack.c.bf16 %v1495, %v1493
      %1499 = vrot.lane.b32.xlu0 %v1366, 112
      %v1500 = vpop.permute.xlu0 %1499
      %1501 = vrot.lane.b32.xlu0 %v1367, 112
      %v1502 = vpop.permute.xlu0 %1501
      %1503 = vrot.lane.b32.xlu0 %v1376, 112
      %v1504 = vpop.permute.xlu0 %1503
      %1505 = vrot.lane.b32.xlu0 %v1377, 112
      %v1506 = vpop.permute.xlu0 %1505
      %v1508 = vsel %vm1378, %v1500, 0
      %v1511 = vsel %vm1378, %v1502, 0
      %v1514 = vsel %vm1378, %v1504, 0
      %v1517 = vsel %vm1378, %v1506, 0
      %1519 = vmatpush.bf16.xpose.msra.mxu0 0
      %1520 = vmatpush.bf16.xpose.msra.mxu0 0
      %1521 = vmatpush.bf16.xpose.msra.mxu0 0
      %1522 = vmatpush.bf16.xpose.msra.mxu0 0
      %1523 = vmatpush.bf16.xpose.msra.mxu0 0
      %1524 = vmatpush.bf16.xpose.msra.mxu0 0
      %1525 = vmatpush.bf16.xpose.msra.mxu0 %v1517
      %1526 = vmatpush.bf16.xpose.msra.mxu0 %v1514
      %1527 = vmatmul.bf16.gmra.mxu0 %v1508
      %v1528 = vpop.f32.mrf.mxu0
      %v1529 = vadd.f32 0.0, %v1528
      %v1530 = vpop.f32.mrf.mxu0
      %v1531 = vadd.f32 0.0, %v1530
      %1532 = vmatmul.bf16.gmra.mxu0 %v1511
      %v1533 = vpop.f32.mrf.mxu0
      %v1534 = vadd.f32 0.0, %v1533
      %v1535 = vpop.f32.mrf.mxu0
      %v1536 = vadd.f32 0.0, %v1535
      %1537 = vdwg.mxu0
      %v1538 = vsel %vm270, %v1529, -inf
      %1539 = vmax.xlane.f32.xlu0 %v1538
      %v1540 = vpop.xlane.xlu0 %1539
      %v1541 = vsel %vm270, %v1531, -inf
      %1542 = vmax.xlane.f32.xlu0 %v1541
      %v1543 = vpop.xlane.xlu0 %1542
      %v1544 = vsel %vm270, %v1534, -inf
      %1545 = vmax.xlane.f32.xlu0 %v1544
      %v1546 = vpop.xlane.xlu0 %1545
      %v1547 = vsel %vm1419, %v1536, -inf
      %1548 = vmax.xlane.f32.xlu0 %v1547
      %v1549 = vpop.xlane.xlu0 %1548
      %v1550 = vsub.f32 %v1529, %v1540
      %v1551 = vsub.f32 %v1531, %v1543
      %v1552 = vsub.f32 %v1534, %v1546
      %v1553 = vsub.f32 %v1536, %v1549
      %v1554 = vmul.f32 %v1550, 1.442695
      %v1555 = vpow.pop %v1554
      %v1556 = vmul.f32 %v1551, 1.442695
      %v1557 = vpow.pop %v1556
      %v1558 = vmul.f32 %v1552, 1.442695
      %v1559 = vpow.pop %v1558
      %v1560 = vmul.f32 %v1553, 1.442695
      %v1561 = vpow.pop %v1560
      %v1562 = vsel %vm270, %v1555, 0.0
      %1563 = vadd.xlane.f32.xlu0 %v1562
      %v1564 = vpop.xlane.xlu0 %1563
      %v1565 = vsel %vm270, %v1557, 0.0
      %1566 = vadd.xlane.f32.xlu0 %v1565
      %v1567 = vpop.xlane.xlu0 %1566
      %v1568 = vsel %vm270, %v1559, 0.0
      %1569 = vadd.xlane.f32.xlu0 %v1568
      %v1570 = vpop.xlane.xlu0 %1569
      %v1571 = vsel %vm1419, %v1561, 0.0
      %1572 = vadd.xlane.f32.xlu0 %v1571
      %v1573 = vpop.xlane.xlu0 %1572
      %v1574 = vrcp.pop %v1564
      %v1575 = vrcp.pop %v1567
      %v1576 = vrcp.pop %v1570
      %v1577 = vrcp.pop %v1573
      %v1578 = vmul.f32 %v1555, %v1574
      %v1579 = vmul.f32 %v1557, %v1575
      %v1580 = vmul.f32 %v1559, %v1576
      %v1581 = vmul.f32 %v1561, %v1577
      %v1582 = vpack.c.bf16 %v1579, %v1578
      %v1583 = vpack.c.bf16 %v1581, %v1580
      %1584 = vrot.lane.b32.xlu0 %v1465, 112
      %v1585 = vpop.permute.xlu0 %1584
      %1586 = vrot.lane.b32.xlu0 %v1466, 112
      %v1587 = vpop.permute.xlu0 %1586
      %v1590 = vsel %vm270, %v1582, 0
      %v1593 = vsel %vm270, %v1583, 0
      %v1596 = vsel %vm1474, %v1587, 0
      %1598 = vmatpush.bf16.msra.mxu0 0
      %1599 = vmatpush.bf16.msra.mxu0 0
      %1600 = vmatpush.bf16.msra.mxu0 0
      %1601 = vmatpush.bf16.msra.mxu0 0
      %1602 = vmatpush.bf16.msra.mxu0 0
      %1603 = vmatpush.bf16.msra.mxu0 0
      %1604 = vmatpush.bf16.msra.mxu0 %v1596
      %1605 = vmatpush.bf16.msra.mxu0 %v1585
      %1606 = vmatmul.bf16.gmra.mxu0 %v1590
      %v1607 = vpop.f32.mrf.mxu0
      %v1608 = vadd.f32 0.0, %v1607
      %v1609 = vpop.f32.mrf.mxu0
      %v1610 = vadd.f32 0.0, %v1609
      %1611 = vmatmul.bf16.gmra.mxu0 %v1593
      %v1612 = vpop.f32.mrf.mxu0
      %v1613 = vadd.f32 0.0, %v1612
      %v1614 = vpop.f32.mrf.mxu0
      %v1615 = vadd.f32 0.0, %v1614
      %1616 = vdwg.mxu0
      %v1617 = vpack.c.bf16 %v1610, %v1608
      %v1618 = vpack.c.bf16 %v1615, %v1613
      %v1621 = vunpack.c.l.b16 %v1081
      %v1622 = vunpack.c.l.b16 %v1082
      %v1623 = vpack.c.b16 %v1622, %v1621
      %v1626 = vsel %vm1378, %v1617, 0
      %v1629 = vsel %vm1378, %v1618, 0
      %1631 = vmatpush.bf16.msra.mxu0 0
      %1632 = vmatpush.bf16.msra.mxu0 0
      %1633 = vmatpush.bf16.msra.mxu0 0
      %1634 = vmatpush.bf16.msra.mxu0 0
      %1635 = vmatpush.bf16.msra.mxu0 0
      %1636 = vmatpush.bf16.msra.mxu0 0
      %1637 = vmatpush.bf16.msra.mxu0 0
      %1638 = vmatpush.bf16.msra.mxu0 %v1623
      %1639 = vmatmul.bf16.gmra.mxu0 %v1626
      %v1640 = vpop.f32.mrf.mxu0
      %v1641 = vadd.f32 0.0, %v1640
      %v1642 = vpop.f32.mrf.mxu0
      %v1643 = vadd.f32 0.0, %v1642
      %1644 = vmatmul.bf16.gmra.mxu0 %v1629
      %v1645 = vpop.f32.mrf.mxu0
      %v1646 = vadd.f32 0.0, %v1645
      %v1647 = vpop.f32.mrf.mxu0
      %v1648 = vadd.f32 0.0, %v1647
      %1649 = vdwg.mxu0
      %v1652 = vunpack.c.l.b16 %v1079
      %v1653 = vunpack.c.l.b16 %v1080
      %v1654 = vpack.c.b16 %v1653, %v1652
      %v1657 = vsel %vm1378, %v1497, 0
      %v1660 = vsel %vm1378, %v1498, 0
      %1662 = vmatpush.bf16.msra.mxu0 0
      %1663 = vmatpush.bf16.msra.mxu0 0
      %1664 = vmatpush.bf16.msra.mxu0 0
      %1665 = vmatpush.bf16.msra.mxu0 0
      %1666 = vmatpush.bf16.msra.mxu0 0
      %1667 = vmatpush.bf16.msra.mxu0 0
      %1668 = vmatpush.bf16.msra.mxu0 0
      %1669 = vmatpush.bf16.msra.mxu0 %v1654
      %1670 = vmatmul.bf16.gmra.mxu0 %v1657
      %v1671 = vpop.f32.mrf.mxu0
      %v1672 = vadd.f32 %v1641, %v1671
      %v1673 = vpop.f32.mrf.mxu0
      %v1674 = vadd.f32 %v1643, %v1673
      %1675 = vmatmul.bf16.gmra.mxu0 %v1660
      %v1676 = vpop.f32.mrf.mxu0
      %v1677 = vadd.f32 %v1646, %v1676
      %v1678 = vpop.f32.mrf.mxu0
      %v1679 = vadd.f32 %v1648, %v1678
      %1680 = vdwg.mxu0
      %1681 = vrot.lane.b32.xlu0 %v1366, 96
      %v1682 = vpop.permute.xlu0 %1681
      %1683 = vrot.lane.b32.xlu0 %v1367, 96
      %v1684 = vpop.permute.xlu0 %1683
      %1685 = vrot.lane.b32.xlu0 %v1376, 96
      %v1686 = vpop.permute.xlu0 %1685
      %1687 = vrot.lane.b32.xlu0 %v1377, 96
      %v1688 = vpop.permute.xlu0 %1687
      %v1690 = vsel %vm1378, %v1682, 0
      %v1693 = vsel %vm1378, %v1684, 0
      %v1696 = vsel %vm1378, %v1686, 0
      %v1699 = vsel %vm1378, %v1688, 0
      %1701 = vmatpush.bf16.xpose.msra.mxu0 0
      %1702 = vmatpush.bf16.xpose.msra.mxu0 0
      %1703 = vmatpush.bf16.xpose.msra.mxu0 0
      %1704 = vmatpush.bf16.xpose.msra.mxu0 0
      %1705 = vmatpush.bf16.xpose.msra.mxu0 0
      %1706 = vmatpush.bf16.xpose.msra.mxu0 0
      %1707 = vmatpush.bf16.xpose.msra.mxu0 %v1699
      %1708 = vmatpush.bf16.xpose.msra.mxu0 %v1696
      %1709 = vmatmul.bf16.gmra.mxu0 %v1690
      %v1710 = vpop.f32.mrf.mxu0
      %v1711 = vadd.f32 0.0, %v1710
      %v1712 = vpop.f32.mrf.mxu0
      %v1713 = vadd.f32 0.0, %v1712
      %1714 = vmatmul.bf16.gmra.mxu0 %v1693
      %v1715 = vpop.f32.mrf.mxu0
      %v1716 = vadd.f32 0.0, %v1715
      %v1717 = vpop.f32.mrf.mxu0
      %v1718 = vadd.f32 0.0, %v1717
      %1719 = vdwg.mxu0
      %v1720 = vsel %vm270, %v1711, -inf
      %1721 = vmax.xlane.f32.xlu0 %v1720
      %v1722 = vpop.xlane.xlu0 %1721
      %v1723 = vsel %vm270, %v1713, -inf
      %1724 = vmax.xlane.f32.xlu0 %v1723
      %v1725 = vpop.xlane.xlu0 %1724
      %v1726 = vsel %vm270, %v1716, -inf
      %1727 = vmax.xlane.f32.xlu0 %v1726
      %v1728 = vpop.xlane.xlu0 %1727
      %v1729 = vsel %vm1419, %v1718, -inf
      %1730 = vmax.xlane.f32.xlu0 %v1729
      %v1731 = vpop.xlane.xlu0 %1730
      %v1732 = vsub.f32 %v1711, %v1722
      %v1733 = vsub.f32 %v1713, %v1725
      %v1734 = vsub.f32 %v1716, %v1728
      %v1735 = vsub.f32 %v1718, %v1731
      %v1736 = vmul.f32 %v1732, 1.442695
      %v1737 = vpow.pop %v1736
      %v1738 = vmul.f32 %v1733, 1.442695
      %v1739 = vpow.pop %v1738
      %v1740 = vmul.f32 %v1734, 1.442695
      %v1741 = vpow.pop %v1740
      %v1742 = vmul.f32 %v1735, 1.442695
      %v1743 = vpow.pop %v1742
      %v1744 = vsel %vm270, %v1737, 0.0
      %1745 = vadd.xlane.f32.xlu0 %v1744
      %v1746 = vpop.xlane.xlu0 %1745
      %v1747 = vsel %vm270, %v1739, 0.0
      %1748 = vadd.xlane.f32.xlu0 %v1747
      %v1749 = vpop.xlane.xlu0 %1748
      %v1750 = vsel %vm270, %v1741, 0.0
      %1751 = vadd.xlane.f32.xlu0 %v1750
      %v1752 = vpop.xlane.xlu0 %1751
      %v1753 = vsel %vm1419, %v1743, 0.0
      %1754 = vadd.xlane.f32.xlu0 %v1753
      %v1755 = vpop.xlane.xlu0 %1754
      %v1756 = vrcp.pop %v1746
      %v1757 = vrcp.pop %v1749
      %v1758 = vrcp.pop %v1752
      %v1759 = vrcp.pop %v1755
      %v1760 = vmul.f32 %v1737, %v1756
      %v1761 = vmul.f32 %v1739, %v1757
      %v1762 = vmul.f32 %v1741, %v1758
      %v1763 = vmul.f32 %v1743, %v1759
      %v1764 = vpack.c.bf16 %v1761, %v1760
      %v1765 = vpack.c.bf16 %v1763, %v1762
      %1766 = vrot.lane.b32.xlu0 %v1465, 96
      %v1767 = vpop.permute.xlu0 %1766
      %1768 = vrot.lane.b32.xlu0 %v1466, 96
      %v1769 = vpop.permute.xlu0 %1768
      %v1772 = vsel %vm270, %v1764, 0
      %v1775 = vsel %vm270, %v1765, 0
      %v1778 = vsel %vm1474, %v1769, 0
      %1780 = vmatpush.bf16.msra.mxu0 0
      %1781 = vmatpush.bf16.msra.mxu0 0
      %1782 = vmatpush.bf16.msra.mxu0 0
      %1783 = vmatpush.bf16.msra.mxu0 0
      %1784 = vmatpush.bf16.msra.mxu0 0
      %1785 = vmatpush.bf16.msra.mxu0 0
      %1786 = vmatpush.bf16.msra.mxu0 %v1778
      %1787 = vmatpush.bf16.msra.mxu0 %v1767
      %1788 = vmatmul.bf16.gmra.mxu0 %v1772
      %v1789 = vpop.f32.mrf.mxu0
      %v1790 = vadd.f32 0.0, %v1789
      %v1791 = vpop.f32.mrf.mxu0
      %v1792 = vadd.f32 0.0, %v1791
      %1793 = vmatmul.bf16.gmra.mxu0 %v1775
      %v1794 = vpop.f32.mrf.mxu0
      %v1795 = vadd.f32 0.0, %v1794
      %v1796 = vpop.f32.mrf.mxu0
      %v1797 = vadd.f32 0.0, %v1796
      %1798 = vdwg.mxu0
      %v1799 = vpack.c.bf16 %v1792, %v1790
      %v1800 = vpack.c.bf16 %v1797, %v1795
      %v1803 = vunpack.c.l.b16 %v1083
      %v1804 = vunpack.c.l.b16 %v1084
      %v1805 = vpack.c.b16 %v1804, %v1803
      %v1808 = vsel %vm1378, %v1799, 0
      %v1811 = vsel %vm1378, %v1800, 0
      %1813 = vmatpush.bf16.msra.mxu0 0
      %1814 = vmatpush.bf16.msra.mxu0 0
      %1815 = vmatpush.bf16.msra.mxu0 0
      %1816 = vmatpush.bf16.msra.mxu0 0
      %1817 = vmatpush.bf16.msra.mxu0 0
      %1818 = vmatpush.bf16.msra.mxu0 0
      %1819 = vmatpush.bf16.msra.mxu0 0
      %1820 = vmatpush.bf16.msra.mxu0 %v1805
      %1821 = vmatmul.bf16.gmra.mxu0 %v1808
      %v1822 = vpop.f32.mrf.mxu0
      %v1823 = vadd.f32 0.0, %v1822
      %v1824 = vpop.f32.mrf.mxu0
      %v1825 = vadd.f32 0.0, %v1824
      %1826 = vmatmul.bf16.gmra.mxu0 %v1811
      %v1827 = vpop.f32.mrf.mxu0
      %v1828 = vadd.f32 0.0, %v1827
      %v1829 = vpop.f32.mrf.mxu0
      %v1830 = vadd.f32 0.0, %v1829
      %1831 = vdwg.mxu0
      %v1832 = vadd.f32 %v1672, %v1823
      %v1833 = vadd.f32 %v1674, %v1825
      %v1834 = vadd.f32 %v1677, %v1828
      %v1835 = vadd.f32 %v1679, %v1830
      %1836 = vrot.lane.b32.xlu0 %v1366, 80
      %v1837 = vpop.permute.xlu0 %1836
      %1838 = vrot.lane.b32.xlu0 %v1367, 80
      %v1839 = vpop.permute.xlu0 %1838
      %1840 = vrot.lane.b32.xlu0 %v1376, 80
      %v1841 = vpop.permute.xlu0 %1840
      %1842 = vrot.lane.b32.xlu0 %v1377, 80
      %v1843 = vpop.permute.xlu0 %1842
      %v1845 = vsel %vm1378, %v1837, 0
      %v1848 = vsel %vm1378, %v1839, 0
      %v1851 = vsel %vm1378, %v1841, 0
      %v1854 = vsel %vm1378, %v1843, 0
      %1856 = vmatpush.bf16.xpose.msra.mxu0 0
      %1857 = vmatpush.bf16.xpose.msra.mxu0 0
      %1858 = vmatpush.bf16.xpose.msra.mxu0 0
      %1859 = vmatpush.bf16.xpose.msra.mxu0 0
      %1860 = vmatpush.bf16.xpose.msra.mxu0 0
      %1861 = vmatpush.bf16.xpose.msra.mxu0 0
      %1862 = vmatpush.bf16.xpose.msra.mxu0 %v1854
      %1863 = vmatpush.bf16.xpose.msra.mxu0 %v1851
      %1864 = vmatmul.bf16.gmra.mxu0 %v1845
      %v1865 = vpop.f32.mrf.mxu0
      %v1866 = vadd.f32 0.0, %v1865
      %v1867 = vpop.f32.mrf.mxu0
      %v1868 = vadd.f32 0.0, %v1867
      %1869 = vmatmul.bf16.gmra.mxu0 %v1848
      %v1870 = vpop.f32.mrf.mxu0
      %v1871 = vadd.f32 0.0, %v1870
      %v1872 = vpop.f32.mrf.mxu0
      %v1873 = vadd.f32 0.0, %v1872
      %1874 = vdwg.mxu0
      %v1875 = vsel %vm270, %v1866, -inf
      %1876 = vmax.xlane.f32.xlu0 %v1875
      %v1877 = vpop.xlane.xlu0 %1876
      %v1878 = vsel %vm270, %v1868, -inf
      %1879 = vmax.xlane.f32.xlu0 %v1878
      %v1880 = vpop.xlane.xlu0 %1879
      %v1881 = vsel %vm270, %v1871, -inf
      %1882 = vmax.xlane.f32.xlu0 %v1881
      %v1883 = vpop.xlane.xlu0 %1882
      %v1884 = vsel %vm1419, %v1873, -inf
      %1885 = vmax.xlane.f32.xlu0 %v1884
      %v1886 = vpop.xlane.xlu0 %1885
      %v1887 = vsub.f32 %v1866, %v1877
      %v1888 = vsub.f32 %v1868, %v1880
      %v1889 = vsub.f32 %v1871, %v1883
      %v1890 = vsub.f32 %v1873, %v1886
      %v1891 = vmul.f32 %v1887, 1.442695
      %v1892 = vpow.pop %v1891
      %v1893 = vmul.f32 %v1888, 1.442695
      %v1894 = vpow.pop %v1893
      %v1895 = vmul.f32 %v1889, 1.442695
      %v1896 = vpow.pop %v1895
      %v1897 = vmul.f32 %v1890, 1.442695
      %v1898 = vpow.pop %v1897
      %v1899 = vsel %vm270, %v1892, 0.0
      %1900 = vadd.xlane.f32.xlu0 %v1899
      %v1901 = vpop.xlane.xlu0 %1900
      %v1902 = vsel %vm270, %v1894, 0.0
      %1903 = vadd.xlane.f32.xlu0 %v1902
      %v1904 = vpop.xlane.xlu0 %1903
      %v1905 = vsel %vm270, %v1896, 0.0
      %1906 = vadd.xlane.f32.xlu0 %v1905
      %v1907 = vpop.xlane.xlu0 %1906
      %v1908 = vsel %vm1419, %v1898, 0.0
      %1909 = vadd.xlane.f32.xlu0 %v1908
      %v1910 = vpop.xlane.xlu0 %1909
      %v1911 = vrcp.pop %v1901
      %v1912 = vrcp.pop %v1904
      %v1913 = vrcp.pop %v1907
      %v1914 = vrcp.pop %v1910
      %v1915 = vmul.f32 %v1892, %v1911
      %v1916 = vmul.f32 %v1894, %v1912
      %v1917 = vmul.f32 %v1896, %v1913
      %v1918 = vmul.f32 %v1898, %v1914
      %v1919 = vpack.c.bf16 %v1916, %v1915
      %v1920 = vpack.c.bf16 %v1918, %v1917
      %1921 = vrot.lane.b32.xlu0 %v1465, 80
      %v1922 = vpop.permute.xlu0 %1921
      %1923 = vrot.lane.b32.xlu0 %v1466, 80
      %v1924 = vpop.permute.xlu0 %1923
      %v1927 = vsel %vm270, %v1919, 0
      %v1930 = vsel %vm270, %v1920, 0
      %v1933 = vsel %vm1474, %v1924, 0
      %1935 = vmatpush.bf16.msra.mxu0 0
      %1936 = vmatpush.bf16.msra.mxu0 0
      %1937 = vmatpush.bf16.msra.mxu0 0
      %1938 = vmatpush.bf16.msra.mxu0 0
      %1939 = vmatpush.bf16.msra.mxu0 0
      %1940 = vmatpush.bf16.msra.mxu0 0
      %1941 = vmatpush.bf16.msra.mxu0 %v1933
      %1942 = vmatpush.bf16.msra.mxu0 %v1922
      %1943 = vmatmul.bf16.gmra.mxu0 %v1927
      %v1944 = vpop.f32.mrf.mxu0
      %v1945 = vadd.f32 0.0, %v1944
      %v1946 = vpop.f32.mrf.mxu0
      %v1947 = vadd.f32 0.0, %v1946
      %1948 = vmatmul.bf16.gmra.mxu0 %v1930
      %v1949 = vpop.f32.mrf.mxu0
      %v1950 = vadd.f32 0.0, %v1949
      %v1951 = vpop.f32.mrf.mxu0
      %v1952 = vadd.f32 0.0, %v1951
      %1953 = vdwg.mxu0
      %v1954 = vpack.c.bf16 %v1947, %v1945
      %v1955 = vpack.c.bf16 %v1952, %v1950
      %v1958 = vunpack.c.l.b16 %v1085
      %v1959 = vunpack.c.l.b16 %v1086
      %v1960 = vpack.c.b16 %v1959, %v1958
      %v1963 = vsel %vm1378, %v1954, 0
      %v1966 = vsel %vm1378, %v1955, 0
      %1968 = vmatpush.bf16.msra.mxu0 0
      %1969 = vmatpush.bf16.msra.mxu0 0
      %1970 = vmatpush.bf16.msra.mxu0 0
      %1971 = vmatpush.bf16.msra.mxu0 0
      %1972 = vmatpush.bf16.msra.mxu0 0
      %1973 = vmatpush.bf16.msra.mxu0 0
      %1974 = vmatpush.bf16.msra.mxu0 0
      %1975 = vmatpush.bf16.msra.mxu0 %v1960
      %1976 = vmatmul.bf16.gmra.mxu0 %v1963
      %v1977 = vpop.f32.mrf.mxu0
      %v1978 = vadd.f32 0.0, %v1977
      %v1979 = vpop.f32.mrf.mxu0
      %v1980 = vadd.f32 0.0, %v1979
      %1981 = vmatmul.bf16.gmra.mxu0 %v1966
      %v1982 = vpop.f32.mrf.mxu0
      %v1983 = vadd.f32 0.0, %v1982
      %v1984 = vpop.f32.mrf.mxu0
      %v1985 = vadd.f32 0.0, %v1984
      %1986 = vdwg.mxu0
      %v1987 = vadd.f32 %v1832, %v1978
      %v1988 = vadd.f32 %v1833, %v1980
      %v1989 = vadd.f32 %v1834, %v1983
      %v1990 = vadd.f32 %v1835, %v1985
      %1991 = vrot.lane.b32.xlu0 %v1366, 64
      %v1992 = vpop.permute.xlu0 %1991
      %1993 = vrot.lane.b32.xlu0 %v1367, 64
      %v1994 = vpop.permute.xlu0 %1993
      %1995 = vrot.lane.b32.xlu0 %v1376, 64
      %v1996 = vpop.permute.xlu0 %1995
      %1997 = vrot.lane.b32.xlu0 %v1377, 64
      %v1998 = vpop.permute.xlu0 %1997
      %v2000 = vsel %vm1378, %v1992, 0
      %v2003 = vsel %vm1378, %v1994, 0
      %v2006 = vsel %vm1378, %v1996, 0
      %v2009 = vsel %vm1378, %v1998, 0
      %2011 = vmatpush.bf16.xpose.msra.mxu0 0
      %2012 = vmatpush.bf16.xpose.msra.mxu0 0
      %2013 = vmatpush.bf16.xpose.msra.mxu0 0
      %2014 = vmatpush.bf16.xpose.msra.mxu0 0
      %2015 = vmatpush.bf16.xpose.msra.mxu0 0
      %2016 = vmatpush.bf16.xpose.msra.mxu0 0
      %2017 = vmatpush.bf16.xpose.msra.mxu0 %v2009
      %2018 = vmatpush.bf16.xpose.msra.mxu0 %v2006
      %2019 = vmatmul.bf16.gmra.mxu0 %v2000
      %v2020 = vpop.f32.mrf.mxu0
      %v2021 = vadd.f32 0.0, %v2020
      %v2022 = vpop.f32.mrf.mxu0
      %v2023 = vadd.f32 0.0, %v2022
      %2024 = vmatmul.bf16.gmra.mxu0 %v2003
      %v2025 = vpop.f32.mrf.mxu0
      %v2026 = vadd.f32 0.0, %v2025
      %v2027 = vpop.f32.mrf.mxu0
      %v2028 = vadd.f32 0.0, %v2027
      %2029 = vdwg.mxu0
      %v2030 = vsel %vm270, %v2021, -inf
      %2031 = vmax.xlane.f32.xlu0 %v2030
      %v2032 = vpop.xlane.xlu0 %2031
      %v2033 = vsel %vm270, %v2023, -inf
      %2034 = vmax.xlane.f32.xlu0 %v2033
      %v2035 = vpop.xlane.xlu0 %2034
      %v2036 = vsel %vm270, %v2026, -inf
      %2037 = vmax.xlane.f32.xlu0 %v2036
      %v2038 = vpop.xlane.xlu0 %2037
      %v2039 = vsel %vm1419, %v2028, -inf
      %2040 = vmax.xlane.f32.xlu0 %v2039
      %v2041 = vpop.xlane.xlu0 %2040
      %v2042 = vsub.f32 %v2021, %v2032
      %v2043 = vsub.f32 %v2023, %v2035
      %v2044 = vsub.f32 %v2026, %v2038
      %v2045 = vsub.f32 %v2028, %v2041
      %v2046 = vmul.f32 %v2042, 1.442695
      %v2047 = vpow.pop %v2046
      %v2048 = vmul.f32 %v2043, 1.442695
      %v2049 = vpow.pop %v2048
      %v2050 = vmul.f32 %v2044, 1.442695
      %v2051 = vpow.pop %v2050
      %v2052 = vmul.f32 %v2045, 1.442695
      %v2053 = vpow.pop %v2052
      %v2054 = vsel %vm270, %v2047, 0.0
      %2055 = vadd.xlane.f32.xlu0 %v2054
      %v2056 = vpop.xlane.xlu0 %2055
      %v2057 = vsel %vm270, %v2049, 0.0
      %2058 = vadd.xlane.f32.xlu0 %v2057
      %v2059 = vpop.xlane.xlu0 %2058
      %v2060 = vsel %vm270, %v2051, 0.0
      %2061 = vadd.xlane.f32.xlu0 %v2060
      %v2062 = vpop.xlane.xlu0 %2061
      %v2063 = vsel %vm1419, %v2053, 0.0
      %2064 = vadd.xlane.f32.xlu0 %v2063
      %v2065 = vpop.xlane.xlu0 %2064
      %v2066 = vrcp.pop %v2056
      %v2067 = vrcp.pop %v2059
      %v2068 = vrcp.pop %v2062
      %v2069 = vrcp.pop %v2065
      %v2070 = vmul.f32 %v2047, %v2066
      %v2071 = vmul.f32 %v2049, %v2067
      %v2072 = vmul.f32 %v2051, %v2068
      %v2073 = vmul.f32 %v2053, %v2069
      %v2074 = vpack.c.bf16 %v2071, %v2070
      %v2075 = vpack.c.bf16 %v2073, %v2072
      %2076 = vrot.lane.b32.xlu0 %v1465, 64
      %v2077 = vpop.permute.xlu0 %2076
      %2078 = vrot.lane.b32.xlu0 %v1466, 64
      %v2079 = vpop.permute.xlu0 %2078
      %v2082 = vsel %vm270, %v2074, 0
      %v2085 = vsel %vm270, %v2075, 0
      %v2088 = vsel %vm1474, %v2079, 0
      %2090 = vmatpush.bf16.msra.mxu0 0
      %2091 = vmatpush.bf16.msra.mxu0 0
      %2092 = vmatpush.bf16.msra.mxu0 0
      %2093 = vmatpush.bf16.msra.mxu0 0
      %2094 = vmatpush.bf16.msra.mxu0 0
      %2095 = vmatpush.bf16.msra.mxu0 0
      %2096 = vmatpush.bf16.msra.mxu0 %v2088
      %2097 = vmatpush.bf16.msra.mxu0 %v2077
      %2098 = vmatmul.bf16.gmra.mxu0 %v2082
      %v2099 = vpop.f32.mrf.mxu0
      %v2100 = vadd.f32 0.0, %v2099
      %v2101 = vpop.f32.mrf.mxu0
      %v2102 = vadd.f32 0.0, %v2101
      %2103 = vmatmul.bf16.gmra.mxu0 %v2085
      %v2104 = vpop.f32.mrf.mxu0
      %v2105 = vadd.f32 0.0, %v2104
      %v2106 = vpop.f32.mrf.mxu0
      %v2107 = vadd.f32 0.0, %v2106
      %2108 = vdwg.mxu0
      %v2109 = vpack.c.bf16 %v2102, %v2100
      %v2110 = vpack.c.bf16 %v2107, %v2105
      %v2113 = vunpack.c.l.b16 %v1087
      %v2114 = vunpack.c.l.b16 %v1088
      %v2115 = vpack.c.b16 %v2114, %v2113
      %v2118 = vsel %vm1378, %v2109, 0
      %v2121 = vsel %vm1378, %v2110, 0
      %2123 = vmatpush.bf16.msra.mxu0 0
      %2124 = vmatpush.bf16.msra.mxu0 0
      %2125 = vmatpush.bf16.msra.mxu0 0
      %2126 = vmatpush.bf16.msra.mxu0 0
      %2127 = vmatpush.bf16.msra.mxu0 0
      %2128 = vmatpush.bf16.msra.mxu0 0
      %2129 = vmatpush.bf16.msra.mxu0 0
      %2130 = vmatpush.bf16.msra.mxu0 %v2115
      %2131 = vmatmul.bf16.gmra.mxu0 %v2118
      %v2132 = vpop.f32.mrf.mxu0
      %v2133 = vadd.f32 0.0, %v2132
      %v2134 = vpop.f32.mrf.mxu0
      %v2135 = vadd.f32 0.0, %v2134
      %2136 = vmatmul.bf16.gmra.mxu0 %v2121
      %v2137 = vpop.f32.mrf.mxu0
      %v2138 = vadd.f32 0.0, %v2137
      %v2139 = vpop.f32.mrf.mxu0
      %v2140 = vadd.f32 0.0, %v2139
      %2141 = vdwg.mxu0
      %v2142 = vadd.f32 %v1987, %v2133
      %v2143 = vadd.f32 %v1988, %v2135
      %v2144 = vadd.f32 %v1989, %v2138
      %v2145 = vadd.f32 %v1990, %v2140
      %2146 = vrot.lane.b32.xlu0 %v1366, 48
      %v2147 = vpop.permute.xlu0 %2146
      %2148 = vrot.lane.b32.xlu0 %v1367, 48
      %v2149 = vpop.permute.xlu0 %2148
      %2150 = vrot.lane.b32.xlu0 %v1376, 48
      %v2151 = vpop.permute.xlu0 %2150
      %2152 = vrot.lane.b32.xlu0 %v1377, 48
      %v2153 = vpop.permute.xlu0 %2152
      %v2155 = vsel %vm1378, %v2147, 0
      %v2158 = vsel %vm1378, %v2149, 0
      %v2161 = vsel %vm1378, %v2151, 0
      %v2164 = vsel %vm1378, %v2153, 0
      %2166 = vmatpush.bf16.xpose.msra.mxu0 0
      %2167 = vmatpush.bf16.xpose.msra.mxu0 0
      %2168 = vmatpush.bf16.xpose.msra.mxu0 0
      %2169 = vmatpush.bf16.xpose.msra.mxu0 0
      %2170 = vmatpush.bf16.xpose.msra.mxu0 0
      %2171 = vmatpush.bf16.xpose.msra.mxu0 0
      %2172 = vmatpush.bf16.xpose.msra.mxu0 %v2164
      %2173 = vmatpush.bf16.xpose.msra.mxu0 %v2161
      %2174 = vmatmul.bf16.gmra.mxu0 %v2155
      %v2175 = vpop.f32.mrf.mxu0
      %v2176 = vadd.f32 0.0, %v2175
      %v2177 = vpop.f32.mrf.mxu0
      %v2178 = vadd.f32 0.0, %v2177
      %2179 = vmatmul.bf16.gmra.mxu0 %v2158
      %v2180 = vpop.f32.mrf.mxu0
      %v2181 = vadd.f32 0.0, %v2180
      %v2182 = vpop.f32.mrf.mxu0
      %v2183 = vadd.f32 0.0, %v2182
      %2184 = vdwg.mxu0
      %v2185 = vsel %vm270, %v2176, -inf
      %2186 = vmax.xlane.f32.xlu0 %v2185
      %v2187 = vpop.xlane.xlu0 %2186
      %v2188 = vsel %vm270, %v2178, -inf
      %2189 = vmax.xlane.f32.xlu0 %v2188
      %v2190 = vpop.xlane.xlu0 %2189
      %v2191 = vsel %vm270, %v2181, -inf
      %2192 = vmax.xlane.f32.xlu0 %v2191
      %v2193 = vpop.xlane.xlu0 %2192
      %v2194 = vsel %vm1419, %v2183, -inf
      %2195 = vmax.xlane.f32.xlu0 %v2194
      %v2196 = vpop.xlane.xlu0 %2195
      %v2197 = vsub.f32 %v2176, %v2187
      %v2198 = vsub.f32 %v2178, %v2190
      %v2199 = vsub.f32 %v2181, %v2193
      %v2200 = vsub.f32 %v2183, %v2196
      %v2201 = vmul.f32 %v2197, 1.442695
      %v2202 = vpow.pop %v2201
      %v2203 = vmul.f32 %v2198, 1.442695
      %v2204 = vpow.pop %v2203
      %v2205 = vmul.f32 %v2199, 1.442695
      %v2206 = vpow.pop %v2205
      %v2207 = vmul.f32 %v2200, 1.442695
      %v2208 = vpow.pop %v2207
      %v2209 = vsel %vm270, %v2202, 0.0
      %2210 = vadd.xlane.f32.xlu0 %v2209
      %v2211 = vpop.xlane.xlu0 %2210
      %v2212 = vsel %vm270, %v2204, 0.0
      %2213 = vadd.xlane.f32.xlu0 %v2212
      %v2214 = vpop.xlane.xlu0 %2213
      %v2215 = vsel %vm270, %v2206, 0.0
      %2216 = vadd.xlane.f32.xlu0 %v2215
      %v2217 = vpop.xlane.xlu0 %2216
      %v2218 = vsel %vm1419, %v2208, 0.0
      %2219 = vadd.xlane.f32.xlu0 %v2218
      %v2220 = vpop.xlane.xlu0 %2219
      %v2221 = vrcp.pop %v2211
      %v2222 = vrcp.pop %v2214
      %v2223 = vrcp.pop %v2217
      %v2224 = vrcp.pop %v2220
      %v2225 = vmul.f32 %v2202, %v2221
      %v2226 = vmul.f32 %v2204, %v2222
      %v2227 = vmul.f32 %v2206, %v2223
      %v2228 = vmul.f32 %v2208, %v2224
      %v2229 = vpack.c.bf16 %v2226, %v2225
      %v2230 = vpack.c.bf16 %v2228, %v2227
      %2231 = vrot.lane.b32.xlu0 %v1465, 48
      %v2232 = vpop.permute.xlu0 %2231
      %2233 = vrot.lane.b32.xlu0 %v1466, 48
      %v2234 = vpop.permute.xlu0 %2233
      %v2237 = vsel %vm270, %v2229, 0
      %v2240 = vsel %vm270, %v2230, 0
      %v2243 = vsel %vm1474, %v2234, 0
      %2245 = vmatpush.bf16.msra.mxu0 0
      %2246 = vmatpush.bf16.msra.mxu0 0
      %2247 = vmatpush.bf16.msra.mxu0 0
      %2248 = vmatpush.bf16.msra.mxu0 0
      %2249 = vmatpush.bf16.msra.mxu0 0
      %2250 = vmatpush.bf16.msra.mxu0 0
      %2251 = vmatpush.bf16.msra.mxu0 %v2243
      %2252 = vmatpush.bf16.msra.mxu0 %v2232
      %2253 = vmatmul.bf16.gmra.mxu0 %v2237
      %v2254 = vpop.f32.mrf.mxu0
      %v2255 = vadd.f32 0.0, %v2254
      %v2256 = vpop.f32.mrf.mxu0
      %v2257 = vadd.f32 0.0, %v2256
      %2258 = vmatmul.bf16.gmra.mxu0 %v2240
      %v2259 = vpop.f32.mrf.mxu0
      %v2260 = vadd.f32 0.0, %v2259
      %v2261 = vpop.f32.mrf.mxu0
      %v2262 = vadd.f32 0.0, %v2261
      %2263 = vdwg.mxu0
      %v2264 = vpack.c.bf16 %v2257, %v2255
      %v2265 = vpack.c.bf16 %v2262, %v2260
      %v2268 = vunpack.c.l.b16 %v1089
      %v2269 = vunpack.c.l.b16 %v1090
      %v2270 = vpack.c.b16 %v2269, %v2268
      %v2273 = vsel %vm1378, %v2264, 0
      %v2276 = vsel %vm1378, %v2265, 0
      %2278 = vmatpush.bf16.msra.mxu0 0
      %2279 = vmatpush.bf16.msra.mxu0 0
      %2280 = vmatpush.bf16.msra.mxu0 0
      %2281 = vmatpush.bf16.msra.mxu0 0
      %2282 = vmatpush.bf16.msra.mxu0 0
      %2283 = vmatpush.bf16.msra.mxu0 0
      %2284 = vmatpush.bf16.msra.mxu0 0
      %2285 = vmatpush.bf16.msra.mxu0 %v2270
      %2286 = vmatmul.bf16.gmra.mxu0 %v2273
      %v2287 = vpop.f32.mrf.mxu0
      %v2288 = vadd.f32 0.0, %v2287
      %v2289 = vpop.f32.mrf.mxu0
      %v2290 = vadd.f32 0.0, %v2289
      %2291 = vmatmul.bf16.gmra.mxu0 %v2276
      %v2292 = vpop.f32.mrf.mxu0
      %v2293 = vadd.f32 0.0, %v2292
      %v2294 = vpop.f32.mrf.mxu0
      %v2295 = vadd.f32 0.0, %v2294
      %2296 = vdwg.mxu0
      %v2297 = vadd.f32 %v2142, %v2288
      %v2298 = vadd.f32 %v2143, %v2290
      %v2299 = vadd.f32 %v2144, %v2293
      %v2300 = vadd.f32 %v2145, %v2295
      %2301 = vrot.lane.b32.xlu0 %v1366, 32
      %v2302 = vpop.permute.xlu0 %2301
      %2303 = vrot.lane.b32.xlu0 %v1367, 32
      %v2304 = vpop.permute.xlu0 %2303
      %2305 = vrot.lane.b32.xlu0 %v1376, 32
      %v2306 = vpop.permute.xlu0 %2305
      %2307 = vrot.lane.b32.xlu0 %v1377, 32
      %v2308 = vpop.permute.xlu0 %2307
      %v2310 = vsel %vm1378, %v2302, 0
      %v2313 = vsel %vm1378, %v2304, 0
      %v2316 = vsel %vm1378, %v2306, 0
      %v2319 = vsel %vm1378, %v2308, 0
      %2321 = vmatpush.bf16.xpose.msra.mxu0 0
      %2322 = vmatpush.bf16.xpose.msra.mxu0 0
      %2323 = vmatpush.bf16.xpose.msra.mxu0 0
      %2324 = vmatpush.bf16.xpose.msra.mxu0 0
      %2325 = vmatpush.bf16.xpose.msra.mxu0 0
      %2326 = vmatpush.bf16.xpose.msra.mxu0 0
      %2327 = vmatpush.bf16.xpose.msra.mxu0 %v2319
      %2328 = vmatpush.bf16.xpose.msra.mxu0 %v2316
      %2329 = vmatmul.bf16.gmra.mxu0 %v2310
      %v2330 = vpop.f32.mrf.mxu0
      %v2331 = vadd.f32 0.0, %v2330
      %v2332 = vpop.f32.mrf.mxu0
      %v2333 = vadd.f32 0.0, %v2332
      %2334 = vmatmul.bf16.gmra.mxu0 %v2313
      %v2335 = vpop.f32.mrf.mxu0
      %v2336 = vadd.f32 0.0, %v2335
      %v2337 = vpop.f32.mrf.mxu0
      %v2338 = vadd.f32 0.0, %v2337
      %2339 = vdwg.mxu0
      %v2340 = vsel %vm270, %v2331, -inf
      %2341 = vmax.xlane.f32.xlu0 %v2340
      %v2342 = vpop.xlane.xlu0 %2341
      %v2343 = vsel %vm270, %v2333, -inf
      %2344 = vmax.xlane.f32.xlu0 %v2343
      %v2345 = vpop.xlane.xlu0 %2344
      %v2346 = vsel %vm270, %v2336, -inf
      %2347 = vmax.xlane.f32.xlu0 %v2346
      %v2348 = vpop.xlane.xlu0 %2347
      %v2349 = vsel %vm1419, %v2338, -inf
      %2350 = vmax.xlane.f32.xlu0 %v2349
      %v2351 = vpop.xlane.xlu0 %2350
      %v2352 = vsub.f32 %v2331, %v2342
      %v2353 = vsub.f32 %v2333, %v2345
      %v2354 = vsub.f32 %v2336, %v2348
      %v2355 = vsub.f32 %v2338, %v2351
      %v2356 = vmul.f32 %v2352, 1.442695
      %v2357 = vpow.pop %v2356
      %v2358 = vmul.f32 %v2353, 1.442695
      %v2359 = vpow.pop %v2358
      %v2360 = vmul.f32 %v2354, 1.442695
      %v2361 = vpow.pop %v2360
      %v2362 = vmul.f32 %v2355, 1.442695
      %v2363 = vpow.pop %v2362
      %v2364 = vsel %vm270, %v2357, 0.0
      %2365 = vadd.xlane.f32.xlu0 %v2364
      %v2366 = vpop.xlane.xlu0 %2365
      %v2367 = vsel %vm270, %v2359, 0.0
      %2368 = vadd.xlane.f32.xlu0 %v2367
      %v2369 = vpop.xlane.xlu0 %2368
      %v2370 = vsel %vm270, %v2361, 0.0
      %2371 = vadd.xlane.f32.xlu0 %v2370
      %v2372 = vpop.xlane.xlu0 %2371
      %v2373 = vsel %vm1419, %v2363, 0.0
      %2374 = vadd.xlane.f32.xlu0 %v2373
      %v2375 = vpop.xlane.xlu0 %2374
      %v2376 = vrcp.pop %v2366
      %v2377 = vrcp.pop %v2369
      %v2378 = vrcp.pop %v2372
      %v2379 = vrcp.pop %v2375
      %v2380 = vmul.f32 %v2357, %v2376
      %v2381 = vmul.f32 %v2359, %v2377
      %v2382 = vmul.f32 %v2361, %v2378
      %v2383 = vmul.f32 %v2363, %v2379
      %v2384 = vpack.c.bf16 %v2381, %v2380
      %v2385 = vpack.c.bf16 %v2383, %v2382
      %2386 = vrot.lane.b32.xlu0 %v1465, 32
      %v2387 = vpop.permute.xlu0 %2386
      %2388 = vrot.lane.b32.xlu0 %v1466, 32
      %v2389 = vpop.permute.xlu0 %2388
      %v2392 = vsel %vm270, %v2384, 0
      %v2395 = vsel %vm270, %v2385, 0
      %v2398 = vsel %vm1474, %v2389, 0
      %2400 = vmatpush.bf16.msra.mxu0 0
      %2401 = vmatpush.bf16.msra.mxu0 0
      %2402 = vmatpush.bf16.msra.mxu0 0
      %2403 = vmatpush.bf16.msra.mxu0 0
      %2404 = vmatpush.bf16.msra.mxu0 0
      %2405 = vmatpush.bf16.msra.mxu0 0
      %2406 = vmatpush.bf16.msra.mxu0 %v2398
      %2407 = vmatpush.bf16.msra.mxu0 %v2387
      %2408 = vmatmul.bf16.gmra.mxu0 %v2392
      %v2409 = vpop.f32.mrf.mxu0
      %v2410 = vadd.f32 0.0, %v2409
      %v2411 = vpop.f32.mrf.mxu0
      %v2412 = vadd.f32 0.0, %v2411
      %2413 = vmatmul.bf16.gmra.mxu0 %v2395
      %v2414 = vpop.f32.mrf.mxu0
      %v2415 = vadd.f32 0.0, %v2414
      %v2416 = vpop.f32.mrf.mxu0
      %v2417 = vadd.f32 0.0, %v2416
      %2418 = vdwg.mxu0
      %v2419 = vpack.c.bf16 %v2412, %v2410
      %v2420 = vpack.c.bf16 %v2417, %v2415
      %v2423 = vunpack.c.l.b16 %v1091
      %v2424 = vunpack.c.l.b16 %v1092
      %v2425 = vpack.c.b16 %v2424, %v2423
      %v2428 = vsel %vm1378, %v2419, 0
      %v2431 = vsel %vm1378, %v2420, 0
      %2433 = vmatpush.bf16.msra.mxu0 0
      %2434 = vmatpush.bf16.msra.mxu0 0
      %2435 = vmatpush.bf16.msra.mxu0 0
      %2436 = vmatpush.bf16.msra.mxu0 0
      %2437 = vmatpush.bf16.msra.mxu0 0
      %2438 = vmatpush.bf16.msra.mxu0 0
      %2439 = vmatpush.bf16.msra.mxu0 0
      %2440 = vmatpush.bf16.msra.mxu0 %v2425
      %2441 = vmatmul.bf16.gmra.mxu0 %v2428
      %v2442 = vpop.f32.mrf.mxu0
      %v2443 = vadd.f32 0.0, %v2442
      %v2444 = vpop.f32.mrf.mxu0
      %v2445 = vadd.f32 0.0, %v2444
      %2446 = vmatmul.bf16.gmra.mxu0 %v2431
      %v2447 = vpop.f32.mrf.mxu0
      %v2448 = vadd.f32 0.0, %v2447
      %v2449 = vpop.f32.mrf.mxu0
      %v2450 = vadd.f32 0.0, %v2449
      %2451 = vdwg.mxu0
      %v2452 = vadd.f32 %v2297, %v2443
      %v2453 = vadd.f32 %v2298, %v2445
      %v2454 = vadd.f32 %v2299, %v2448
      %v2455 = vadd.f32 %v2300, %v2450
      %2456 = vrot.lane.b32.xlu0 %v1366, 16
      %v2457 = vpop.permute.xlu0 %2456
      %2458 = vrot.lane.b32.xlu0 %v1367, 16
      %v2459 = vpop.permute.xlu0 %2458
      %2460 = vrot.lane.b32.xlu0 %v1376, 16
      %v2461 = vpop.permute.xlu0 %2460
      %2462 = vrot.lane.b32.xlu0 %v1377, 16
      %v2463 = vpop.permute.xlu0 %2462
      %v2465 = vsel %vm1378, %v2457, 0
      %v2468 = vsel %vm1378, %v2459, 0
      %v2471 = vsel %vm1378, %v2461, 0
      %v2474 = vsel %vm1378, %v2463, 0
      %2476 = vmatpush.bf16.xpose.msra.mxu0 0
      %2477 = vmatpush.bf16.xpose.msra.mxu0 0
      %2478 = vmatpush.bf16.xpose.msra.mxu0 0
      %2479 = vmatpush.bf16.xpose.msra.mxu0 0
      %2480 = vmatpush.bf16.xpose.msra.mxu0 0
      %2481 = vmatpush.bf16.xpose.msra.mxu0 0
      %2482 = vmatpush.bf16.xpose.msra.mxu0 %v2474
      %2483 = vmatpush.bf16.xpose.msra.mxu0 %v2471
      %2484 = vmatmul.bf16.gmra.mxu0 %v2465
      %v2485 = vpop.f32.mrf.mxu0
      %v2486 = vadd.f32 0.0, %v2485
      %v2487 = vpop.f32.mrf.mxu0
      %v2488 = vadd.f32 0.0, %v2487
      %2489 = vmatmul.bf16.gmra.mxu0 %v2468
      %v2490 = vpop.f32.mrf.mxu0
      %v2491 = vadd.f32 0.0, %v2490
      %v2492 = vpop.f32.mrf.mxu0
      %v2493 = vadd.f32 0.0, %v2492
      %2494 = vdwg.mxu0
      %v2495 = vsel %vm270, %v2486, -inf
      %2496 = vmax.xlane.f32.xlu0 %v2495
      %v2497 = vpop.xlane.xlu0 %2496
      %v2498 = vsel %vm270, %v2488, -inf
      %2499 = vmax.xlane.f32.xlu0 %v2498
      %v2500 = vpop.xlane.xlu0 %2499
      %v2501 = vsel %vm270, %v2491, -inf
      %2502 = vmax.xlane.f32.xlu0 %v2501
      %v2503 = vpop.xlane.xlu0 %2502
      %v2504 = vsel %vm1419, %v2493, -inf
      %2505 = vmax.xlane.f32.xlu0 %v2504
      %v2506 = vpop.xlane.xlu0 %2505
      %v2507 = vsub.f32 %v2486, %v2497
      %v2508 = vsub.f32 %v2488, %v2500
      %v2509 = vsub.f32 %v2491, %v2503
      %v2510 = vsub.f32 %v2493, %v2506
      %v2511 = vmul.f32 %v2507, 1.442695
      %v2512 = vpow.pop %v2511
      %v2513 = vmul.f32 %v2508, 1.442695
      %v2514 = vpow.pop %v2513
      %v2515 = vmul.f32 %v2509, 1.442695
      %v2516 = vpow.pop %v2515
      %v2517 = vmul.f32 %v2510, 1.442695
      %v2518 = vpow.pop %v2517
      %v2519 = vsel %vm270, %v2512, 0.0
      %2520 = vadd.xlane.f32.xlu0 %v2519
      %v2521 = vpop.xlane.xlu0 %2520
      %v2522 = vsel %vm270, %v2514, 0.0
      %2523 = vadd.xlane.f32.xlu0 %v2522
      %v2524 = vpop.xlane.xlu0 %2523
      %v2525 = vsel %vm270, %v2516, 0.0
      %2526 = vadd.xlane.f32.xlu0 %v2525
      %v2527 = vpop.xlane.xlu0 %2526
      %v2528 = vsel %vm1419, %v2518, 0.0
      %2529 = vadd.xlane.f32.xlu0 %v2528
      %v2530 = vpop.xlane.xlu0 %2529
      %v2531 = vrcp.pop %v2521
      %v2532 = vrcp.pop %v2524
      %v2533 = vrcp.pop %v2527
      %v2534 = vrcp.pop %v2530
      %v2535 = vmul.f32 %v2512, %v2531
      %v2536 = vmul.f32 %v2514, %v2532
      %v2537 = vmul.f32 %v2516, %v2533
      %v2538 = vmul.f32 %v2518, %v2534
      %v2539 = vpack.c.bf16 %v2536, %v2535
      %v2540 = vpack.c.bf16 %v2538, %v2537
      %2541 = vrot.lane.b32.xlu0 %v1465, 16
      %v2542 = vpop.permute.xlu0 %2541
      %2543 = vrot.lane.b32.xlu0 %v1466, 16
      %v2544 = vpop.permute.xlu0 %2543
      %v2547 = vsel %vm270, %v2539, 0
      %v2550 = vsel %vm270, %v2540, 0
      %v2553 = vsel %vm1474, %v2544, 0
      %2555 = vmatpush.bf16.msra.mxu0 0
      %2556 = vmatpush.bf16.msra.mxu0 0
      %2557 = vmatpush.bf16.msra.mxu0 0
      %2558 = vmatpush.bf16.msra.mxu0 0
      %2559 = vmatpush.bf16.msra.mxu0 0
      %2560 = vmatpush.bf16.msra.mxu0 0
      %2561 = vmatpush.bf16.msra.mxu0 %v2553
      %2562 = vmatpush.bf16.msra.mxu0 %v2542
      %2563 = vmatmul.bf16.gmra.mxu0 %v2547
      %v2564 = vpop.f32.mrf.mxu0
      %v2565 = vadd.f32 0.0, %v2564
      %v2566 = vpop.f32.mrf.mxu0
      %v2567 = vadd.f32 0.0, %v2566
      %2568 = vmatmul.bf16.gmra.mxu0 %v2550
      %v2569 = vpop.f32.mrf.mxu0
      %v2570 = vadd.f32 0.0, %v2569
      %v2571 = vpop.f32.mrf.mxu0
      %v2572 = vadd.f32 0.0, %v2571
      %2573 = vdwg.mxu0
      %v2574 = vpack.c.bf16 %v2567, %v2565
      %v2575 = vpack.c.bf16 %v2572, %v2570
      %v2578 = vunpack.c.l.b16 %v1093
      %v2579 = vunpack.c.l.b16 %v1094
      %v2580 = vpack.c.b16 %v2579, %v2578
      %v2583 = vsel %vm1378, %v2574, 0
      %v2586 = vsel %vm1378, %v2575, 0
      %2588 = vmatpush.bf16.msra.mxu0 0
      %2589 = vmatpush.bf16.msra.mxu0 0
      %2590 = vmatpush.bf16.msra.mxu0 0
      %2591 = vmatpush.bf16.msra.mxu0 0
      %2592 = vmatpush.bf16.msra.mxu0 0
      %2593 = vmatpush.bf16.msra.mxu0 0
      %2594 = vmatpush.bf16.msra.mxu0 0
      %2595 = vmatpush.bf16.msra.mxu0 %v2580
      %2596 = vmatmul.bf16.gmra.mxu0 %v2583
      %v2597 = vpop.f32.mrf.mxu0
      %v2598 = vadd.f32 0.0, %v2597
      %v2599 = vpop.f32.mrf.mxu0
      %v2600 = vadd.f32 0.0, %v2599
      %2601 = vmatmul.bf16.gmra.mxu0 %v2586
      %v2602 = vpop.f32.mrf.mxu0
      %v2603 = vadd.f32 0.0, %v2602
      %v2604 = vpop.f32.mrf.mxu0
      %v2605 = vadd.f32 0.0, %v2604
      %2606 = vdwg.mxu0
      %v2607 = vadd.f32 %v2452, %v2598
      %v2608 = vadd.f32 %v2453, %v2600
      %v2609 = vadd.f32 %v2454, %v2603
      %v2610 = vadd.f32 %v2455, %v2605
      %v2611 = vadd.f32 %v2607, %v1144
      %v2612 = vadd.f32 %v2608, %v1144
      %v2613 = vadd.f32 %v2609, %v1144
      %v2614 = vadd.f32 %v2610, %v1144
      %v2615 = vadd.f32 %v1043, %v2611
      %v2616 = vadd.f32 %v1044, %v2612
      %v2617 = vadd.f32 %v1045, %v2613
      %v2618 = vadd.f32 %v1046, %v2614
      %2619 = vadd.xlane.f32.xlu0 %v2615
      %v2620 = vpop.xlane.xlu0 %2619
      %2621 = vadd.xlane.f32.xlu0 %v2616
      %v2622 = vpop.xlane.xlu0 %2621
      %2623 = vadd.xlane.f32.xlu0 %v2617
      %v2624 = vpop.xlane.xlu0 %2623
      %v2625 = vsel %vm283, %v2618, 0.0
      %2626 = vadd.xlane.f32.xlu0 %v2625
      %v2627 = vpop.xlane.xlu0 %2626
      %v2628 = vrcp.pop 128.0
      %v2629 = vmul.f32 128.0, %v2628
      %v2630 = vsub.f32 1.0, %v2629
      %v2631 = vmul.f32 %v2628, %v2630
      %v2632 = vadd.f32 %v2628, %v2631
      %vm2633 = vweird.f32 %v2628
      %v2634 = vsel %vm2633, %v2628, %v2632
      %v2635 = vmul.f32 %v2620, %v2634
      %v2636 = vmul.f32 %v2622, %v2634
      %v2637 = vmul.f32 %v2624, %v2634
      %v2638 = vmul.f32 %v2627, %v2634
      %v2639 = vsub.f32 %v2615, %v2635
      %v2640 = vsub.f32 %v2616, %v2636
      %v2641 = vsub.f32 %v2617, %v2637
      %v2642 = vsub.f32 %v2618, %v2638
      %v2643 = vmul.f32 %v2639, %v2639
      %v2644 = vmul.f32 %v2640, %v2640
      %v2645 = vmul.f32 %v2641, %v2641
      %v2646 = vmul.f32 %v2642, %v2642
      %2647 = vadd.xlane.f32.xlu0 %v2643
      %v2648 = vpop.xlane.xlu0 %2647
      %2649 = vadd.xlane.f32.xlu0 %v2644
      %v2650 = vpop.xlane.xlu0 %2649
      %2651 = vadd.xlane.f32.xlu0 %v2645
      %v2652 = vpop.xlane.xlu0 %2651
      %v2653 = vsel %vm283, %v2646, 0.0
      %2654 = vadd.xlane.f32.xlu0 %v2653
      %v2655 = vpop.xlane.xlu0 %2654
      %v2656 = vmul.f32 %v2648, %v2634
      %v2657 = vmul.f32 %v2650, %v2634
      %v2658 = vmul.f32 %v2652, %v2634
      %v2659 = vmul.f32 %v2655, %v2634
      %v2660 = vadd.f32 %v2656, 1e-05
      %v2661 = vadd.f32 %v2657, 1e-05
      %v2662 = vadd.f32 %v2658, 1e-05
      %v2663 = vadd.f32 %v2659, 1e-05
      %v2664 = vrsqrt.pop %v2660
      %v2665 = vmul.f32 %v2664, %v2660
      %v2666 = vmul.f32 %v2665, %v2664
      %v2667 = vmul.f32 0.5, %v2666
      %v2668 = vsub.f32 1.5, %v2667
      %v2669 = vmul.f32 %v2664, %v2668
      %vm2670 = vweird.f32 %v2660
      %vm2671 = vweird.f32 %v2664
      %vm2672 = vmor %vm2670, %vm2671
      %v2673 = vsel %vm2672, %v2664, %v2669
      %v2674 = vrsqrt.pop %v2661
      %v2675 = vmul.f32 %v2674, %v2661
      %v2676 = vmul.f32 %v2675, %v2674
      %v2677 = vmul.f32 0.5, %v2676
      %v2678 = vsub.f32 1.5, %v2677
      %v2679 = vmul.f32 %v2674, %v2678
      %vm2680 = vweird.f32 %v2661
      %vm2681 = vweird.f32 %v2674
      %vm2682 = vmor %vm2680, %vm2681
      %v2683 = vsel %vm2682, %v2674, %v2679
      %v2684 = vrsqrt.pop %v2662
      %v2685 = vmul.f32 %v2684, %v2662
      %v2686 = vmul.f32 %v2685, %v2684
      %v2687 = vmul.f32 0.5, %v2686
      %v2688 = vsub.f32 1.5, %v2687
      %v2689 = vmul.f32 %v2684, %v2688
      %vm2690 = vweird.f32 %v2662
      %vm2691 = vweird.f32 %v2684
      %vm2692 = vmor %vm2690, %vm2691
      %v2693 = vsel %vm2692, %v2684, %v2689
      %v2694 = vrsqrt.pop %v2663
      %v2695 = vmul.f32 %v2694, %v2663
      %v2696 = vmul.f32 %v2695, %v2694
      %v2697 = vmul.f32 0.5, %v2696
      %v2698 = vsub.f32 1.5, %v2697
      %v2699 = vmul.f32 %v2694, %v2698
      %vm2700 = vweird.f32 %v2663
      %vm2701 = vweird.f32 %v2694
      %vm2702 = vmor %vm2700, %vm2701
      %v2703 = vsel %vm2702, %v2694, %v2699
      %v2704 = vmul.f32 %v2639, %v2673
      %v2705 = vmul.f32 %v2640, %v2683
      %v2706 = vmul.f32 %v2641, %v2693
      %v2707 = vmul.f32 %v2642, %v2703
      %v2708 = vmul.f32 %v2704, %v1145
      %v2709 = vmul.f32 %v2705, %v1145
      %v2710 = vmul.f32 %v2706, %v1145
      %v2711 = vmul.f32 %v2707, %v1145
      %v2712 = vadd.f32 %v2708, %v1146
      %v2713 = vadd.f32 %v2709, %v1146
      %v2714 = vadd.f32 %v2710, %v1146
      %v2715 = vadd.f32 %v2711, %v1146
      %v2716 = vpack.c.bf16 %v2713, %v2712
      %v2717 = vpack.c.bf16 %v2715, %v2714
      %v2719 = vperm.slane %v1148, 0
      %v2720 = vperm.slane %v1148, 1
      %v2739 = vunpack.c.l.b16 %v1095
      %v2740 = vunpack.c.h.b16 %v1095
      %v2741 = vunpack.c.l.b16 %v1096
      %v2742 = vunpack.c.h.b16 %v1096
      %v2743 = vunpack.c.l.b16 %v1097
      %v2744 = vunpack.c.h.b16 %v1097
      %v2745 = vunpack.c.l.b16 %v1098
      %v2746 = vunpack.c.h.b16 %v1098
      %v2747 = vunpack.c.l.b16 %v1099
      %v2748 = vunpack.c.h.b16 %v1099
      %v2749 = vunpack.c.l.b16 %v1100
      %v2750 = vunpack.c.h.b16 %v1100
      %v2751 = vunpack.c.l.b16 %v1101
      %v2752 = vunpack.c.h.b16 %v1101
      %v2753 = vunpack.c.l.b16 %v1102
      %v2754 = vunpack.c.h.b16 %v1102
      %v2755 = vunpack.c.l.b16 %v1103
      %v2756 = vunpack.c.h.b16 %v1103
      %v2757 = vunpack.c.l.b16 %v1104
      %v2758 = vunpack.c.h.b16 %v1104
      %v2759 = vunpack.c.l.b16 %v1105
      %v2760 = vunpack.c.h.b16 %v1105
      %v2761 = vunpack.c.l.b16 %v1106
      %v2762 = vunpack.c.h.b16 %v1106
      %v2763 = vunpack.c.l.b16 %v1107
      %v2764 = vunpack.c.h.b16 %v1107
      %v2765 = vunpack.c.l.b16 %v1108
      %v2766 = vunpack.c.h.b16 %v1108
      %v2767 = vunpack.c.l.b16 %v1109
      %v2768 = vunpack.c.h.b16 %v1109
      %v2769 = vunpack.c.l.b16 %v1110
      %v2770 = vunpack.c.h.b16 %v1110
      %v2771 = vpack.c.b16 %v2741, %v2739
      %v2772 = vpack.c.b16 %v2742, %v2740
      %v2773 = vpack.c.b16 %v2745, %v2743
      %v2774 = vpack.c.b16 %v2746, %v2744
      %v2775 = vpack.c.b16 %v2749, %v2747
      %v2776 = vpack.c.b16 %v2750, %v2748
      %v2777 = vpack.c.b16 %v2753, %v2751
      %v2778 = vpack.c.b16 %v2754, %v2752
      %v2779 = vpack.c.b16 %v2757, %v2755
      %v2780 = vpack.c.b16 %v2758, %v2756
      %v2781 = vpack.c.b16 %v2761, %v2759
      %v2782 = vpack.c.b16 %v2762, %v2760
      %v2783 = vpack.c.b16 %v2765, %v2763
      %v2784 = vpack.c.b16 %v2766, %v2764
      %v2785 = vpack.c.b16 %v2769, %v2767
      %v2786 = vpack.c.b16 %v2770, %v2768
      %2803 = vmatpush.bf16.msra.mxu0 %v2785
      %2804 = vmatpush.bf16.msra.mxu0 %v2783
      %2805 = vmatpush.bf16.msra.mxu0 %v2781
      %2806 = vmatpush.bf16.msra.mxu0 %v2779
      %2807 = vmatpush.bf16.msra.mxu0 %v2777
      %2808 = vmatpush.bf16.msra.mxu0 %v2775
      %2809 = vmatpush.bf16.msra.mxu0 %v2773
      %2810 = vmatpush.bf16.msra.mxu0 %v2771
      %2811 = vmatmul.bf16.gmra.mxu0 %v2716
      %v2812 = vpop.f32.mrf.mxu0
      %v2813 = vadd.f32 %v2719, %v2812
      %v2814 = vpop.f32.mrf.mxu0
      %v2815 = vadd.f32 %v2719, %v2814
      %2816 = vmatmul.bf16.gmra.mxu0 %v2717
      %v2817 = vpop.f32.mrf.mxu0
      %v2818 = vadd.f32 %v2719, %v2817
      %v2819 = vpop.f32.mrf.mxu0
      %v2820 = vadd.f32 %v2719, %v2819
      %2821 = vdwg.mxu0
      %2822 = vmatpush.bf16.msra.mxu0 %v2786
      %2823 = vmatpush.bf16.msra.mxu0 %v2784
      %2824 = vmatpush.bf16.msra.mxu0 %v2782
      %2825 = vmatpush.bf16.msra.mxu0 %v2780
      %2826 = vmatpush.bf16.msra.mxu0 %v2778
      %2827 = vmatpush.bf16.msra.mxu0 %v2776
      %2828 = vmatpush.bf16.msra.mxu0 %v2774
      %2829 = vmatpush.bf16.msra.mxu0 %v2772
      %2830 = vmatmul.bf16.gmra.mxu0 %v2716
      %v2831 = vpop.f32.mrf.mxu0
      %v2832 = vadd.f32 %v2720, %v2831
      %v2833 = vpop.f32.mrf.mxu0
      %v2834 = vadd.f32 %v2720, %v2833
      %2835 = vmatmul.bf16.gmra.mxu0 %v2717
      %v2836 = vpop.f32.mrf.mxu0
      %v2837 = vadd.f32 %v2720, %v2836
      %v2838 = vpop.f32.mrf.mxu0
      %v2839 = vadd.f32 %v2720, %v2838
      %2840 = vdwg.mxu0
      %v2841 = vmul.f32 %v2813, 0.5
      %v2842 = vmul.f32 %v2832, 0.5
      %v2843 = vmul.f32 %v2815, 0.5
      %v2844 = vmul.f32 %v2834, 0.5
      %v2845 = vmul.f32 %v2818, 0.5
      %v2846 = vmul.f32 %v2837, 0.5
      %v2847 = vmul.f32 %v2820, 0.5
      %v2848 = vmul.f32 %v2839, 0.5
      %v2849 = vmul.f32 %v2813, 0.044715
      %v2850 = vmul.f32 %v2832, 0.044715
      %v2851 = vmul.f32 %v2815, 0.044715
      %v2852 = vmul.f32 %v2834, 0.044715
      %v2853 = vmul.f32 %v2818, 0.044715
      %v2854 = vmul.f32 %v2837, 0.044715
      %v2855 = vmul.f32 %v2820, 0.044715
      %v2856 = vmul.f32 %v2839, 0.044715
      %v2857 = vmul.f32 %v2849, %v2813
      %v2858 = vmul.f32 %v2850, %v2832
      %v2859 = vmul.f32 %v2851, %v2815
      %v2860 = vmul.f32 %v2852, %v2834
      %v2861 = vmul.f32 %v2853, %v2818
      %v2862 = vmul.f32 %v2854, %v2837
      %v2863 = vmul.f32 %v2855, %v2820
      %v2864 = vmul.f32 %v2856, %v2839
      %v2865 = vmul.f32 %v2857, %v2813
      %v2866 = vmul.f32 %v2858, %v2832
      %v2867 = vmul.f32 %v2859, %v2815
      %v2868 = vmul.f32 %v2860, %v2834
      %v2869 = vmul.f32 %v2861, %v2818
      %v2870 = vmul.f32 %v2862, %v2837
      %v2871 = vmul.f32 %v2863, %v2820
      %v2872 = vmul.f32 %v2864, %v2839
      %v2873 = vadd.f32 %v2813, %v2865
      %v2874 = vadd.f32 %v2832, %v2866
      %v2875 = vadd.f32 %v2815, %v2867
      %v2876 = vadd.f32 %v2834, %v2868
      %v2877 = vadd.f32 %v2818, %v2869
      %v2878 = vadd.f32 %v2837, %v2870
      %v2879 = vadd.f32 %v2820, %v2871
      %v2880 = vadd.f32 %v2839, %v2872
      %v2881 = vmul.f32 %v2873, 0.7978846
      %v2882 = vmul.f32 %v2874, 0.7978846
      %v2883 = vmul.f32 %v2875, 0.7978846
      %v2884 = vmul.f32 %v2876, 0.7978846
      %v2885 = vmul.f32 %v2877, 0.7978846
      %v2886 = vmul.f32 %v2878, 0.7978846
      %v2887 = vmul.f32 %v2879, 0.7978846
      %v2888 = vmul.f32 %v2880, 0.7978846
      %v2889 = vtanh.pop %v2881
      %v2890 = vtanh.pop %v2882
      %v2891 = vtanh.pop %v2883
      %v2892 = vtanh.pop %v2884
      %v2893 = vtanh.pop %v2885
      %v2894 = vtanh.pop %v2886
      %v2895 = vtanh.pop %v2887
      %v2896 = vtanh.pop %v2888
      %v2897 = vadd.f32 %v2889, 1.0
      %v2898 = vadd.f32 %v2890, 1.0
      %v2899 = vadd.f32 %v2891, 1.0
      %v2900 = vadd.f32 %v2892, 1.0
      %v2901 = vadd.f32 %v2893, 1.0
      %v2902 = vadd.f32 %v2894, 1.0
      %v2903 = vadd.f32 %v2895, 1.0
      %v2904 = vadd.f32 %v2896, 1.0
      %v2905 = vmul.f32 %v2841, %v2897
      %v2906 = vmul.f32 %v2842, %v2898
      %v2907 = vmul.f32 %v2843, %v2899
      %v2908 = vmul.f32 %v2844, %v2900
      %v2909 = vmul.f32 %v2845, %v2901
      %v2910 = vmul.f32 %v2846, %v2902
      %v2911 = vmul.f32 %v2847, %v2903
      %v2912 = vmul.f32 %v2848, %v2904
      %v2913 = vpack.c.bf16 %v2907, %v2905
      %v2914 = vpack.c.bf16 %v2908, %v2906
      %v2915 = vpack.c.bf16 %v2911, %v2909
      %v2916 = vpack.c.bf16 %v2912, %v2910
      %v2949 = vunpack.c.l.b16 %v1111
      %v2950 = vunpack.c.l.b16 %v1112
      %v2951 = vunpack.c.l.b16 %v1113
      %v2952 = vunpack.c.l.b16 %v1114
      %v2953 = vunpack.c.l.b16 %v1115
      %v2954 = vunpack.c.l.b16 %v1116
      %v2955 = vunpack.c.l.b16 %v1117
      %v2956 = vunpack.c.l.b16 %v1118
      %v2957 = vunpack.c.l.b16 %v1119
      %v2958 = vunpack.c.l.b16 %v1120
      %v2959 = vunpack.c.l.b16 %v1121
      %v2960 = vunpack.c.l.b16 %v1122
      %v2961 = vunpack.c.l.b16 %v1123
      %v2962 = vunpack.c.l.b16 %v1124
      %v2963 = vunpack.c.l.b16 %v1125
      %v2964 = vunpack.c.l.b16 %v1126
      %v2965 = vunpack.c.l.b16 %v1127
      %v2966 = vunpack.c.l.b16 %v1128
      %v2967 = vunpack.c.l.b16 %v1129
      %v2968 = vunpack.c.l.b16 %v1130
      %v2969 = vunpack.c.l.b16 %v1131
      %v2970 = vunpack.c.l.b16 %v1132
      %v2971 = vunpack.c.l.b16 %v1133
      %v2972 = vunpack.c.l.b16 %v1134
      %v2973 = vunpack.c.l.b16 %v1135
      %v2974 = vunpack.c.l.b16 %v1136
      %v2975 = vunpack.c.l.b16 %v1137
      %v2976 = vunpack.c.l.b16 %v1138
      %v2977 = vunpack.c.l.b16 %v1139
      %v2978 = vunpack.c.l.b16 %v1140
      %v2979 = vunpack.c.l.b16 %v1141
      %v2980 = vunpack.c.l.b16 %v1142
      %v2981 = vpack.c.b16 %v2950, %v2949
      %v2982 = vpack.c.b16 %v2952, %v2951
      %v2983 = vpack.c.b16 %v2954, %v2953
      %v2984 = vpack.c.b16 %v2956, %v2955
      %v2985 = vpack.c.b16 %v2958, %v2957
      %v2986 = vpack.c.b16 %v2960, %v2959
      %v2987 = vpack.c.b16 %v2962, %v2961
      %v2988 = vpack.c.b16 %v2964, %v2963
      %v2989 = vpack.c.b16 %v2966, %v2965
      %v2990 = vpack.c.b16 %v2968, %v2967
      %v2991 = vpack.c.b16 %v2970, %v2969
      %v2992 = vpack.c.b16 %v2972, %v2971
      %v2993 = vpack.c.b16 %v2974, %v2973
      %v2994 = vpack.c.b16 %v2976, %v2975
      %v2995 = vpack.c.b16 %v2978, %v2977
      %v2996 = vpack.c.b16 %v2980, %v2979
      %3013 = vmatpush.bf16.msra.mxu0 %v2988
      %3014 = vmatpush.bf16.msra.mxu0 %v2987
      %3015 = vmatpush.bf16.msra.mxu0 %v2986
      %3016 = vmatpush.bf16.msra.mxu0 %v2985
      %3017 = vmatpush.bf16.msra.mxu0 %v2984
      %3018 = vmatpush.bf16.msra.mxu0 %v2983
      %3019 = vmatpush.bf16.msra.mxu0 %v2982
      %3020 = vmatpush.bf16.msra.mxu0 %v2981
      %3021 = vmatmul.bf16.gmra.mxu0 %v2913
      %v3022 = vpop.f32.mrf.mxu0
      %v3023 = vadd.f32 %v1149, %v3022
      %v3024 = vpop.f32.mrf.mxu0
      %v3025 = vadd.f32 %v1149, %v3024
      %3026 = vmatmul.bf16.gmra.mxu0 %v2915
      %v3027 = vpop.f32.mrf.mxu0
      %v3028 = vadd.f32 %v1149, %v3027
      %v3029 = vpop.f32.mrf.mxu0
      %v3030 = vadd.f32 %v1149, %v3029
      %3031 = vdwg.mxu0
      %3032 = vmatpush.bf16.msra.mxu0 %v2996
      %3033 = vmatpush.bf16.msra.mxu0 %v2995
      %3034 = vmatpush.bf16.msra.mxu0 %v2994
      %3035 = vmatpush.bf16.msra.mxu0 %v2993
      %3036 = vmatpush.bf16.msra.mxu0 %v2992
      %3037 = vmatpush.bf16.msra.mxu0 %v2991
      %3038 = vmatpush.bf16.msra.mxu0 %v2990
      %3039 = vmatpush.bf16.msra.mxu0 %v2989
      %3040 = vmatmul.bf16.gmra.mxu0 %v2914
      %v3041 = vpop.f32.mrf.mxu0
      %v3042 = vadd.f32 %v3023, %v3041
      %v3043 = vpop.f32.mrf.mxu0
      %v3044 = vadd.f32 %v3025, %v3043
      %3045 = vmatmul.bf16.gmra.mxu0 %v2916
      %v3046 = vpop.f32.mrf.mxu0
      %v3047 = vadd.f32 %v3028, %v3046
      %v3048 = vpop.f32.mrf.mxu0
      %v3049 = vadd.f32 %v3030, %v3048
      %3050 = vdwg.mxu0
      %v3051 = vadd.f32 %v2712, %v3042
      %v3052 = vadd.f32 %v2713, %v3044
      %v3053 = vadd.f32 %v2714, %v3047
      %v3054 = vadd.f32 %v2715, %v3049
      %3055 = vadd.xlane.f32.xlu0 %v3051
      %v3056 = vpop.xlane.xlu0 %3055
      %3057 = vadd.xlane.f32.xlu0 %v3052
      %v3058 = vpop.xlane.xlu0 %3057
      %3059 = vadd.xlane.f32.xlu0 %v3053
      %v3060 = vpop.xlane.xlu0 %3059
      %v3061 = vsel %vm283, %v3054, 0.0
      %3062 = vadd.xlane.f32.xlu0 %v3061
      %v3063 = vpop.xlane.xlu0 %3062
      %v3064 = vmul.f32 %v3056, %v2634
      %v3065 = vmul.f32 %v3058, %v2634
      %v3066 = vmul.f32 %v3060, %v2634
      %v3067 = vmul.f32 %v3063, %v2634
      %v3068 = vsub.f32 %v3051, %v3064
      %v3069 = vsub.f32 %v3052, %v3065
      %v3070 = vsub.f32 %v3053, %v3066
      %v3071 = vsub.f32 %v3054, %v3067
      %v3072 = vmul.f32 %v3068, %v3068
      %v3073 = vmul.f32 %v3069, %v3069
      %v3074 = vmul.f32 %v3070, %v3070
      %v3075 = vmul.f32 %v3071, %v3071
      %3076 = vadd.xlane.f32.xlu0 %v3072
      %v3077 = vpop.xlane.xlu0 %3076
      %3078 = vadd.xlane.f32.xlu0 %v3073
      %v3079 = vpop.xlane.xlu0 %3078
      %3080 = vadd.xlane.f32.xlu0 %v3074
      %v3081 = vpop.xlane.xlu0 %3080
      %v3082 = vsel %vm283, %v3075, 0.0
      %3083 = vadd.xlane.f32.xlu0 %v3082
      %v3084 = vpop.xlane.xlu0 %3083
      %v3085 = vmul.f32 %v3077, %v2634
      %v3086 = vmul.f32 %v3079, %v2634
      %v3087 = vmul.f32 %v3081, %v2634
      %v3088 = vmul.f32 %v3084, %v2634
      %v3089 = vadd.f32 %v3085, 1e-05
      %v3090 = vadd.f32 %v3086, 1e-05
      %v3091 = vadd.f32 %v3087, 1e-05
      %v3092 = vadd.f32 %v3088, 1e-05
      %v3093 = vrsqrt.pop %v3089
      %v3094 = vmul.f32 %v3093, %v3089
      %v3095 = vmul.f32 %v3094, %v3093
      %v3096 = vmul.f32 0.5, %v3095
      %v3097 = vsub.f32 1.5, %v3096
      %v3098 = vmul.f32 %v3093, %v3097
      %vm3099 = vweird.f32 %v3089
      %vm3100 = vweird.f32 %v3093
      %vm3101 = vmor %vm3099, %vm3100
      %v3102 = vsel %vm3101, %v3093, %v3098
      %v3103 = vrsqrt.pop %v3090
      %v3104 = vmul.f32 %v3103, %v3090
      %v3105 = vmul.f32 %v3104, %v3103
      %v3106 = vmul.f32 0.5, %v3105
      %v3107 = vsub.f32 1.5, %v3106
      %v3108 = vmul.f32 %v3103, %v3107
      %vm3109 = vweird.f32 %v3090
      %vm3110 = vweird.f32 %v3103
      %vm3111 = vmor %vm3109, %vm3110
      %v3112 = vsel %vm3111, %v3103, %v3108
      %v3113 = vrsqrt.pop %v3091
      %v3114 = vmul.f32 %v3113, %v3091
      %v3115 = vmul.f32 %v3114, %v3113
      %v3116 = vmul.f32 0.5, %v3115
      %v3117 = vsub.f32 1.5, %v3116
      %v3118 = vmul.f32 %v3113, %v3117
      %vm3119 = vweird.f32 %v3091
      %vm3120 = vweird.f32 %v3113
      %vm3121 = vmor %vm3119, %vm3120
      %v3122 = vsel %vm3121, %v3113, %v3118
      %v3123 = vrsqrt.pop %v3092
      %v3124 = vmul.f32 %v3123, %v3092
      %v3125 = vmul.f32 %v3124, %v3123
      %v3126 = vmul.f32 0.5, %v3125
      %v3127 = vsub.f32 1.5, %v3126
      %v3128 = vmul.f32 %v3123, %v3127
      %vm3129 = vweird.f32 %v3092
      %vm3130 = vweird.f32 %v3123
      %vm3131 = vmor %vm3129, %vm3130
      %v3132 = vsel %vm3131, %v3123, %v3128
      %v3133 = vmul.f32 %v3068, %v3102
      %v3134 = vmul.f32 %v3069, %v3112
      %v3135 = vmul.f32 %v3070, %v3122
      %v3136 = vmul.f32 %v3071, %v3132
      %v3137 = vmul.f32 %v3133, %v1150
      %v3138 = vmul.f32 %v3134, %v1150
      %v3139 = vmul.f32 %v3135, %v1150
      %v3140 = vmul.f32 %v3136, %v1150
      %v3141 = vadd.f32 %v3137, %v1151
      %v3142 = vadd.f32 %v3138, %v1151
      %v3143 = vadd.f32 %v3139, %v1151
      %v3144 = vadd.f32 %v3140, %v1151
      %v3145 = vld [vmem:[%s3 + $0x180] sm:$0xff]
      %v3146 = vld [vmem:[%s3 + $0x188] sm:$0xf]
      %v3147 = vld [vmem:[%s3 + $0x198] sm:$0xff]
      %v3148 = vld [vmem:[%s3 + $0x1a0] sm:$0xf]
      %v3149 = vld [vmem:[%s3 + $0x1b0] sm:$0xff]
      %v3150 = vld [vmem:[%s3 + $0x1b8] sm:$0xf]
      %v3151 = vld [vmem:[%s3 + $0x1c8] sm:$0xff]
      %v3152 = vld [vmem:[%s3 + $0x1d0] sm:$0xf]
      %v3153 = vld [vmem:[%s3 + $0x1e0] sm:$0xff]
      %v3154 = vld [vmem:[%s3 + $0x1e8] sm:$0xf]
      %v3155 = vld [vmem:[%s3 + $0x1f8] sm:$0xff]
      %v3156 = vld [vmem:[%s3 + $0x200] sm:$0xf]
      %v3157 = vld [vmem:[%s3 + $0x210] sm:$0xff]
      %v3158 = vld [vmem:[%s3 + $0x218] sm:$0xf]
      %v3159 = vld [vmem:[%s3 + $0x228] sm:$0xff]
      %v3160 = vld [vmem:[%s3 + $0x230] sm:$0xf]
      %v3161 = vld [vmem:[%s3 + $0x240] sm:$0xff]
      %v3162 = vld [vmem:[%s3 + $0x248] sm:$0xf]
      %v3163 = vld [vmem:[%s3 + $0x258] sm:$0xff]
      %v3164 = vld [vmem:[%s3 + $0x260] sm:$0xf]
      %v3165 = vld [vmem:[%s3 + $0x270] sm:$0xff]
      %v3166 = vld [vmem:[%s3 + $0x278] sm:$0xf]
      %v3167 = vld [vmem:[%s3 + $0x288] sm:$0xff]
      %v3168 = vld [vmem:[%s3 + $0x290] sm:$0xf]
      %v3169 = vld [vmem:[%s3 + $0x2a0] sm:$0xff]
      %v3170 = vld [vmem:[%s3 + $0x2a8] sm:$0xf]
      %v3171 = vld [vmem:[%s3 + $0x2b8] sm:$0xff]
      %v3172 = vld [vmem:[%s3 + $0x2c0] sm:$0xf]
      %v3173 = vld [vmem:[%s3 + $0x2d0] sm:$0xff]
      %v3174 = vld [vmem:[%s3 + $0x2d8] sm:$0xf]
      %v3175 = vld [vmem:[%s3 + $0x2e8] sm:$0xff]
      %v3176 = vld [vmem:[%s3 + $0x2f0] sm:$0xf]
      %v3177 = vld [vmem:[%s3 + $0x18c] sm:$0xf]
      %v3178 = vld [vmem:[%s3 + $0x1a4] sm:$0xf]
      %v3179 = vld [vmem:[%s3 + $0x1bc] sm:$0xf]
      %v3180 = vld [vmem:[%s3 + $0x1d4] sm:$0xf]
      %v3181 = vld [vmem:[%s3 + $0x1ec] sm:$0xf]
      %v3182 = vld [vmem:[%s3 + $0x204] sm:$0xf]
      %v3183 = vld [vmem:[%s3 + $0x21c] sm:$0xf]
      %v3184 = vld [vmem:[%s3 + $0x234] sm:$0xf]
      %v3185 = vld [vmem:[%s3 + $0x24c] sm:$0xf]
      %v3186 = vld [vmem:[%s3 + $0x264] sm:$0xf]
      %v3187 = vld [vmem:[%s3 + $0x27c] sm:$0xf]
      %v3188 = vld [vmem:[%s3 + $0x294] sm:$0xf]
      %v3189 = vld [vmem:[%s3 + $0x2ac] sm:$0xf]
      %v3190 = vld [vmem:[%s3 + $0x2c4] sm:$0xf]
      %v3191 = vld [vmem:[%s3 + $0x2dc] sm:$0xf]
      %v3192 = vld [vmem:[%s3 + $0x2f4] sm:$0xf]
      %v3193 = vld [vmem:[%s3 + $0x190] sm:$0xff]
      %v3194 = vld [vmem:[%s3 + $0x1a8] sm:$0xff]
      %v3195 = vld [vmem:[%s3 + $0x1c0] sm:$0xff]
      %v3196 = vld [vmem:[%s3 + $0x1d8] sm:$0xff]
      %v3197 = vld [vmem:[%s3 + $0x1f0] sm:$0xff]
      %v3198 = vld [vmem:[%s3 + $0x208] sm:$0xff]
      %v3199 = vld [vmem:[%s3 + $0x220] sm:$0xff]
      %v3200 = vld [vmem:[%s3 + $0x238] sm:$0xff]
      %v3201 = vld [vmem:[%s3 + $0x250] sm:$0xff]
      %v3202 = vld [vmem:[%s3 + $0x268] sm:$0xff]
      %v3203 = vld [vmem:[%s3 + $0x280] sm:$0xff]
      %v3204 = vld [vmem:[%s3 + $0x298] sm:$0xff]
      %v3205 = vld [vmem:[%s3 + $0x2b0] sm:$0xff]
      %v3206 = vld [vmem:[%s3 + $0x2c8] sm:$0xff]
      %v3207 = vld [vmem:[%s3 + $0x2e0] sm:$0xff]
      %v3208 = vld [vmem:[%s3 + $0x2f8] sm:$0xff]
      %v3209 = vld [vmem:[%s4 + $0x80] sm:$0xf]
      %v3210 = vld [vmem:[%s4 + $0x84] sm:$0xf]
      %v3211 = vld [vmem:[%s4 + $0x88] sm:$0xf]
      %v3212 = vld [vmem:[%s4 + $0x8c] sm:$0xf]
      %v3213 = vld [vmem:[%s4 + $0x90] sm:$0xf]
      %v3214 = vld [vmem:[%s4 + $0x94] sm:$0xf]
      %v3215 = vld [vmem:[%s4 + $0x98] sm:$0xf]
      %v3216 = vld [vmem:[%s4 + $0x9c] sm:$0xf]
      %v3217 = vld [vmem:[%s4 + $0xa0] sm:$0xf]
      %v3218 = vld [vmem:[%s4 + $0xa4] sm:$0xf]
      %v3219 = vld [vmem:[%s4 + $0xa8] sm:$0xf]
      %v3220 = vld [vmem:[%s4 + $0xac] sm:$0xf]
      %v3221 = vld [vmem:[%s4 + $0xb0] sm:$0xf]
      %v3222 = vld [vmem:[%s4 + $0xb4] sm:$0xf]
      %v3223 = vld [vmem:[%s4 + $0xb8] sm:$0xf]
      %v3224 = vld [vmem:[%s4 + $0xbc] sm:$0xf]
      %v3225 = vld [vmem:[%s4 + $0xc0] sm:$0xf]
      %v3226 = vld [vmem:[%s4 + $0xc4] sm:$0xf]
      %v3227 = vld [vmem:[%s4 + $0xc8] sm:$0xf]
      %v3228 = vld [vmem:[%s4 + $0xcc] sm:$0xf]
      %v3229 = vld [vmem:[%s4 + $0xd0] sm:$0xf]
      %v3230 = vld [vmem:[%s4 + $0xd4] sm:$0xf]
      %v3231 = vld [vmem:[%s4 + $0xd8] sm:$0xf]
      %v3232 = vld [vmem:[%s4 + $0xdc] sm:$0xf]
      %v3233 = vld [vmem:[%s4 + $0xe0] sm:$0xf]
      %v3234 = vld [vmem:[%s4 + $0xe4] sm:$0xf]
      %v3235 = vld [vmem:[%s4 + $0xe8] sm:$0xf]
      %v3236 = vld [vmem:[%s4 + $0xec] sm:$0xf]
      %v3237 = vld [vmem:[%s4 + $0xf0] sm:$0xf]
      %v3238 = vld [vmem:[%s4 + $0xf4] sm:$0xf]
      %v3239 = vld [vmem:[%s4 + $0xf8] sm:$0xf]
      %v3240 = vld [vmem:[%s4 + $0xfc] sm:$0xf]
      %s3241 = scalar_lea.vmem %s5, 24
      %v3242 = vld [vmem:[%s3241] ss:$8 sm:$0x7]
      %v3243 = vld [vmem:[%s5 + $0x19] ss:$0 sm:$0xff]
      %v3244 = vld [vmem:[%s5 + $0x21] ss:$0 sm:$0xff]
      %v3245 = vld [vmem:[%s5 + $0x29] ss:$0 sm:$0xff]
      %s3246 = scalar_lea.vmem %s5, 26
      %v3247 = vld [vmem:[%s3246] ss:$8 sm:$0x3]
      %v3248 = vld [vmem:[%s5 + $0x1b] ss:$0 sm:$0xff]
      %v3249 = vld [vmem:[%s5 + $0x23] ss:$0 sm:$0xff]
      %v3250 = vld [vmem:[%s5 + $0x2b] ss:$0 sm:$0xff]
      %v3251 = vpack.c.bf16 %v3142, %v3141
      %v3252 = vpack.c.bf16 %v3144, %v3143
      %v3254 = vperm.slane %v3242, 0
      %v3255 = vperm.slane %v3242, 1
      %v3256 = vperm.slane %v3242, 2
      %v3292 = vunpack.c.l.b16 %v3145
      %v3293 = vunpack.c.h.b16 %v3145
      %v3294 = vunpack.c.l.b16 %v3146
      %v3295 = vunpack.c.l.b16 %v3147
      %v3296 = vunpack.c.h.b16 %v3147
      %v3297 = vunpack.c.l.b16 %v3148
      %v3298 = vunpack.c.l.b16 %v3149
      %v3299 = vunpack.c.h.b16 %v3149
      %v3300 = vunpack.c.l.b16 %v3150
      %v3301 = vunpack.c.l.b16 %v3151
      %v3302 = vunpack.c.h.b16 %v3151
      %v3303 = vunpack.c.l.b16 %v3152
      %v3304 = vunpack.c.l.b16 %v3153
      %v3305 = vunpack.c.h.b16 %v3153
      %v3306 = vunpack.c.l.b16 %v3154
      %v3307 = vunpack.c.l.b16 %v3155
      %v3308 = vunpack.c.h.b16 %v3155
      %v3309 = vunpack.c.l.b16 %v3156
      %v3310 = vunpack.c.l.b16 %v3157
      %v3311 = vunpack.c.h.b16 %v3157
      %v3312 = vunpack.c.l.b16 %v3158
      %v3313 = vunpack.c.l.b16 %v3159
      %v3314 = vunpack.c.h.b16 %v3159
      %v3315 = vunpack.c.l.b16 %v3160
      %v3316 = vunpack.c.l.b16 %v3161
      %v3317 = vunpack.c.h.b16 %v3161
      %v3318 = vunpack.c.l.b16 %v3162
      %v3319 = vunpack.c.l.b16 %v3163
      %v3320 = vunpack.c.h.b16 %v3163
      %v3321 = vunpack.c.l.b16 %v3164
      %v3322 = vunpack.c.l.b16 %v3165
      %v3323 = vunpack.c.h.b16 %v3165
      %v3324 = vunpack.c.l.b16 %v3166
      %v3325 = vunpack.c.l.b16 %v3167
      %v3326 = vunpack.c.h.b16 %v3167
      %v3327 = vunpack.c.l.b16 %v3168
      %v3328 = vunpack.c.l.b16 %v3169
      %v3329 = vunpack.c.h.b16 %v3169
      %v3330 = vunpack.c.l.b16 %v3170
      %v3331 = vunpack.c.l.b16 %v3171
      %v3332 = vunpack.c.h.b16 %v3171
      %v3333 = vunpack.c.l.b16 %v3172
      %v3334 = vunpack.c.l.b16 %v3173
      %v3335 = vunpack.c.h.b16 %v3173
      %v3336 = vunpack.c.l.b16 %v3174
      %v3337 = vunpack.c.l.b16 %v3175
      %v3338 = vunpack.c.h.b16 %v3175
      %v3339 = vunpack.c.l.b16 %v3176
      %v3340 = vpack.c.b16 %v3295, %v3292
      %v3341 = vpack.c.b16 %v3296, %v3293
      %v3342 = vpack.c.b16 %v3297, %v3294
      %v3343 = vpack.c.b16 %v3301, %v3298
      %v3344 = vpack.c.b16 %v3302, %v3299
      %v3345 = vpack.c.b16 %v3303, %v3300
      %v3346 = vpack.c.b16 %v3307, %v3304
      %v3347 = vpack.c.b16 %v3308, %v3305
      %v3348 = vpack.c.b16 %v3309, %v3306
      %v3349 = vpack.c.b16 %v3313, %v3310
      %v3350 = vpack.c.b16 %v3314, %v3311
      %v3351 = vpack.c.b16 %v3315, %v3312
      %v3352 = vpack.c.b16 %v3319, %v3316
      %v3353 = vpack.c.b16 %v3320, %v3317
      %v3354 = vpack.c.b16 %v3321, %v3318
      %v3355 = vpack.c.b16 %v3325, %v3322
      %v3356 = vpack.c.b16 %v3326, %v3323
      %v3357 = vpack.c.b16 %v3327, %v3324
      %v3358 = vpack.c.b16 %v3331, %v3328
      %v3359 = vpack.c.b16 %v3332, %v3329
      %v3360 = vpack.c.b16 %v3333, %v3330
      %v3361 = vpack.c.b16 %v3337, %v3334
      %v3362 = vpack.c.b16 %v3338, %v3335
      %v3363 = vpack.c.b16 %v3339, %v3336
      %3388 = vmatpush.bf16.msra.mxu0 %v3361
      %3389 = vmatpush.bf16.msra.mxu0 %v3358
      %3390 = vmatpush.bf16.msra.mxu0 %v3355
      %3391 = vmatpush.bf16.msra.mxu0 %v3352
      %3392 = vmatpush.bf16.msra.mxu0 %v3349
      %3393 = vmatpush.bf16.msra.mxu0 %v3346
      %3394 = vmatpush.bf16.msra.mxu0 %v3343
      %3395 = vmatpush.bf16.msra.mxu0 %v3340
      %3396 = vmatmul.bf16.gmra.mxu0 %v3251
      %v3397 = vpop.f32.mrf.mxu0
      %v3398 = vadd.f32 %v3254, %v3397
      %v3399 = vpop.f32.mrf.mxu0
      %v3400 = vadd.f32 %v3254, %v3399
      %3401 = vmatmul.bf16.gmra.mxu0 %v3252
      %v3402 = vpop.f32.mrf.mxu0
      %v3403 = vadd.f32 %v3254, %v3402
      %v3404 = vpop.f32.mrf.mxu0
      %v3405 = vadd.f32 %v3254, %v3404
      %3406 = vdwg.mxu0
      %3407 = vmatpush.bf16.msra.mxu0 %v3362
      %3408 = vmatpush.bf16.msra.mxu0 %v3359
      %3409 = vmatpush.bf16.msra.mxu0 %v3356
      %3410 = vmatpush.bf16.msra.mxu0 %v3353
      %3411 = vmatpush.bf16.msra.mxu0 %v3350
      %3412 = vmatpush.bf16.msra.mxu0 %v3347
      %3413 = vmatpush.bf16.msra.mxu0 %v3344
      %3414 = vmatpush.bf16.msra.mxu0 %v3341
      %3415 = vmatmul.bf16.gmra.mxu0 %v3251
      %v3416 = vpop.f32.mrf.mxu0
      %v3417 = vadd.f32 %v3255, %v3416
      %v3418 = vpop.f32.mrf.mxu0
      %v3419 = vadd.f32 %v3255, %v3418
      %3420 = vmatmul.bf16.gmra.mxu0 %v3252
      %v3421 = vpop.f32.mrf.mxu0
      %v3422 = vadd.f32 %v3255, %v3421
      %v3423 = vpop.f32.mrf.mxu0
      %v3424 = vadd.f32 %v3255, %v3423
      %3425 = vdwg.mxu0
      %3426 = vmatpush.bf16.msra.mxu0 %v3363
      %3427 = vmatpush.bf16.msra.mxu0 %v3360
      %3428 = vmatpush.bf16.msra.mxu0 %v3357
      %3429 = vmatpush.bf16.msra.mxu0 %v3354
      %3430 = vmatpush.bf16.msra.mxu0 %v3351
      %3431 = vmatpush.bf16.msra.mxu0 %v3348
      %3432 = vmatpush.bf16.msra.mxu0 %v3345
      %3433 = vmatpush.bf16.msra.mxu0 %v3342
      %3434 = vmatmul.bf16.gmra.mxu0 %v3251
      %v3435 = vpop.f32.mrf.mxu0
      %v3436 = vadd.f32 %v3256, %v3435
      %v3437 = vpop.f32.mrf.mxu0
      %v3438 = vadd.f32 %v3256, %v3437
      %3439 = vmatmul.bf16.gmra.mxu0 %v3252
      %v3440 = vpop.f32.mrf.mxu0
      %v3441 = vadd.f32 %v3256, %v3440
      %v3442 = vpop.f32.mrf.mxu0
      %v3443 = vadd.f32 %v3256, %v3442
      %3444 = vdwg.mxu0
      %v3445 = vpack.c.bf16 %v3398, %v3398
      %v3446 = vpack.c.bf16 %v3400, %v3400
      %v3447 = vpack.c.bf16 %v3403, %v3403
      %v3448 = vpack.c.bf16 %v3405, %v3405
      %v3449 = vpack.c.bf16 %v3417, %v3417
      %v3450 = vpack.c.bf16 %v3419, %v3419
      %v3451 = vpack.c.bf16 %v3422, %v3422
      %v3452 = vpack.c.bf16 %v3424, %v3424
      %v3453 = vpack.c.bf16 %v3436, %v3436
      %v3454 = vpack.c.bf16 %v3438, %v3438
      %v3455 = vpack.c.bf16 %v3441, %v3441
      %v3456 = vpack.c.bf16 %v3443, %v3443
      %v3461 = vunpack.c.l.b16 %v3445
      %v3462 = vunpack.c.l.b16 %v3446
      %v3463 = vunpack.c.l.b16 %v3447
      %v3464 = vunpack.c.l.b16 %v3448
      %v3465 = vpack.c.b16 %v3462, %v3461
      %v3466 = vpack.c.b16 %v3464, %v3463
      %v3471 = vunpack.c.l.b16 %v3449
      %v3472 = vunpack.c.l.b16 %v3450
      %v3473 = vunpack.c.l.b16 %v3451
      %v3474 = vunpack.c.l.b16 %v3452
      %v3475 = vpack.c.b16 %v3472, %v3471
      %v3476 = vpack.c.b16 %v3474, %v3473
      %v3478 = vsel %vm1378, %v3465, 0
      %v3481 = vsel %vm1378, %v3466, 0
      %v3484 = vsel %vm1378, %v3475, 0
      %v3487 = vsel %vm1378, %v3476, 0
      %3489 = vmatpush.bf16.xpose.msra.mxu0 0
      %3490 = vmatpush.bf16.xpose.msra.mxu0 0
      %3491 = vmatpush.bf16.xpose.msra.mxu0 0
      %3492 = vmatpush.bf16.xpose.msra.mxu0 0
      %3493 = vmatpush.bf16.xpose.msra.mxu0 0
      %3494 = vmatpush.bf16.xpose.msra.mxu0 0
      %3495 = vmatpush.bf16.xpose.msra.mxu0 %v3487
      %3496 = vmatpush.bf16.xpose.msra.mxu0 %v3484
      %3497 = vmatmul.bf16.gmra.mxu0 %v3478
      %v3498 = vpop.f32.mrf.mxu0
      %v3499 = vadd.f32 0.0, %v3498
      %v3500 = vpop.f32.mrf.mxu0
      %v3501 = vadd.f32 0.0, %v3500
      %3502 = vmatmul.bf16.gmra.mxu0 %v3481
      %v3503 = vpop.f32.mrf.mxu0
      %v3504 = vadd.f32 0.0, %v3503
      %v3505 = vpop.f32.mrf.mxu0
      %v3506 = vadd.f32 0.0, %v3505
      %3507 = vdwg.mxu0
      %v3508 = vsel %vm270, %v3499, -inf
      %3509 = vmax.xlane.f32.xlu0 %v3508
      %v3510 = vpop.xlane.xlu0 %3509
      %v3511 = vsel %vm270, %v3501, -inf
      %3512 = vmax.xlane.f32.xlu0 %v3511
      %v3513 = vpop.xlane.xlu0 %3512
      %v3514 = vsel %vm270, %v3504, -inf
      %3515 = vmax.xlane.f32.xlu0 %v3514
      %v3516 = vpop.xlane.xlu0 %3515
      %v3517 = vsel %vm1419, %v3506, -inf
      %3518 = vmax.xlane.f32.xlu0 %v3517
      %v3519 = vpop.xlane.xlu0 %3518
      %v3520 = vsub.f32 %v3499, %v3510
      %v3521 = vsub.f32 %v3501, %v3513
      %v3522 = vsub.f32 %v3504, %v3516
      %v3523 = vsub.f32 %v3506, %v3519
      %v3524 = vmul.f32 %v3520, 1.442695
      %v3525 = vpow.pop %v3524
      %v3526 = vmul.f32 %v3521, 1.442695
      %v3527 = vpow.pop %v3526
      %v3528 = vmul.f32 %v3522, 1.442695
      %v3529 = vpow.pop %v3528
      %v3530 = vmul.f32 %v3523, 1.442695
      %v3531 = vpow.pop %v3530
      %v3532 = vsel %vm270, %v3525, 0.0
      %3533 = vadd.xlane.f32.xlu0 %v3532
      %v3534 = vpop.xlane.xlu0 %3533
      %v3535 = vsel %vm270, %v3527, 0.0
      %3536 = vadd.xlane.f32.xlu0 %v3535
      %v3537 = vpop.xlane.xlu0 %3536
      %v3538 = vsel %vm270, %v3529, 0.0
      %3539 = vadd.xlane.f32.xlu0 %v3538
      %v3540 = vpop.xlane.xlu0 %3539
      %v3541 = vsel %vm1419, %v3531, 0.0
      %3542 = vadd.xlane.f32.xlu0 %v3541
      %v3543 = vpop.xlane.xlu0 %3542
      %v3544 = vrcp.pop %v3534
      %v3545 = vrcp.pop %v3537
      %v3546 = vrcp.pop %v3540
      %v3547 = vrcp.pop %v3543
      %v3548 = vmul.f32 %v3525, %v3544
      %v3549 = vmul.f32 %v3527, %v3545
      %v3550 = vmul.f32 %v3529, %v3546
      %v3551 = vmul.f32 %v3531, %v3547
      %v3552 = vpack.c.bf16 %v3549, %v3548
      %v3553 = vpack.c.bf16 %v3551, %v3550
      %v3558 = vunpack.c.l.b16 %v3453
      %v3559 = vunpack.c.l.b16 %v3454
      %v3560 = vunpack.c.l.b16 %v3455
      %v3561 = vunpack.c.l.b16 %v3456
      %v3562 = vpack.c.b16 %v3559, %v3558
      %v3563 = vpack.c.b16 %v3561, %v3560
      %v3566 = vsel %vm270, %v3552, 0
      %v3569 = vsel %vm270, %v3553, 0
      %v3572 = vsel %vm1474, %v3563, 0
      %3574 = vmatpush.bf16.msra.mxu0 0
      %3575 = vmatpush.bf16.msra.mxu0 0
      %3576 = vmatpush.bf16.msra.mxu0 0
      %3577 = vmatpush.bf16.msra.mxu0 0
      %3578 = vmatpush.bf16.msra.mxu0 0
      %3579 = vmatpush.bf16.msra.mxu0 0
      %3580 = vmatpush.bf16.msra.mxu0 %v3572
      %3581 = vmatpush.bf16.msra.mxu0 %v3562
      %3582 = vmatmul.bf16.gmra.mxu0 %v3566
      %v3583 = vpop.f32.mrf.mxu0
      %v3584 = vadd.f32 0.0, %v3583
      %v3585 = vpop.f32.mrf.mxu0
      %v3586 = vadd.f32 0.0, %v3585
      %3587 = vmatmul.bf16.gmra.mxu0 %v3569
      %v3588 = vpop.f32.mrf.mxu0
      %v3589 = vadd.f32 0.0, %v3588
      %v3590 = vpop.f32.mrf.mxu0
      %v3591 = vadd.f32 0.0, %v3590
      %3592 = vdwg.mxu0
      %v3593 = vpack.c.bf16 %v3586, %v3584
      %v3594 = vpack.c.bf16 %v3591, %v3589
      %3595 = vrot.lane.b32.xlu0 %v3465, 112
      %v3596 = vpop.permute.xlu0 %3595
      %3597 = vrot.lane.b32.xlu0 %v3466, 112
      %v3598 = vpop.permute.xlu0 %3597
      %3599 = vrot.lane.b32.xlu0 %v3475, 112
      %v3600 = vpop.permute.xlu0 %3599
      %3601 = vrot.lane.b32.xlu0 %v3476, 112
      %v3602 = vpop.permute.xlu0 %3601
      %v3604 = vsel %vm1378, %v3596, 0
      %v3607 = vsel %vm1378, %v3598, 0
      %v3610 = vsel %vm1378, %v3600, 0
      %v3613 = vsel %vm1378, %v3602, 0
      %3615 = vmatpush.bf16.xpose.msra.mxu0 0
      %3616 = vmatpush.bf16.xpose.msra.mxu0 0
      %3617 = vmatpush.bf16.xpose.msra.mxu0 0
      %3618 = vmatpush.bf16.xpose.msra.mxu0 0
      %3619 = vmatpush.bf16.xpose.msra.mxu0 0
      %3620 = vmatpush.bf16.xpose.msra.mxu0 0
      %3621 = vmatpush.bf16.xpose.msra.mxu0 %v3613
      %3622 = vmatpush.bf16.xpose.msra.mxu0 %v3610
      %3623 = vmatmul.bf16.gmra.mxu0 %v3604
      %v3624 = vpop.f32.mrf.mxu0
      %v3625 = vadd.f32 0.0, %v3624
      %v3626 = vpop.f32.mrf.mxu0
      %v3627 = vadd.f32 0.0, %v3626
      %3628 = vmatmul.bf16.gmra.mxu0 %v3607
      %v3629 = vpop.f32.mrf.mxu0
      %v3630 = vadd.f32 0.0, %v3629
      %v3631 = vpop.f32.mrf.mxu0
      %v3632 = vadd.f32 0.0, %v3631
      %3633 = vdwg.mxu0
      %v3634 = vsel %vm270, %v3625, -inf
      %3635 = vmax.xlane.f32.xlu0 %v3634
      %v3636 = vpop.xlane.xlu0 %3635
      %v3637 = vsel %vm270, %v3627, -inf
      %3638 = vmax.xlane.f32.xlu0 %v3637
      %v3639 = vpop.xlane.xlu0 %3638
      %v3640 = vsel %vm270, %v3630, -inf
      %3641 = vmax.xlane.f32.xlu0 %v3640
      %v3642 = vpop.xlane.xlu0 %3641
      %v3643 = vsel %vm1419, %v3632, -inf
      %3644 = vmax.xlane.f32.xlu0 %v3643
      %v3645 = vpop.xlane.xlu0 %3644
      %v3646 = vsub.f32 %v3625, %v3636
      %v3647 = vsub.f32 %v3627, %v3639
      %v3648 = vsub.f32 %v3630, %v3642
      %v3649 = vsub.f32 %v3632, %v3645
      %v3650 = vmul.f32 %v3646, 1.442695
      %v3651 = vpow.pop %v3650
      %v3652 = vmul.f32 %v3647, 1.442695
      %v3653 = vpow.pop %v3652
      %v3654 = vmul.f32 %v3648, 1.442695
      %v3655 = vpow.pop %v3654
      %v3656 = vmul.f32 %v3649, 1.442695
      %v3657 = vpow.pop %v3656
      %v3658 = vsel %vm270, %v3651, 0.0
      %3659 = vadd.xlane.f32.xlu0 %v3658
      %v3660 = vpop.xlane.xlu0 %3659
      %v3661 = vsel %vm270, %v3653, 0.0
      %3662 = vadd.xlane.f32.xlu0 %v3661
      %v3663 = vpop.xlane.xlu0 %3662
      %v3664 = vsel %vm270, %v3655, 0.0
      %3665 = vadd.xlane.f32.xlu0 %v3664
      %v3666 = vpop.xlane.xlu0 %3665
      %v3667 = vsel %vm1419, %v3657, 0.0
      %3668 = vadd.xlane.f32.xlu0 %v3667
      %v3669 = vpop.xlane.xlu0 %3668
      %v3670 = vrcp.pop %v3660
      %v3671 = vrcp.pop %v3663
      %v3672 = vrcp.pop %v3666
      %v3673 = vrcp.pop %v3669
      %v3674 = vmul.f32 %v3651, %v3670
      %v3675 = vmul.f32 %v3653, %v3671
      %v3676 = vmul.f32 %v3655, %v3672
      %v3677 = vmul.f32 %v3657, %v3673
      %v3678 = vpack.c.bf16 %v3675, %v3674
      %v3679 = vpack.c.bf16 %v3677, %v3676
      %3680 = vrot.lane.b32.xlu0 %v3562, 112
      %v3681 = vpop.permute.xlu0 %3680
      %3682 = vrot.lane.b32.xlu0 %v3563, 112
      %v3683 = vpop.permute.xlu0 %3682
      %v3686 = vsel %vm270, %v3678, 0
      %v3689 = vsel %vm270, %v3679, 0
      %v3692 = vsel %vm1474, %v3683, 0
      %3694 = vmatpush.bf16.msra.mxu0 0
      %3695 = vmatpush.bf16.msra.mxu0 0
      %3696 = vmatpush.bf16.msra.mxu0 0
      %3697 = vmatpush.bf16.msra.mxu0 0
      %3698 = vmatpush.bf16.msra.mxu0 0
      %3699 = vmatpush.bf16.msra.mxu0 0
      %3700 = vmatpush.bf16.msra.mxu0 %v3692
      %3701 = vmatpush.bf16.msra.mxu0 %v3681
      %3702 = vmatmul.bf16.gmra.mxu0 %v3686
      %v3703 = vpop.f32.mrf.mxu0
      %v3704 = vadd.f32 0.0, %v3703
      %v3705 = vpop.f32.mrf.mxu0
      %v3706 = vadd.f32 0.0, %v3705
      %3707 = vmatmul.bf16.gmra.mxu0 %v3689
      %v3708 = vpop.f32.mrf.mxu0
      %v3709 = vadd.f32 0.0, %v3708
      %v3710 = vpop.f32.mrf.mxu0
      %v3711 = vadd.f32 0.0, %v3710
      %3712 = vdwg.mxu0
      %v3713 = vpack.c.bf16 %v3706, %v3704
      %v3714 = vpack.c.bf16 %v3711, %v3709
      %v3717 = vunpack.c.l.b16 %v3179
      %v3718 = vunpack.c.l.b16 %v3180
      %v3719 = vpack.c.b16 %v3718, %v3717
      %v3722 = vsel %vm1378, %v3713, 0
      %v3725 = vsel %vm1378, %v3714, 0
      %3727 = vmatpush.bf16.msra.mxu0 0
      %3728 = vmatpush.bf16.msra.mxu0 0
      %3729 = vmatpush.bf16.msra.mxu0 0
      %3730 = vmatpush.bf16.msra.mxu0 0
      %3731 = vmatpush.bf16.msra.mxu0 0
      %3732 = vmatpush.bf16.msra.mxu0 0
      %3733 = vmatpush.bf16.msra.mxu0 0
      %3734 = vmatpush.bf16.msra.mxu0 %v3719
      %3735 = vmatmul.bf16.gmra.mxu0 %v3722
      %v3736 = vpop.f32.mrf.mxu0
      %v3737 = vadd.f32 0.0, %v3736
      %v3738 = vpop.f32.mrf.mxu0
      %v3739 = vadd.f32 0.0, %v3738
      %3740 = vmatmul.bf16.gmra.mxu0 %v3725
      %v3741 = vpop.f32.mrf.mxu0
      %v3742 = vadd.f32 0.0, %v3741
      %v3743 = vpop.f32.mrf.mxu0
      %v3744 = vadd.f32 0.0, %v3743
      %3745 = vdwg.mxu0
      %v3748 = vunpack.c.l.b16 %v3177
      %v3749 = vunpack.c.l.b16 %v3178
      %v3750 = vpack.c.b16 %v3749, %v3748
      %v3753 = vsel %vm1378, %v3593, 0
      %v3756 = vsel %vm1378, %v3594, 0
      %3758 = vmatpush.bf16.msra.mxu0 0
      %3759 = vmatpush.bf16.msra.mxu0 0
      %3760 = vmatpush.bf16.msra.mxu0 0
      %3761 = vmatpush.bf16.msra.mxu0 0
      %3762 = vmatpush.bf16.msra.mxu0 0
      %3763 = vmatpush.bf16.msra.mxu0 0
      %3764 = vmatpush.bf16.msra.mxu0 0
      %3765 = vmatpush.bf16.msra.mxu0 %v3750
      %3766 = vmatmul.bf16.gmra.mxu0 %v3753
      %v3767 = vpop.f32.mrf.mxu0
      %v3768 = vadd.f32 %v3737, %v3767
      %v3769 = vpop.f32.mrf.mxu0
      %v3770 = vadd.f32 %v3739, %v3769
      %3771 = vmatmul.bf16.gmra.mxu0 %v3756
      %v3772 = vpop.f32.mrf.mxu0
      %v3773 = vadd.f32 %v3742, %v3772
      %v3774 = vpop.f32.mrf.mxu0
      %v3775 = vadd.f32 %v3744, %v3774
      %3776 = vdwg.mxu0
      %3777 = vrot.lane.b32.xlu0 %v3465, 96
      %v3778 = vpop.permute.xlu0 %3777
      %3779 = vrot.lane.b32.xlu0 %v3466, 96
      %v3780 = vpop.permute.xlu0 %3779
      %3781 = vrot.lane.b32.xlu0 %v3475, 96
      %v3782 = vpop.permute.xlu0 %3781
      %3783 = vrot.lane.b32.xlu0 %v3476, 96
      %v3784 = vpop.permute.xlu0 %3783
      %v3786 = vsel %vm1378, %v3778, 0
      %v3789 = vsel %vm1378, %v3780, 0
      %v3792 = vsel %vm1378, %v3782, 0
      %v3795 = vsel %vm1378, %v3784, 0
      %3797 = vmatpush.bf16.xpose.msra.mxu0 0
      %3798 = vmatpush.bf16.xpose.msra.mxu0 0
      %3799 = vmatpush.bf16.xpose.msra.mxu0 0
      %3800 = vmatpush.bf16.xpose.msra.mxu0 0
      %3801 = vmatpush.bf16.xpose.msra.mxu0 0
      %3802 = vmatpush.bf16.xpose.msra.mxu0 0
      %3803 = vmatpush.bf16.xpose.msra.mxu0 %v3795
      %3804 = vmatpush.bf16.xpose.msra.mxu0 %v3792
      %3805 = vmatmul.bf16.gmra.mxu0 %v3786
      %v3806 = vpop.f32.mrf.mxu0
      %v3807 = vadd.f32 0.0, %v3806
      %v3808 = vpop.f32.mrf.mxu0
      %v3809 = vadd.f32 0.0, %v3808
      %3810 = vmatmul.bf16.gmra.mxu0 %v3789
      %v3811 = vpop.f32.mrf.mxu0
      %v3812 = vadd.f32 0.0, %v3811
      %v3813 = vpop.f32.mrf.mxu0
      %v3814 = vadd.f32 0.0, %v3813
      %3815 = vdwg.mxu0
      %v3816 = vsel %vm270, %v3807, -inf
      %3817 = vmax.xlane.f32.xlu0 %v3816
      %v3818 = vpop.xlane.xlu0 %3817
      %v3819 = vsel %vm270, %v3809, -inf
      %3820 = vmax.xlane.f32.xlu0 %v3819
      %v3821 = vpop.xlane.xlu0 %3820
      %v3822 = vsel %vm270, %v3812, -inf
      %3823 = vmax.xlane.f32.xlu0 %v3822
      %v3824 = vpop.xlane.xlu0 %3823
      %v3825 = vsel %vm1419, %v3814, -inf
      %3826 = vmax.xlane.f32.xlu0 %v3825
      %v3827 = vpop.xlane.xlu0 %3826
      %v3828 = vsub.f32 %v3807, %v3818
      %v3829 = vsub.f32 %v3809, %v3821
      %v3830 = vsub.f32 %v3812, %v3824
      %v3831 = vsub.f32 %v3814, %v3827
      %v3832 = vmul.f32 %v3828, 1.442695
      %v3833 = vpow.pop %v3832
      %v3834 = vmul.f32 %v3829, 1.442695
      %v3835 = vpow.pop %v3834
      %v3836 = vmul.f32 %v3830, 1.442695
      %v3837 = vpow.pop %v3836
      %v3838 = vmul.f32 %v3831, 1.442695
      %v3839 = vpow.pop %v3838
      %v3840 = vsel %vm270, %v3833, 0.0
      %3841 = vadd.xlane.f32.xlu0 %v3840
      %v3842 = vpop.xlane.xlu0 %3841
      %v3843 = vsel %vm270, %v3835, 0.0
      %3844 = vadd.xlane.f32.xlu0 %v3843
      %v3845 = vpop.xlane.xlu0 %3844
      %v3846 = vsel %vm270, %v3837, 0.0
      %3847 = vadd.xlane.f32.xlu0 %v3846
      %v3848 = vpop.xlane.xlu0 %3847
      %v3849 = vsel %vm1419, %v3839, 0.0
      %3850 = vadd.xlane.f32.xlu0 %v3849
      %v3851 = vpop.xlane.xlu0 %3850
      %v3852 = vrcp.pop %v3842
      %v3853 = vrcp.pop %v3845
      %v3854 = vrcp.pop %v3848
      %v3855 = vrcp.pop %v3851
      %v3856 = vmul.f32 %v3833, %v3852
      %v3857 = vmul.f32 %v3835, %v3853
      %v3858 = vmul.f32 %v3837, %v3854
      %v3859 = vmul.f32 %v3839, %v3855
      %v3860 = vpack.c.bf16 %v3857, %v3856
      %v3861 = vpack.c.bf16 %v3859, %v3858
      %3862 = vrot.lane.b32.xlu0 %v3562, 96
      %v3863 = vpop.permute.xlu0 %3862
      %3864 = vrot.lane.b32.xlu0 %v3563, 96
      %v3865 = vpop.permute.xlu0 %3864
      %v3868 = vsel %vm270, %v3860, 0
      %v3871 = vsel %vm270, %v3861, 0
      %v3874 = vsel %vm1474, %v3865, 0
      %3876 = vmatpush.bf16.msra.mxu0 0
      %3877 = vmatpush.bf16.msra.mxu0 0
      %3878 = vmatpush.bf16.msra.mxu0 0
      %3879 = vmatpush.bf16.msra.mxu0 0
      %3880 = vmatpush.bf16.msra.mxu0 0
      %3881 = vmatpush.bf16.msra.mxu0 0
      %3882 = vmatpush.bf16.msra.mxu0 %v3874
      %3883 = vmatpush.bf16.msra.mxu0 %v3863
      %3884 = vmatmul.bf16.gmra.mxu0 %v3868
      %v3885 = vpop.f32.mrf.mxu0
      %v3886 = vadd.f32 0.0, %v3885
      %v3887 = vpop.f32.mrf.mxu0
      %v3888 = vadd.f32 0.0, %v3887
      %3889 = vmatmul.bf16.gmra.mxu0 %v3871
      %v3890 = vpop.f32.mrf.mxu0
      %v3891 = vadd.f32 0.0, %v3890
      %v3892 = vpop.f32.mrf.mxu0
      %v3893 = vadd.f32 0.0, %v3892
      %3894 = vdwg.mxu0
      %v3895 = vpack.c.bf16 %v3888, %v3886
      %v3896 = vpack.c.bf16 %v3893, %v3891
      %v3899 = vunpack.c.l.b16 %v3181
      %v3900 = vunpack.c.l.b16 %v3182
      %v3901 = vpack.c.b16 %v3900, %v3899
      %v3904 = vsel %vm1378, %v3895, 0
      %v3907 = vsel %vm1378, %v3896, 0
      %3909 = vmatpush.bf16.msra.mxu0 0
      %3910 = vmatpush.bf16.msra.mxu0 0
      %3911 = vmatpush.bf16.msra.mxu0 0
      %3912 = vmatpush.bf16.msra.mxu0 0
      %3913 = vmatpush.bf16.msra.mxu0 0
      %3914 = vmatpush.bf16.msra.mxu0 0
      %3915 = vmatpush.bf16.msra.mxu0 0
      %3916 = vmatpush.bf16.msra.mxu0 %v3901
      %3917 = vmatmul.bf16.gmra.mxu0 %v3904
      %v3918 = vpop.f32.mrf.mxu0
      %v3919 = vadd.f32 0.0, %v3918
      %v3920 = vpop.f32.mrf.mxu0
      %v3921 = vadd.f32 0.0, %v3920
      %3922 = vmatmul.bf16.gmra.mxu0 %v3907
      %v3923 = vpop.f32.mrf.mxu0
      %v3924 = vadd.f32 0.0, %v3923
      %v3925 = vpop.f32.mrf.mxu0
      %v3926 = vadd.f32 0.0, %v3925
      %3927 = vdwg.mxu0
      %v3928 = vadd.f32 %v3768, %v3919
      %v3929 = vadd.f32 %v3770, %v3921
      %v3930 = vadd.f32 %v3773, %v3924
      %v3931 = vadd.f32 %v3775, %v3926
      %3932 = vrot.lane.b32.xlu0 %v3465, 80
      %v3933 = vpop.permute.xlu0 %3932
      %3934 = vrot.lane.b32.xlu0 %v3466, 80
      %v3935 = vpop.permute.xlu0 %3934
      %3936 = vrot.lane.b32.xlu0 %v3475, 80
      %v3937 = vpop.permute.xlu0 %3936
      %3938 = vrot.lane.b32.xlu0 %v3476, 80
      %v3939 = vpop.permute.xlu0 %3938
      %v3941 = vsel %vm1378, %v3933, 0
      %v3944 = vsel %vm1378, %v3935, 0
      %v3947 = vsel %vm1378, %v3937, 0
      %v3950 = vsel %vm1378, %v3939, 0
      %3952 = vmatpush.bf16.xpose.msra.mxu0 0
      %3953 = vmatpush.bf16.xpose.msra.mxu0 0
      %3954 = vmatpush.bf16.xpose.msra.mxu0 0
      %3955 = vmatpush.bf16.xpose.msra.mxu0 0
      %3956 = vmatpush.bf16.xpose.msra.mxu0 0
      %3957 = vmatpush.bf16.xpose.msra.mxu0 0
      %3958 = vmatpush.bf16.xpose.msra.mxu0 %v3950
      %3959 = vmatpush.bf16.xpose.msra.mxu0 %v3947
      %3960 = vmatmul.bf16.gmra.mxu0 %v3941
      %v3961 = vpop.f32.mrf.mxu0
      %v3962 = vadd.f32 0.0, %v3961
      %v3963 = vpop.f32.mrf.mxu0
      %v3964 = vadd.f32 0.0, %v3963
      %3965 = vmatmul.bf16.gmra.mxu0 %v3944
      %v3966 = vpop.f32.mrf.mxu0
      %v3967 = vadd.f32 0.0, %v3966
      %v3968 = vpop.f32.mrf.mxu0
      %v3969 = vadd.f32 0.0, %v3968
      %3970 = vdwg.mxu0
      %v3971 = vsel %vm270, %v3962, -inf
      %3972 = vmax.xlane.f32.xlu0 %v3971
      %v3973 = vpop.xlane.xlu0 %3972
      %v3974 = vsel %vm270, %v3964, -inf
      %3975 = vmax.xlane.f32.xlu0 %v3974
      %v3976 = vpop.xlane.xlu0 %3975
      %v3977 = vsel %vm270, %v3967, -inf
      %3978 = vmax.xlane.f32.xlu0 %v3977
      %v3979 = vpop.xlane.xlu0 %3978
      %v3980 = vsel %vm1419, %v3969, -inf
      %3981 = vmax.xlane.f32.xlu0 %v3980
      %v3982 = vpop.xlane.xlu0 %3981
      %v3983 = vsub.f32 %v3962, %v3973
      %v3984 = vsub.f32 %v3964, %v3976
      %v3985 = vsub.f32 %v3967, %v3979
      %v3986 = vsub.f32 %v3969, %v3982
      %v3987 = vmul.f32 %v3983, 1.442695
      %v3988 = vpow.pop %v3987
      %v3989 = vmul.f32 %v3984, 1.442695
      %v3990 = vpow.pop %v3989
      %v3991 = vmul.f32 %v3985, 1.442695
      %v3992 = vpow.pop %v3991
      %v3993 = vmul.f32 %v3986, 1.442695
      %v3994 = vpow.pop %v3993
      %v3995 = vsel %vm270, %v3988, 0.0
      %3996 = vadd.xlane.f32.xlu0 %v3995
      %v3997 = vpop.xlane.xlu0 %3996
      %v3998 = vsel %vm270, %v3990, 0.0
      %3999 = vadd.xlane.f32.xlu0 %v3998
      %v4000 = vpop.xlane.xlu0 %3999
      %v4001 = vsel %vm270, %v3992, 0.0
      %4002 = vadd.xlane.f32.xlu0 %v4001
      %v4003 = vpop.xlane.xlu0 %4002
      %v4004 = vsel %vm1419, %v3994, 0.0
      %4005 = vadd.xlane.f32.xlu0 %v4004
      %v4006 = vpop.xlane.xlu0 %4005
      %v4007 = vrcp.pop %v3997
      %v4008 = vrcp.pop %v4000
      %v4009 = vrcp.pop %v4003
      %v4010 = vrcp.pop %v4006
      %v4011 = vmul.f32 %v3988, %v4007
      %v4012 = vmul.f32 %v3990, %v4008
      %v4013 = vmul.f32 %v3992, %v4009
      %v4014 = vmul.f32 %v3994, %v4010
      %v4015 = vpack.c.bf16 %v4012, %v4011
      %v4016 = vpack.c.bf16 %v4014, %v4013
      %4017 = vrot.lane.b32.xlu0 %v3562, 80
      %v4018 = vpop.permute.xlu0 %4017
      %4019 = vrot.lane.b32.xlu0 %v3563, 80
      %v4020 = vpop.permute.xlu0 %4019
      %v4023 = vsel %vm270, %v4015, 0
      %v4026 = vsel %vm270, %v4016, 0
      %v4029 = vsel %vm1474, %v4020, 0
      %4031 = vmatpush.bf16.msra.mxu0 0
      %4032 = vmatpush.bf16.msra.mxu0 0
      %4033 = vmatpush.bf16.msra.mxu0 0
      %4034 = vmatpush.bf16.msra.mxu0 0
      %4035 = vmatpush.bf16.msra.mxu0 0
      %4036 = vmatpush.bf16.msra.mxu0 0
      %4037 = vmatpush.bf16.msra.mxu0 %v4029
      %4038 = vmatpush.bf16.msra.mxu0 %v4018
      %4039 = vmatmul.bf16.gmra.mxu0 %v4023
      %v4040 = vpop.f32.mrf.mxu0
      %v4041 = vadd.f32 0.0, %v4040
      %v4042 = vpop.f32.mrf.mxu0
      %v4043 = vadd.f32 0.0, %v4042
      %4044 = vmatmul.bf16.gmra.mxu0 %v4026
      %v4045 = vpop.f32.mrf.mxu0
      %v4046 = vadd.f32 0.0, %v4045
      %v4047 = vpop.f32.mrf.mxu0
      %v4048 = vadd.f32 0.0, %v4047
      %4049 = vdwg.mxu0
      %v4050 = vpack.c.bf16 %v4043, %v4041
      %v4051 = vpack.c.bf16 %v4048, %v4046
      %v4054 = vunpack.c.l.b16 %v3183
      %v4055 = vunpack.c.l.b16 %v3184
      %v4056 = vpack.c.b16 %v4055, %v4054
      %v4059 = vsel %vm1378, %v4050, 0
      %v4062 = vsel %vm1378, %v4051, 0
      %4064 = vmatpush.bf16.msra.mxu0 0
      %4065 = vmatpush.bf16.msra.mxu0 0
      %4066 = vmatpush.bf16.msra.mxu0 0
      %4067 = vmatpush.bf16.msra.mxu0 0
      %4068 = vmatpush.bf16.msra.mxu0 0
      %4069 = vmatpush.bf16.msra.mxu0 0
      %4070 = vmatpush.bf16.msra.mxu0 0
      %4071 = vmatpush.bf16.msra.mxu0 %v4056
      %4072 = vmatmul.bf16.gmra.mxu0 %v4059
      %v4073 = vpop.f32.mrf.mxu0
      %v4074 = vadd.f32 0.0, %v4073
      %v4075 = vpop.f32.mrf.mxu0
      %v4076 = vadd.f32 0.0, %v4075
      %4077 = vmatmul.bf16.gmra.mxu0 %v4062
      %v4078 = vpop.f32.mrf.mxu0
      %v4079 = vadd.f32 0.0, %v4078
      %v4080 = vpop.f32.mrf.mxu0
      %v4081 = vadd.f32 0.0, %v4080
      %4082 = vdwg.mxu0
      %v4083 = vadd.f32 %v3928, %v4074
      %v4084 = vadd.f32 %v3929, %v4076
      %v4085 = vadd.f32 %v3930, %v4079
      %v4086 = vadd.f32 %v3931, %v4081
      %4087 = vrot.lane.b32.xlu0 %v3465, 64
      %v4088 = vpop.permute.xlu0 %4087
      %4089 = vrot.lane.b32.xlu0 %v3466, 64
      %v4090 = vpop.permute.xlu0 %4089
      %4091 = vrot.lane.b32.xlu0 %v3475, 64
      %v4092 = vpop.permute.xlu0 %4091
      %4093 = vrot.lane.b32.xlu0 %v3476, 64
      %v4094 = vpop.permute.xlu0 %4093
      %v4096 = vsel %vm1378, %v4088, 0
      %v4099 = vsel %vm1378, %v4090, 0
      %v4102 = vsel %vm1378, %v4092, 0
      %v4105 = vsel %vm1378, %v4094, 0
      %4107 = vmatpush.bf16.xpose.msra.mxu0 0
      %4108 = vmatpush.bf16.xpose.msra.mxu0 0
      %4109 = vmatpush.bf16.xpose.msra.mxu0 0
      %4110 = vmatpush.bf16.xpose.msra.mxu0 0
      %4111 = vmatpush.bf16.xpose.msra.mxu0 0
      %4112 = vmatpush.bf16.xpose.msra.mxu0 0
      %4113 = vmatpush.bf16.xpose.msra.mxu0 %v4105
      %4114 = vmatpush.bf16.xpose.msra.mxu0 %v4102
      %4115 = vmatmul.bf16.gmra.mxu0 %v4096
      %v4116 = vpop.f32.mrf.mxu0
      %v4117 = vadd.f32 0.0, %v4116
      %v4118 = vpop.f32.mrf.mxu0
      %v4119 = vadd.f32 0.0, %v4118
      %4120 = vmatmul.bf16.gmra.mxu0 %v4099
      %v4121 = vpop.f32.mrf.mxu0
      %v4122 = vadd.f32 0.0, %v4121
      %v4123 = vpop.f32.mrf.mxu0
      %v4124 = vadd.f32 0.0, %v4123
      %4125 = vdwg.mxu0
      %v4126 = vsel %vm270, %v4117, -inf
      %4127 = vmax.xlane.f32.xlu0 %v4126
      %v4128 = vpop.xlane.xlu0 %4127
      %v4129 = vsel %vm270, %v4119, -inf
      %4130 = vmax.xlane.f32.xlu0 %v4129
      %v4131 = vpop.xlane.xlu0 %4130
      %v4132 = vsel %vm270, %v4122, -inf
      %4133 = vmax.xlane.f32.xlu0 %v4132
      %v4134 = vpop.xlane.xlu0 %4133
      %v4135 = vsel %vm1419, %v4124, -inf
      %4136 = vmax.xlane.f32.xlu0 %v4135
      %v4137 = vpop.xlane.xlu0 %4136
      %v4138 = vsub.f32 %v4117, %v4128
      %v4139 = vsub.f32 %v4119, %v4131
      %v4140 = vsub.f32 %v4122, %v4134
      %v4141 = vsub.f32 %v4124, %v4137
      %v4142 = vmul.f32 %v4138, 1.442695
      %v4143 = vpow.pop %v4142
      %v4144 = vmul.f32 %v4139, 1.442695
      %v4145 = vpow.pop %v4144
      %v4146 = vmul.f32 %v4140, 1.442695
      %v4147 = vpow.pop %v4146
      %v4148 = vmul.f32 %v4141, 1.442695
      %v4149 = vpow.pop %v4148
      %v4150 = vsel %vm270, %v4143, 0.0
      %4151 = vadd.xlane.f32.xlu0 %v4150
      %v4152 = vpop.xlane.xlu0 %4151
      %v4153 = vsel %vm270, %v4145, 0.0
      %4154 = vadd.xlane.f32.xlu0 %v4153
      %v4155 = vpop.xlane.xlu0 %4154
      %v4156 = vsel %vm270, %v4147, 0.0
      %4157 = vadd.xlane.f32.xlu0 %v4156
      %v4158 = vpop.xlane.xlu0 %4157
      %v4159 = vsel %vm1419, %v4149, 0.0
      %4160 = vadd.xlane.f32.xlu0 %v4159
      %v4161 = vpop.xlane.xlu0 %4160
      %v4162 = vrcp.pop %v4152
      %v4163 = vrcp.pop %v4155
      %v4164 = vrcp.pop %v4158
      %v4165 = vrcp.pop %v4161
      %v4166 = vmul.f32 %v4143, %v4162
      %v4167 = vmul.f32 %v4145, %v4163
      %v4168 = vmul.f32 %v4147, %v4164
      %v4169 = vmul.f32 %v4149, %v4165
      %v4170 = vpack.c.bf16 %v4167, %v4166
      %v4171 = vpack.c.bf16 %v4169, %v4168
      %4172 = vrot.lane.b32.xlu0 %v3562, 64
      %v4173 = vpop.permute.xlu0 %4172
      %4174 = vrot.lane.b32.xlu0 %v3563, 64
      %v4175 = vpop.permute.xlu0 %4174
      %v4178 = vsel %vm270, %v4170, 0
      %v4181 = vsel %vm270, %v4171, 0
      %v4184 = vsel %vm1474, %v4175, 0
      %4186 = vmatpush.bf16.msra.mxu0 0
      %4187 = vmatpush.bf16.msra.mxu0 0
      %4188 = vmatpush.bf16.msra.mxu0 0
      %4189 = vmatpush.bf16.msra.mxu0 0
      %4190 = vmatpush.bf16.msra.mxu0 0
      %4191 = vmatpush.bf16.msra.mxu0 0
      %4192 = vmatpush.bf16.msra.mxu0 %v4184
      %4193 = vmatpush.bf16.msra.mxu0 %v4173
      %4194 = vmatmul.bf16.gmra.mxu0 %v4178
      %v4195 = vpop.f32.mrf.mxu0
      %v4196 = vadd.f32 0.0, %v4195
      %v4197 = vpop.f32.mrf.mxu0
      %v4198 = vadd.f32 0.0, %v4197
      %4199 = vmatmul.bf16.gmra.mxu0 %v4181
      %v4200 = vpop.f32.mrf.mxu0
      %v4201 = vadd.f32 0.0, %v4200
      %v4202 = vpop.f32.mrf.mxu0
      %v4203 = vadd.f32 0.0, %v4202
      %4204 = vdwg.mxu0
      %v4205 = vpack.c.bf16 %v4198, %v4196
      %v4206 = vpack.c.bf16 %v4203, %v4201
      %v4209 = vunpack.c.l.b16 %v3185
      %v4210 = vunpack.c.l.b16 %v3186
      %v4211 = vpack.c.b16 %v4210, %v4209
      %v4214 = vsel %vm1378, %v4205, 0
      %v4217 = vsel %vm1378, %v4206, 0
      %4219 = vmatpush.bf16.msra.mxu0 0
      %4220 = vmatpush.bf16.msra.mxu0 0
      %4221 = vmatpush.bf16.msra.mxu0 0
      %4222 = vmatpush.bf16.msra.mxu0 0
      %4223 = vmatpush.bf16.msra.mxu0 0
      %4224 = vmatpush.bf16.msra.mxu0 0
      %4225 = vmatpush.bf16.msra.mxu0 0
      %4226 = vmatpush.bf16.msra.mxu0 %v4211
      %4227 = vmatmul.bf16.gmra.mxu0 %v4214
      %v4228 = vpop.f32.mrf.mxu0
      %v4229 = vadd.f32 0.0, %v4228
      %v4230 = vpop.f32.mrf.mxu0
      %v4231 = vadd.f32 0.0, %v4230
      %4232 = vmatmul.bf16.gmra.mxu0 %v4217
      %v4233 = vpop.f32.mrf.mxu0
      %v4234 = vadd.f32 0.0, %v4233
      %v4235 = vpop.f32.mrf.mxu0
      %v4236 = vadd.f32 0.0, %v4235
      %4237 = vdwg.mxu0
      %v4238 = vadd.f32 %v4083, %v4229
      %v4239 = vadd.f32 %v4084, %v4231
      %v4240 = vadd.f32 %v4085, %v4234
      %v4241 = vadd.f32 %v4086, %v4236
      %4242 = vrot.lane.b32.xlu0 %v3465, 48
      %v4243 = vpop.permute.xlu0 %4242
      %4244 = vrot.lane.b32.xlu0 %v3466, 48
      %v4245 = vpop.permute.xlu0 %4244
      %4246 = vrot.lane.b32.xlu0 %v3475, 48
      %v4247 = vpop.permute.xlu0 %4246
      %4248 = vrot.lane.b32.xlu0 %v3476, 48
      %v4249 = vpop.permute.xlu0 %4248
      %v4251 = vsel %vm1378, %v4243, 0
      %v4254 = vsel %vm1378, %v4245, 0
      %v4257 = vsel %vm1378, %v4247, 0
      %v4260 = vsel %vm1378, %v4249, 0
      %4262 = vmatpush.bf16.xpose.msra.mxu0 0
      %4263 = vmatpush.bf16.xpose.msra.mxu0 0
      %4264 = vmatpush.bf16.xpose.msra.mxu0 0
      %4265 = vmatpush.bf16.xpose.msra.mxu0 0
      %4266 = vmatpush.bf16.xpose.msra.mxu0 0
      %4267 = vmatpush.bf16.xpose.msra.mxu0 0
      %4268 = vmatpush.bf16.xpose.msra.mxu0 %v4260
      %4269 = vmatpush.bf16.xpose.msra.mxu0 %v4257
      %4270 = vmatmul.bf16.gmra.mxu0 %v4251
      %v4271 = vpop.f32.mrf.mxu0
      %v4272 = vadd.f32 0.0, %v4271
      %v4273 = vpop.f32.mrf.mxu0
      %v4274 = vadd.f32 0.0, %v4273
      %4275 = vmatmul.bf16.gmra.mxu0 %v4254
      %v4276 = vpop.f32.mrf.mxu0
      %v4277 = vadd.f32 0.0, %v4276
      %v4278 = vpop.f32.mrf.mxu0
      %v4279 = vadd.f32 0.0, %v4278
      %4280 = vdwg.mxu0
      %v4281 = vsel %vm270, %v4272, -inf
      %4282 = vmax.xlane.f32.xlu0 %v4281
      %v4283 = vpop.xlane.xlu0 %4282
      %v4284 = vsel %vm270, %v4274, -inf
      %4285 = vmax.xlane.f32.xlu0 %v4284
      %v4286 = vpop.xlane.xlu0 %4285
      %v4287 = vsel %vm270, %v4277, -inf
      %4288 = vmax.xlane.f32.xlu0 %v4287
      %v4289 = vpop.xlane.xlu0 %4288
      %v4290 = vsel %vm1419, %v4279, -inf
      %4291 = vmax.xlane.f32.xlu0 %v4290
      %v4292 = vpop.xlane.xlu0 %4291
      %v4293 = vsub.f32 %v4272, %v4283
      %v4294 = vsub.f32 %v4274, %v4286
      %v4295 = vsub.f32 %v4277, %v4289
      %v4296 = vsub.f32 %v4279, %v4292
      %v4297 = vmul.f32 %v4293, 1.442695
      %v4298 = vpow.pop %v4297
      %v4299 = vmul.f32 %v4294, 1.442695
      %v4300 = vpow.pop %v4299
      %v4301 = vmul.f32 %v4295, 1.442695
      %v4302 = vpow.pop %v4301
      %v4303 = vmul.f32 %v4296, 1.442695
      %v4304 = vpow.pop %v4303
      %v4305 = vsel %vm270, %v4298, 0.0
      %4306 = vadd.xlane.f32.xlu0 %v4305
      %v4307 = vpop.xlane.xlu0 %4306
      %v4308 = vsel %vm270, %v4300, 0.0
      %4309 = vadd.xlane.f32.xlu0 %v4308
      %v4310 = vpop.xlane.xlu0 %4309
      %v4311 = vsel %vm270, %v4302, 0.0
      %4312 = vadd.xlane.f32.xlu0 %v4311
      %v4313 = vpop.xlane.xlu0 %4312
      %v4314 = vsel %vm1419, %v4304, 0.0
      %4315 = vadd.xlane.f32.xlu0 %v4314
      %v4316 = vpop.xlane.xlu0 %4315
      %v4317 = vrcp.pop %v4307
      %v4318 = vrcp.pop %v4310
      %v4319 = vrcp.pop %v4313
      %v4320 = vrcp.pop %v4316
      %v4321 = vmul.f32 %v4298, %v4317
      %v4322 = vmul.f32 %v4300, %v4318
      %v4323 = vmul.f32 %v4302, %v4319
      %v4324 = vmul.f32 %v4304, %v4320
      %v4325 = vpack.c.bf16 %v4322, %v4321
      %v4326 = vpack.c.bf16 %v4324, %v4323
      %4327 = vrot.lane.b32.xlu0 %v3562, 48
      %v4328 = vpop.permute.xlu0 %4327
      %4329 = vrot.lane.b32.xlu0 %v3563, 48
      %v4330 = vpop.permute.xlu0 %4329
      %v4333 = vsel %vm270, %v4325, 0
      %v4336 = vsel %vm270, %v4326, 0
      %v4339 = vsel %vm1474, %v4330, 0
      %4341 = vmatpush.bf16.msra.mxu0 0
      %4342 = vmatpush.bf16.msra.mxu0 0
      %4343 = vmatpush.bf16.msra.mxu0 0
      %4344 = vmatpush.bf16.msra.mxu0 0
      %4345 = vmatpush.bf16.msra.mxu0 0
      %4346 = vmatpush.bf16.msra.mxu0 0
      %4347 = vmatpush.bf16.msra.mxu0 %v4339
      %4348 = vmatpush.bf16.msra.mxu0 %v4328
      %4349 = vmatmul.bf16.gmra.mxu0 %v4333
      %v4350 = vpop.f32.mrf.mxu0
      %v4351 = vadd.f32 0.0, %v4350
      %v4352 = vpop.f32.mrf.mxu0
      %v4353 = vadd.f32 0.0, %v4352
      %4354 = vmatmul.bf16.gmra.mxu0 %v4336
      %v4355 = vpop.f32.mrf.mxu0
      %v4356 = vadd.f32 0.0, %v4355
      %v4357 = vpop.f32.mrf.mxu0
      %v4358 = vadd.f32 0.0, %v4357
      %4359 = vdwg.mxu0
      %v4360 = vpack.c.bf16 %v4353, %v4351
      %v4361 = vpack.c.bf16 %v4358, %v4356
      %v4364 = vunpack.c.l.b16 %v3187
      %v4365 = vunpack.c.l.b16 %v3188
      %v4366 = vpack.c.b16 %v4365, %v4364
      %v4369 = vsel %vm1378, %v4360, 0
      %v4372 = vsel %vm1378, %v4361, 0
      %4374 = vmatpush.bf16.msra.mxu0 0
      %4375 = vmatpush.bf16.msra.mxu0 0
      %4376 = vmatpush.bf16.msra.mxu0 0
      %4377 = vmatpush.bf16.msra.mxu0 0
      %4378 = vmatpush.bf16.msra.mxu0 0
      %4379 = vmatpush.bf16.msra.mxu0 0
      %4380 = vmatpush.bf16.msra.mxu0 0
      %4381 = vmatpush.bf16.msra.mxu0 %v4366
      %4382 = vmatmul.bf16.gmra.mxu0 %v4369
      %v4383 = vpop.f32.mrf.mxu0
      %v4384 = vadd.f32 0.0, %v4383
      %v4385 = vpop.f32.mrf.mxu0
      %v4386 = vadd.f32 0.0, %v4385
      %4387 = vmatmul.bf16.gmra.mxu0 %v4372
      %v4388 = vpop.f32.mrf.mxu0
      %v4389 = vadd.f32 0.0, %v4388
      %v4390 = vpop.f32.mrf.mxu0
      %v4391 = vadd.f32 0.0, %v4390
      %4392 = vdwg.mxu0
      %v4393 = vadd.f32 %v4238, %v4384
      %v4394 = vadd.f32 %v4239, %v4386
      %v4395 = vadd.f32 %v4240, %v4389
      %v4396 = vadd.f32 %v4241, %v4391
      %4397 = vrot.lane.b32.xlu0 %v3465, 32
      %v4398 = vpop.permute.xlu0 %4397
      %4399 = vrot.lane.b32.xlu0 %v3466, 32
      %v4400 = vpop.permute.xlu0 %4399
      %4401 = vrot.lane.b32.xlu0 %v3475, 32
      %v4402 = vpop.permute.xlu0 %4401
      %4403 = vrot.lane.b32.xlu0 %v3476, 32
      %v4404 = vpop.permute.xlu0 %4403
      %v4406 = vsel %vm1378, %v4398, 0
      %v4409 = vsel %vm1378, %v4400, 0
      %v4412 = vsel %vm1378, %v4402, 0
      %v4415 = vsel %vm1378, %v4404, 0
      %4417 = vmatpush.bf16.xpose.msra.mxu0 0
      %4418 = vmatpush.bf16.xpose.msra.mxu0 0
      %4419 = vmatpush.bf16.xpose.msra.mxu0 0
      %4420 = vmatpush.bf16.xpose.msra.mxu0 0
      %4421 = vmatpush.bf16.xpose.msra.mxu0 0
      %4422 = vmatpush.bf16.xpose.msra.mxu0 0
      %4423 = vmatpush.bf16.xpose.msra.mxu0 %v4415
      %4424 = vmatpush.bf16.xpose.msra.mxu0 %v4412
      %4425 = vmatmul.bf16.gmra.mxu0 %v4406
      %v4426 = vpop.f32.mrf.mxu0
      %v4427 = vadd.f32 0.0, %v4426
      %v4428 = vpop.f32.mrf.mxu0
      %v4429 = vadd.f32 0.0, %v4428
      %4430 = vmatmul.bf16.gmra.mxu0 %v4409
      %v4431 = vpop.f32.mrf.mxu0
      %v4432 = vadd.f32 0.0, %v4431
      %v4433 = vpop.f32.mrf.mxu0
      %v4434 = vadd.f32 0.0, %v4433
      %4435 = vdwg.mxu0
      %v4436 = vsel %vm270, %v4427, -inf
      %4437 = vmax.xlane.f32.xlu0 %v4436
      %v4438 = vpop.xlane.xlu0 %4437
      %v4439 = vsel %vm270, %v4429, -inf
      %4440 = vmax.xlane.f32.xlu0 %v4439
      %v4441 = vpop.xlane.xlu0 %4440
      %v4442 = vsel %vm270, %v4432, -inf
      %4443 = vmax.xlane.f32.xlu0 %v4442
      %v4444 = vpop.xlane.xlu0 %4443
      %v4445 = vsel %vm1419, %v4434, -inf
      %4446 = vmax.xlane.f32.xlu0 %v4445
      %v4447 = vpop.xlane.xlu0 %4446
      %v4448 = vsub.f32 %v4427, %v4438
      %v4449 = vsub.f32 %v4429, %v4441
      %v4450 = vsub.f32 %v4432, %v4444
      %v4451 = vsub.f32 %v4434, %v4447
      %v4452 = vmul.f32 %v4448, 1.442695
      %v4453 = vpow.pop %v4452
      %v4454 = vmul.f32 %v4449, 1.442695
      %v4455 = vpow.pop %v4454
      %v4456 = vmul.f32 %v4450, 1.442695
      %v4457 = vpow.pop %v4456
      %v4458 = vmul.f32 %v4451, 1.442695
      %v4459 = vpow.pop %v4458
      %v4460 = vsel %vm270, %v4453, 0.0
      %4461 = vadd.xlane.f32.xlu0 %v4460
      %v4462 = vpop.xlane.xlu0 %4461
      %v4463 = vsel %vm270, %v4455, 0.0
      %4464 = vadd.xlane.f32.xlu0 %v4463
      %v4465 = vpop.xlane.xlu0 %4464
      %v4466 = vsel %vm270, %v4457, 0.0
      %4467 = vadd.xlane.f32.xlu0 %v4466
      %v4468 = vpop.xlane.xlu0 %4467
      %v4469 = vsel %vm1419, %v4459, 0.0
      %4470 = vadd.xlane.f32.xlu0 %v4469
      %v4471 = vpop.xlane.xlu0 %4470
      %v4472 = vrcp.pop %v4462
      %v4473 = vrcp.pop %v4465
      %v4474 = vrcp.pop %v4468
      %v4475 = vrcp.pop %v4471
      %v4476 = vmul.f32 %v4453, %v4472
      %v4477 = vmul.f32 %v4455, %v4473
      %v4478 = vmul.f32 %v4457, %v4474
      %v4479 = vmul.f32 %v4459, %v4475
      %v4480 = vpack.c.bf16 %v4477, %v4476
      %v4481 = vpack.c.bf16 %v4479, %v4478
      %4482 = vrot.lane.b32.xlu0 %v3562, 32
      %v4483 = vpop.permute.xlu0 %4482
      %4484 = vrot.lane.b32.xlu0 %v3563, 32
      %v4485 = vpop.permute.xlu0 %4484
      %v4488 = vsel %vm270, %v4480, 0
      %v4491 = vsel %vm270, %v4481, 0
      %v4494 = vsel %vm1474, %v4485, 0
      %4496 = vmatpush.bf16.msra.mxu0 0
      %4497 = vmatpush.bf16.msra.mxu0 0
      %4498 = vmatpush.bf16.msra.mxu0 0
      %4499 = vmatpush.bf16.msra.mxu0 0
      %4500 = vmatpush.bf16.msra.mxu0 0
      %4501 = vmatpush.bf16.msra.mxu0 0
      %4502 = vmatpush.bf16.msra.mxu0 %v4494
      %4503 = vmatpush.bf16.msra.mxu0 %v4483
      %4504 = vmatmul.bf16.gmra.mxu0 %v4488
      %v4505 = vpop.f32.mrf.mxu0
      %v4506 = vadd.f32 0.0, %v4505
      %v4507 = vpop.f32.mrf.mxu0
      %v4508 = vadd.f32 0.0, %v4507
      %4509 = vmatmul.bf16.gmra.mxu0 %v4491
      %v4510 = vpop.f32.mrf.mxu0
      %v4511 = vadd.f32 0.0, %v4510
      %v4512 = vpop.f32.mrf.mxu0
      %v4513 = vadd.f32 0.0, %v4512
      %4514 = vdwg.mxu0
      %v4515 = vpack.c.bf16 %v4508, %v4506
      %v4516 = vpack.c.bf16 %v4513, %v4511
      %v4519 = vunpack.c.l.b16 %v3189
      %v4520 = vunpack.c.l.b16 %v3190
      %v4521 = vpack.c.b16 %v4520, %v4519
      %v4524 = vsel %vm1378, %v4515, 0
      %v4527 = vsel %vm1378, %v4516, 0
      %4529 = vmatpush.bf16.msra.mxu0 0
      %4530 = vmatpush.bf16.msra.mxu0 0
      %4531 = vmatpush.bf16.msra.mxu0 0
      %4532 = vmatpush.bf16.msra.mxu0 0
      %4533 = vmatpush.bf16.msra.mxu0 0
      %4534 = vmatpush.bf16.msra.mxu0 0
      %4535 = vmatpush.bf16.msra.mxu0 0
      %4536 = vmatpush.bf16.msra.mxu0 %v4521
      %4537 = vmatmul.bf16.gmra.mxu0 %v4524
      %v4538 = vpop.f32.mrf.mxu0
      %v4539 = vadd.f32 0.0, %v4538
      %v4540 = vpop.f32.mrf.mxu0
      %v4541 = vadd.f32 0.0, %v4540
      %4542 = vmatmul.bf16.gmra.mxu0 %v4527
      %v4543 = vpop.f32.mrf.mxu0
      %v4544 = vadd.f32 0.0, %v4543
      %v4545 = vpop.f32.mrf.mxu0
      %v4546 = vadd.f32 0.0, %v4545
      %4547 = vdwg.mxu0
      %v4548 = vadd.f32 %v4393, %v4539
      %v4549 = vadd.f32 %v4394, %v4541
      %v4550 = vadd.f32 %v4395, %v4544
      %v4551 = vadd.f32 %v4396, %v4546
      %4552 = vrot.lane.b32.xlu0 %v3465, 16
      %v4553 = vpop.permute.xlu0 %4552
      %4554 = vrot.lane.b32.xlu0 %v3466, 16
      %v4555 = vpop.permute.xlu0 %4554
      %4556 = vrot.lane.b32.xlu0 %v3475, 16
      %v4557 = vpop.permute.xlu0 %4556
      %4558 = vrot.lane.b32.xlu0 %v3476, 16
      %v4559 = vpop.permute.xlu0 %4558
      %v4561 = vsel %vm1378, %v4553, 0
      %v4564 = vsel %vm1378, %v4555, 0
      %v4567 = vsel %vm1378, %v4557, 0
      %v4570 = vsel %vm1378, %v4559, 0
      %4572 = vmatpush.bf16.xpose.msra.mxu0 0
      %4573 = vmatpush.bf16.xpose.msra.mxu0 0
      %4574 = vmatpush.bf16.xpose.msra.mxu0 0
      %4575 = vmatpush.bf16.xpose.msra.mxu0 0
      %4576 = vmatpush.bf16.xpose.msra.mxu0 0
      %4577 = vmatpush.bf16.xpose.msra.mxu0 0
      %4578 = vmatpush.bf16.xpose.msra.mxu0 %v4570
      %4579 = vmatpush.bf16.xpose.msra.mxu0 %v4567
      %4580 = vmatmul.bf16.gmra.mxu0 %v4561
      %v4581 = vpop.f32.mrf.mxu0
      %v4582 = vadd.f32 0.0, %v4581
      %v4583 = vpop.f32.mrf.mxu0
      %v4584 = vadd.f32 0.0, %v4583
      %4585 = vmatmul.bf16.gmra.mxu0 %v4564
      %v4586 = vpop.f32.mrf.mxu0
      %v4587 = vadd.f32 0.0, %v4586
      %v4588 = vpop.f32.mrf.mxu0
      %v4589 = vadd.f32 0.0, %v4588
      %4590 = vdwg.mxu0
      %v4591 = vsel %vm270, %v4582, -inf
      %4592 = vmax.xlane.f32.xlu0 %v4591
      %v4593 = vpop.xlane.xlu0 %4592
      %v4594 = vsel %vm270, %v4584, -inf
      %4595 = vmax.xlane.f32.xlu0 %v4594
      %v4596 = vpop.xlane.xlu0 %4595
      %v4597 = vsel %vm270, %v4587, -inf
      %4598 = vmax.xlane.f32.xlu0 %v4597
      %v4599 = vpop.xlane.xlu0 %4598
      %v4600 = vsel %vm1419, %v4589, -inf
      %4601 = vmax.xlane.f32.xlu0 %v4600
      %v4602 = vpop.xlane.xlu0 %4601
      %v4603 = vsub.f32 %v4582, %v4593
      %v4604 = vsub.f32 %v4584, %v4596
      %v4605 = vsub.f32 %v4587, %v4599
      %v4606 = vsub.f32 %v4589, %v4602
      %v4607 = vmul.f32 %v4603, 1.442695
      %v4608 = vpow.pop %v4607
      %v4609 = vmul.f32 %v4604, 1.442695
      %v4610 = vpow.pop %v4609
      %v4611 = vmul.f32 %v4605, 1.442695
      %v4612 = vpow.pop %v4611
      %v4613 = vmul.f32 %v4606, 1.442695
      %v4614 = vpow.pop %v4613
      %v4615 = vsel %vm270, %v4608, 0.0
      %4616 = vadd.xlane.f32.xlu0 %v4615
      %v4617 = vpop.xlane.xlu0 %4616
      %v4618 = vsel %vm270, %v4610, 0.0
      %4619 = vadd.xlane.f32.xlu0 %v4618
      %v4620 = vpop.xlane.xlu0 %4619
      %v4621 = vsel %vm270, %v4612, 0.0
      %4622 = vadd.xlane.f32.xlu0 %v4621
      %v4623 = vpop.xlane.xlu0 %4622
      %v4624 = vsel %vm1419, %v4614, 0.0
      %4625 = vadd.xlane.f32.xlu0 %v4624
      %v4626 = vpop.xlane.xlu0 %4625
      %v4627 = vrcp.pop %v4617
      %v4628 = vrcp.pop %v4620
      %v4629 = vrcp.pop %v4623
      %v4630 = vrcp.pop %v4626
      %v4631 = vmul.f32 %v4608, %v4627
      %v4632 = vmul.f32 %v4610, %v4628
      %v4633 = vmul.f32 %v4612, %v4629
      %v4634 = vmul.f32 %v4614, %v4630
      %v4635 = vpack.c.bf16 %v4632, %v4631
      %v4636 = vpack.c.bf16 %v4634, %v4633
      %4637 = vrot.lane.b32.xlu0 %v3562, 16
      %v4638 = vpop.permute.xlu0 %4637
      %4639 = vrot.lane.b32.xlu0 %v3563, 16
      %v4640 = vpop.permute.xlu0 %4639
      %v4643 = vsel %vm270, %v4635, 0
      %v4646 = vsel %vm270, %v4636, 0
      %v4649 = vsel %vm1474, %v4640, 0
      %4651 = vmatpush.bf16.msra.mxu0 0
      %4652 = vmatpush.bf16.msra.mxu0 0
      %4653 = vmatpush.bf16.msra.mxu0 0
      %4654 = vmatpush.bf16.msra.mxu0 0
      %4655 = vmatpush.bf16.msra.mxu0 0
      %4656 = vmatpush.bf16.msra.mxu0 0
      %4657 = vmatpush.bf16.msra.mxu0 %v4649
      %4658 = vmatpush.bf16.msra.mxu0 %v4638
      %4659 = vmatmul.bf16.gmra.mxu0 %v4643
      %v4660 = vpop.f32.mrf.mxu0
      %v4661 = vadd.f32 0.0, %v4660
      %v4662 = vpop.f32.mrf.mxu0
      %v4663 = vadd.f32 0.0, %v4662
      %4664 = vmatmul.bf16.gmra.mxu0 %v4646
      %v4665 = vpop.f32.mrf.mxu0
      %v4666 = vadd.f32 0.0, %v4665
      %v4667 = vpop.f32.mrf.mxu0
      %v4668 = vadd.f32 0.0, %v4667
      %4669 = vdwg.mxu0
      %v4670 = vpack.c.bf16 %v4663, %v4661
      %v4671 = vpack.c.bf16 %v4668, %v4666
      %v4674 = vunpack.c.l.b16 %v3191
      %v4675 = vunpack.c.l.b16 %v3192
      %v4676 = vpack.c.b16 %v4675, %v4674
      %v4679 = vsel %vm1378, %v4670, 0
      %v4682 = vsel %vm1378, %v4671, 0
      %4684 = vmatpush.bf16.msra.mxu0 0
      %4685 = vmatpush.bf16.msra.mxu0 0
      %4686 = vmatpush.bf16.msra.mxu0 0
      %4687 = vmatpush.bf16.msra.mxu0 0
      %4688 = vmatpush.bf16.msra.mxu0 0
      %4689 = vmatpush.bf16.msra.mxu0 0
      %4690 = vmatpush.bf16.msra.mxu0 0
      %4691 = vmatpush.bf16.msra.mxu0 %v4676
      %4692 = vmatmul.bf16.gmra.mxu0 %v4679
      %v4693 = vpop.f32.mrf.mxu0
      %v4694 = vadd.f32 0.0, %v4693
      %v4695 = vpop.f32.mrf.mxu0
      %v4696 = vadd.f32 0.0, %v4695
      %4697 = vmatmul.bf16.gmra.mxu0 %v4682
      %v4698 = vpop.f32.mrf.mxu0
      %v4699 = vadd.f32 0.0, %v4698
      %v4700 = vpop.f32.mrf.mxu0
      %v4701 = vadd.f32 0.0, %v4700
      %4702 = vdwg.mxu0
      %v4703 = vadd.f32 %v4548, %v4694
      %v4704 = vadd.f32 %v4549, %v4696
      %v4705 = vadd.f32 %v4550, %v4699
      %v4706 = vadd.f32 %v4551, %v4701
      %v4707 = vadd.f32 %v4703, %v3243
      %v4708 = vadd.f32 %v4704, %v3243
      %v4709 = vadd.f32 %v4705, %v3243
      %v4710 = vadd.f32 %v4706, %v3243
      %v4711 = vadd.f32 %v3141, %v4707
      %v4712 = vadd.f32 %v3142, %v4708
      %v4713 = vadd.f32 %v3143, %v4709
      %v4714 = vadd.f32 %v3144, %v4710
      %4715 = vadd.xlane.f32.xlu0 %v4711
      %v4716 = vpop.xlane.xlu0 %4715
      %4717 = vadd.xlane.f32.xlu0 %v4712
      %v4718 = vpop.xlane.xlu0 %4717
      %4719 = vadd.xlane.f32.xlu0 %v4713
      %v4720 = vpop.xlane.xlu0 %4719
      %v4721 = vsel %vm283, %v4714, 0.0
      %4722 = vadd.xlane.f32.xlu0 %v4721
      %v4723 = vpop.xlane.xlu0 %4722
      %v4724 = vmul.f32 %v4716, %v2634
      %v4725 = vmul.f32 %v4718, %v2634
      %v4726 = vmul.f32 %v4720, %v2634
      %v4727 = vmul.f32 %v4723, %v2634
      %v4728 = vsub.f32 %v4711, %v4724
      %v4729 = vsub.f32 %v4712, %v4725
      %v4730 = vsub.f32 %v4713, %v4726
      %v4731 = vsub.f32 %v4714, %v4727
      %v4732 = vmul.f32 %v4728, %v4728
      %v4733 = vmul.f32 %v4729, %v4729
      %v4734 = vmul.f32 %v4730, %v4730
      %v4735 = vmul.f32 %v4731, %v4731
      %4736 = vadd.xlane.f32.xlu0 %v4732
      %v4737 = vpop.xlane.xlu0 %4736
      %4738 = vadd.xlane.f32.xlu0 %v4733
      %v4739 = vpop.xlane.xlu0 %4738
      %4740 = vadd.xlane.f32.xlu0 %v4734
      %v4741 = vpop.xlane.xlu0 %4740
      %v4742 = vsel %vm283, %v4735, 0.0
      %4743 = vadd.xlane.f32.xlu0 %v4742
      %v4744 = vpop.xlane.xlu0 %4743
      %v4745 = vmul.f32 %v4737, %v2634
      %v4746 = vmul.f32 %v4739, %v2634
      %v4747 = vmul.f32 %v4741, %v2634
      %v4748 = vmul.f32 %v4744, %v2634
      %v4749 = vadd.f32 %v4745, 1e-05
      %v4750 = vadd.f32 %v4746, 1e-05
      %v4751 = vadd.f32 %v4747, 1e-05
      %v4752 = vadd.f32 %v4748, 1e-05
      %v4753 = vrsqrt.pop %v4749
      %v4754 = vmul.f32 %v4753, %v4749
      %v4755 = vmul.f32 %v4754, %v4753
      %v4756 = vmul.f32 0.5, %v4755
      %v4757 = vsub.f32 1.5, %v4756
      %v4758 = vmul.f32 %v4753, %v4757
      %vm4759 = vweird.f32 %v4749
      %vm4760 = vweird.f32 %v4753
      %vm4761 = vmor %vm4759, %vm4760
      %v4762 = vsel %vm4761, %v4753, %v4758
      %v4763 = vrsqrt.pop %v4750
      %v4764 = vmul.f32 %v4763, %v4750
      %v4765 = vmul.f32 %v4764, %v4763
      %v4766 = vmul.f32 0.5, %v4765
      %v4767 = vsub.f32 1.5, %v4766
      %v4768 = vmul.f32 %v4763, %v4767
      %vm4769 = vweird.f32 %v4750
      %vm4770 = vweird.f32 %v4763
      %vm4771 = vmor %vm4769, %vm4770
      %v4772 = vsel %vm4771, %v4763, %v4768
      %v4773 = vrsqrt.pop %v4751
      %v4774 = vmul.f32 %v4773, %v4751
      %v4775 = vmul.f32 %v4774, %v4773
      %v4776 = vmul.f32 0.5, %v4775
      %v4777 = vsub.f32 1.5, %v4776
      %v4778 = vmul.f32 %v4773, %v4777
      %vm4779 = vweird.f32 %v4751
      %vm4780 = vweird.f32 %v4773
      %vm4781 = vmor %vm4779, %vm4780
      %v4782 = vsel %vm4781, %v4773, %v4778
      %v4783 = vrsqrt.pop %v4752
      %v4784 = vmul.f32 %v4783, %v4752
      %v4785 = vmul.f32 %v4784, %v4783
      %v4786 = vmul.f32 0.5, %v4785
      %v4787 = vsub.f32 1.5, %v4786
      %v4788 = vmul.f32 %v4783, %v4787
      %vm4789 = vweird.f32 %v4752
      %vm4790 = vweird.f32 %v4783
      %vm4791 = vmor %vm4789, %vm4790
      %v4792 = vsel %vm4791, %v4783, %v4788
      %v4793 = vmul.f32 %v4728, %v4762
      %v4794 = vmul.f32 %v4729, %v4772
      %v4795 = vmul.f32 %v4730, %v4782
      %v4796 = vmul.f32 %v4731, %v4792
      %v4797 = vmul.f32 %v4793, %v3244
      %v4798 = vmul.f32 %v4794, %v3244
      %v4799 = vmul.f32 %v4795, %v3244
      %v4800 = vmul.f32 %v4796, %v3244
      %v4801 = vadd.f32 %v4797, %v3245
      %v4802 = vadd.f32 %v4798, %v3245
      %v4803 = vadd.f32 %v4799, %v3245
      %v4804 = vadd.f32 %v4800, %v3245
      %v4805 = vpack.c.bf16 %v4802, %v4801
      %v4806 = vpack.c.bf16 %v4804, %v4803
      %v4808 = vperm.slane %v3247, 0
      %v4809 = vperm.slane %v3247, 1
      %v4828 = vunpack.c.l.b16 %v3193
      %v4829 = vunpack.c.h.b16 %v3193
      %v4830 = vunpack.c.l.b16 %v3194
      %v4831 = vunpack.c.h.b16 %v3194
      %v4832 = vunpack.c.l.b16 %v3195
      %v4833 = vunpack.c.h.b16 %v3195
      %v4834 = vunpack.c.l.b16 %v3196
      %v4835 = vunpack.c.h.b16 %v3196
      %v4836 = vunpack.c.l.b16 %v3197
      %v4837 = vunpack.c.h.b16 %v3197
      %v4838 = vunpack.c.l.b16 %v3198
      %v4839 = vunpack.c.h.b16 %v3198
      %v4840 = vunpack.c.l.b16 %v3199
      %v4841 = vunpack.c.h.b16 %v3199
      %v4842 = vunpack.c.l.b16 %v3200
      %v4843 = vunpack.c.h.b16 %v3200
      %v4844 = vunpack.c.l.b16 %v3201
      %v4845 = vunpack.c.h.b16 %v3201
      %v4846 = vunpack.c.l.b16 %v3202
      %v4847 = vunpack.c.h.b16 %v3202
      %v4848 = vunpack.c.l.b16 %v3203
      %v4849 = vunpack.c.h.b16 %v3203
      %v4850 = vunpack.c.l.b16 %v3204
      %v4851 = vunpack.c.h.b16 %v3204
      %v4852 = vunpack.c.l.b16 %v3205
      %v4853 = vunpack.c.h.b16 %v3205
      %v4854 = vunpack.c.l.b16 %v3206
      %v4855 = vunpack.c.h.b16 %v3206
      %v4856 = vunpack.c.l.b16 %v3207
      %v4857 = vunpack.c.h.b16 %v3207
      %v4858 = vunpack.c.l.b16 %v3208
      %v4859 = vunpack.c.h.b16 %v3208
      %v4860 = vpack.c.b16 %v4830, %v4828
      %v4861 = vpack.c.b16 %v4831, %v4829
      %v4862 = vpack.c.b16 %v4834, %v4832
      %v4863 = vpack.c.b16 %v4835, %v4833
      %v4864 = vpack.c.b16 %v4838, %v4836
      %v4865 = vpack.c.b16 %v4839, %v4837
      %v4866 = vpack.c.b16 %v4842, %v4840
      %v4867 = vpack.c.b16 %v4843, %v4841
      %v4868 = vpack.c.b16 %v4846, %v4844
      %v4869 = vpack.c.b16 %v4847, %v4845
      %v4870 = vpack.c.b16 %v4850, %v4848
      %v4871 = vpack.c.b16 %v4851, %v4849
      %v4872 = vpack.c.b16 %v4854, %v4852
      %v4873 = vpack.c.b16 %v4855, %v4853
      %v4874 = vpack.c.b16 %v4858, %v4856
      %v4875 = vpack.c.b16 %v4859, %v4857
      %4892 = vmatpush.bf16.msra.mxu0 %v4874
      %4893 = vmatpush.bf16.msra.mxu0 %v4872
      %4894 = vmatpush.bf16.msra.mxu0 %v4870
      %4895 = vmatpush.bf16.msra.mxu0 %v4868
      %4896 = vmatpush.bf16.msra.mxu0 %v4866
      %4897 = vmatpush.bf16.msra.mxu0 %v4864
      %4898 = vmatpush.bf16.msra.mxu0 %v4862
      %4899 = vmatpush.bf16.msra.mxu0 %v4860
      %4900 = vmatmul.bf16.gmra.mxu0 %v4805
      %v4901 = vpop.f32.mrf.mxu0
      %v4902 = vadd.f32 %v4808, %v4901
      %v4903 = vpop.f32.mrf.mxu0
      %v4904 = vadd.f32 %v4808, %v4903
      %4905 = vmatmul.bf16.gmra.mxu0 %v4806
      %v4906 = vpop.f32.mrf.mxu0
      %v4907 = vadd.f32 %v4808, %v4906
      %v4908 = vpop.f32.mrf.mxu0
      %v4909 = vadd.f32 %v4808, %v4908
      %4910 = vdwg.mxu0
      %4911 = vmatpush.bf16.msra.mxu0 %v4875
      %4912 = vmatpush.bf16.msra.mxu0 %v4873
      %4913 = vmatpush.bf16.msra.mxu0 %v4871
      %4914 = vmatpush.bf16.msra.mxu0 %v4869
      %4915 = vmatpush.bf16.msra.mxu0 %v4867
      %4916 = vmatpush.bf16.msra.mxu0 %v4865
      %4917 = vmatpush.bf16.msra.mxu0 %v4863
      %4918 = vmatpush.bf16.msra.mxu0 %v4861
      %4919 = vmatmul.bf16.gmra.mxu0 %v4805
      %v4920 = vpop.f32.mrf.mxu0
      %v4921 = vadd.f32 %v4809, %v4920
      %v4922 = vpop.f32.mrf.mxu0
      %v4923 = vadd.f32 %v4809, %v4922
      %4924 = vmatmul.bf16.gmra.mxu0 %v4806
      %v4925 = vpop.f32.mrf.mxu0
      %v4926 = vadd.f32 %v4809, %v4925
      %v4927 = vpop.f32.mrf.mxu0
      %v4928 = vadd.f32 %v4809, %v4927
      %4929 = vdwg.mxu0
      %v4930 = vmul.f32 %v4902, 0.5
      %v4931 = vmul.f32 %v4921, 0.5
      %v4932 = vmul.f32 %v4904, 0.5
      %v4933 = vmul.f32 %v4923, 0.5
      %v4934 = vmul.f32 %v4907, 0.5
      %v4935 = vmul.f32 %v4926, 0.5
      %v4936 = vmul.f32 %v4909, 0.5
      %v4937 = vmul.f32 %v4928, 0.5
      %v4938 = vmul.f32 %v4902, 0.044715
      %v4939 = vmul.f32 %v4921, 0.044715
      %v4940 = vmul.f32 %v4904, 0.044715
      %v4941 = vmul.f32 %v4923, 0.044715
      %v4942 = vmul.f32 %v4907, 0.044715
      %v4943 = vmul.f32 %v4926, 0.044715
      %v4944 = vmul.f32 %v4909, 0.044715
      %v4945 = vmul.f32 %v4928, 0.044715
      %v4946 = vmul.f32 %v4938, %v4902
      %v4947 = vmul.f32 %v4939, %v4921
      %v4948 = vmul.f32 %v4940, %v4904
      %v4949 = vmul.f32 %v4941, %v4923
      %v4950 = vmul.f32 %v4942, %v4907
      %v4951 = vmul.f32 %v4943, %v4926
      %v4952 = vmul.f32 %v4944, %v4909
      %v4953 = vmul.f32 %v4945, %v4928
      %v4954 = vmul.f32 %v4946, %v4902
      %v4955 = vmul.f32 %v4947, %v4921
      %v4956 = vmul.f32 %v4948, %v4904
      %v4957 = vmul.f32 %v4949, %v4923
      %v4958 = vmul.f32 %v4950, %v4907
      %v4959 = vmul.f32 %v4951, %v4926
      %v4960 = vmul.f32 %v4952, %v4909
      %v4961 = vmul.f32 %v4953, %v4928
      %v4962 = vadd.f32 %v4902, %v4954
      %v4963 = vadd.f32 %v4921, %v4955
      %v4964 = vadd.f32 %v4904, %v4956
      %v4965 = vadd.f32 %v4923, %v4957
      %v4966 = vadd.f32 %v4907, %v4958
      %v4967 = vadd.f32 %v4926, %v4959
      %v4968 = vadd.f32 %v4909, %v4960
      %v4969 = vadd.f32 %v4928, %v4961
      %v4970 = vmul.f32 %v4962, 0.7978846
      %v4971 = vmul.f32 %v4963, 0.7978846
      %v4972 = vmul.f32 %v4964, 0.7978846
      %v4973 = vmul.f32 %v4965, 0.7978846
      %v4974 = vmul.f32 %v4966, 0.7978846
      %v4975 = vmul.f32 %v4967, 0.7978846
      %v4976 = vmul.f32 %v4968, 0.7978846
      %v4977 = vmul.f32 %v4969, 0.7978846
      %v4978 = vtanh.pop %v4970
      %v4979 = vtanh.pop %v4971
      %v4980 = vtanh.pop %v4972
      %v4981 = vtanh.pop %v4973
      %v4982 = vtanh.pop %v4974
      %v4983 = vtanh.pop %v4975
      %v4984 = vtanh.pop %v4976
      %v4985 = vtanh.pop %v4977
      %v4986 = vadd.f32 %v4978, 1.0
      %v4987 = vadd.f32 %v4979, 1.0
      %v4988 = vadd.f32 %v4980, 1.0
      %v4989 = vadd.f32 %v4981, 1.0
      %v4990 = vadd.f32 %v4982, 1.0
      %v4991 = vadd.f32 %v4983, 1.0
      %v4992 = vadd.f32 %v4984, 1.0
      %v4993 = vadd.f32 %v4985, 1.0
      %v4994 = vmul.f32 %v4930, %v4986
      %v4995 = vmul.f32 %v4931, %v4987
      %v4996 = vmul.f32 %v4932, %v4988
      %v4997 = vmul.f32 %v4933, %v4989
      %v4998 = vmul.f32 %v4934, %v4990
      %v4999 = vmul.f32 %v4935, %v4991
      %v5000 = vmul.f32 %v4936, %v4992
      %v5001 = vmul.f32 %v4937, %v4993
      %v5002 = vpack.c.bf16 %v4996, %v4994
      %v5003 = vpack.c.bf16 %v4997, %v4995
      %v5004 = vpack.c.bf16 %v5000, %v4998
      %v5005 = vpack.c.bf16 %v5001, %v4999
      %v5038 = vunpack.c.l.b16 %v3209
      %v5039 = vunpack.c.l.b16 %v3210
      %v5040 = vunpack.c.l.b16 %v3211
      %v5041 = vunpack.c.l.b16 %v3212
      %v5042 = vunpack.c.l.b16 %v3213
      %v5043 = vunpack.c.l.b16 %v3214
      %v5044 = vunpack.c.l.b16 %v3215
      %v5045 = vunpack.c.l.b16 %v3216
      %v5046 = vunpack.c.l.b16 %v3217
      %v5047 = vunpack.c.l.b16 %v3218
      %v5048 = vunpack.c.l.b16 %v3219
      %v5049 = vunpack.c.l.b16 %v3220
      %v5050 = vunpack.c.l.b16 %v3221
      %v5051 = vunpack.c.l.b16 %v3222
      %v5052 = vunpack.c.l.b16 %v3223
      %v5053 = vunpack.c.l.b16 %v3224
      %v5054 = vunpack.c.l.b16 %v3225
      %v5055 = vunpack.c.l.b16 %v3226
      %v5056 = vunpack.c.l.b16 %v3227
      %v5057 = vunpack.c.l.b16 %v3228
      %v5058 = vunpack.c.l.b16 %v3229
      %v5059 = vunpack.c.l.b16 %v3230
      %v5060 = vunpack.c.l.b16 %v3231
      %v5061 = vunpack.c.l.b16 %v3232
      %v5062 = vunpack.c.l.b16 %v3233
      %v5063 = vunpack.c.l.b16 %v3234
      %v5064 = vunpack.c.l.b16 %v3235
      %v5065 = vunpack.c.l.b16 %v3236
      %v5066 = vunpack.c.l.b16 %v3237
      %v5067 = vunpack.c.l.b16 %v3238
      %v5068 = vunpack.c.l.b16 %v3239
      %v5069 = vunpack.c.l.b16 %v3240
      %v5070 = vpack.c.b16 %v5039, %v5038
      %v5071 = vpack.c.b16 %v5041, %v5040
      %v5072 = vpack.c.b16 %v5043, %v5042
      %v5073 = vpack.c.b16 %v5045, %v5044
      %v5074 = vpack.c.b16 %v5047, %v5046
      %v5075 = vpack.c.b16 %v5049, %v5048
      %v5076 = vpack.c.b16 %v5051, %v5050
      %v5077 = vpack.c.b16 %v5053, %v5052
      %v5078 = vpack.c.b16 %v5055, %v5054
      %v5079 = vpack.c.b16 %v5057, %v5056
      %v5080 = vpack.c.b16 %v5059, %v5058
      %v5081 = vpack.c.b16 %v5061, %v5060
      %v5082 = vpack.c.b16 %v5063, %v5062
      %v5083 = vpack.c.b16 %v5065, %v5064
      %v5084 = vpack.c.b16 %v5067, %v5066
      %v5085 = vpack.c.b16 %v5069, %v5068
      %5102 = vmatpush.bf16.msra.mxu0 %v5077
      %5103 = vmatpush.bf16.msra.mxu0 %v5076
      %5104 = vmatpush.bf16.msra.mxu0 %v5075
      %5105 = vmatpush.bf16.msra.mxu0 %v5074
      %5106 = vmatpush.bf16.msra.mxu0 %v5073
      %5107 = vmatpush.bf16.msra.mxu0 %v5072
      %5108 = vmatpush.bf16.msra.mxu0 %v5071
      %5109 = vmatpush.bf16.msra.mxu0 %v5070
      %5110 = vmatmul.bf16.gmra.mxu0 %v5002
      %v5111 = vpop.f32.mrf.mxu0
      %v5112 = vadd.f32 %v3248, %v5111
      %v5113 = vpop.f32.mrf.mxu0
      %v5114 = vadd.f32 %v3248, %v5113
      %5115 = vmatmul.bf16.gmra.mxu0 %v5004
      %v5116 = vpop.f32.mrf.mxu0
      %v5117 = vadd.f32 %v3248, %v5116
      %v5118 = vpop.f32.mrf.mxu0
      %v5119 = vadd.f32 %v3248, %v5118
      %5120 = vdwg.mxu0
      %5121 = vmatpush.bf16.msra.mxu0 %v5085
      %5122 = vmatpush.bf16.msra.mxu0 %v5084
      %5123 = vmatpush.bf16.msra.mxu0 %v5083
      %5124 = vmatpush.bf16.msra.mxu0 %v5082
      %5125 = vmatpush.bf16.msra.mxu0 %v5081
      %5126 = vmatpush.bf16.msra.mxu0 %v5080
      %5127 = vmatpush.bf16.msra.mxu0 %v5079
      %5128 = vmatpush.bf16.msra.mxu0 %v5078
      %5129 = vmatmul.bf16.gmra.mxu0 %v5003
      %v5130 = vpop.f32.mrf.mxu0
      %v5131 = vadd.f32 %v5112, %v5130
      %v5132 = vpop.f32.mrf.mxu0
      %v5133 = vadd.f32 %v5114, %v5132
      %5134 = vmatmul.bf16.gmra.mxu0 %v5005
      %v5135 = vpop.f32.mrf.mxu0
      %v5136 = vadd.f32 %v5117, %v5135
      %v5137 = vpop.f32.mrf.mxu0
      %v5138 = vadd.f32 %v5119, %v5137
      %5139 = vdwg.mxu0
      %v5140 = vadd.f32 %v4801, %v5131
      %v5141 = vadd.f32 %v4802, %v5133
      %v5142 = vadd.f32 %v4803, %v5136
      %v5143 = vadd.f32 %v4804, %v5138
      %5144 = vadd.xlane.f32.xlu0 %v5140
      %v5145 = vpop.xlane.xlu0 %5144
      %5146 = vadd.xlane.f32.xlu0 %v5141
      %v5147 = vpop.xlane.xlu0 %5146
      %5148 = vadd.xlane.f32.xlu0 %v5142
      %v5149 = vpop.xlane.xlu0 %5148
      %v5150 = vsel %vm283, %v5143, 0.0
      %5151 = vadd.xlane.f32.xlu0 %v5150
      %v5152 = vpop.xlane.xlu0 %5151
      %v5153 = vmul.f32 %v5145, %v2634
      %v5154 = vmul.f32 %v5147, %v2634
      %v5155 = vmul.f32 %v5149, %v2634
      %v5156 = vmul.f32 %v5152, %v2634
      %v5157 = vsub.f32 %v5140, %v5153
      %v5158 = vsub.f32 %v5141, %v5154
      %v5159 = vsub.f32 %v5142, %v5155
      %v5160 = vsub.f32 %v5143, %v5156
      %v5161 = vmul.f32 %v5157, %v5157
      %v5162 = vmul.f32 %v5158, %v5158
      %v5163 = vmul.f32 %v5159, %v5159
      %v5164 = vmul.f32 %v5160, %v5160
      %5165 = vadd.xlane.f32.xlu0 %v5161
      %v5166 = vpop.xlane.xlu0 %5165
      %5167 = vadd.xlane.f32.xlu0 %v5162
      %v5168 = vpop.xlane.xlu0 %5167
      %5169 = vadd.xlane.f32.xlu0 %v5163
      %v5170 = vpop.xlane.xlu0 %5169
      %v5171 = vsel %vm283, %v5164, 0.0
      %5172 = vadd.xlane.f32.xlu0 %v5171
      %v5173 = vpop.xlane.xlu0 %5172
      %v5174 = vmul.f32 %v5166, %v2634
      %v5175 = vmul.f32 %v5168, %v2634
      %v5176 = vmul.f32 %v5170, %v2634
      %v5177 = vmul.f32 %v5173, %v2634
      %v5178 = vadd.f32 %v5174, 1e-05
      %v5179 = vadd.f32 %v5175, 1e-05
      %v5180 = vadd.f32 %v5176, 1e-05
      %v5181 = vadd.f32 %v5177, 1e-05
      %v5182 = vrsqrt.pop %v5178
      %v5183 = vmul.f32 %v5182, %v5178
      %v5184 = vmul.f32 %v5183, %v5182
      %v5185 = vmul.f32 0.5, %v5184
      %v5186 = vsub.f32 1.5, %v5185
      %v5187 = vmul.f32 %v5182, %v5186
      %vm5188 = vweird.f32 %v5178
      %vm5189 = vweird.f32 %v5182
      %vm5190 = vmor %vm5188, %vm5189
      %v5191 = vsel %vm5190, %v5182, %v5187
      %v5192 = vrsqrt.pop %v5179
      %v5193 = vmul.f32 %v5192, %v5179
      %v5194 = vmul.f32 %v5193, %v5192
      %v5195 = vmul.f32 0.5, %v5194
      %v5196 = vsub.f32 1.5, %v5195
      %v5197 = vmul.f32 %v5192, %v5196
      %vm5198 = vweird.f32 %v5179
      %vm5199 = vweird.f32 %v5192
      %vm5200 = vmor %vm5198, %vm5199
      %v5201 = vsel %vm5200, %v5192, %v5197
      %v5202 = vrsqrt.pop %v5180
      %v5203 = vmul.f32 %v5202, %v5180
      %v5204 = vmul.f32 %v5203, %v5202
      %v5205 = vmul.f32 0.5, %v5204
      %v5206 = vsub.f32 1.5, %v5205
      %v5207 = vmul.f32 %v5202, %v5206
      %vm5208 = vweird.f32 %v5180
      %vm5209 = vweird.f32 %v5202
      %vm5210 = vmor %vm5208, %vm5209
      %v5211 = vsel %vm5210, %v5202, %v5207
      %v5212 = vrsqrt.pop %v5181
      %v5213 = vmul.f32 %v5212, %v5181
      %v5214 = vmul.f32 %v5213, %v5212
      %v5215 = vmul.f32 0.5, %v5214
      %v5216 = vsub.f32 1.5, %v5215
      %v5217 = vmul.f32 %v5212, %v5216
      %vm5218 = vweird.f32 %v5181
      %vm5219 = vweird.f32 %v5212
      %vm5220 = vmor %vm5218, %vm5219
      %v5221 = vsel %vm5220, %v5212, %v5217
      %v5222 = vmul.f32 %v5157, %v5191
      %v5223 = vmul.f32 %v5158, %v5201
      %v5224 = vmul.f32 %v5159, %v5211
      %v5225 = vmul.f32 %v5160, %v5221
      %v5226 = vmul.f32 %v5222, %v3249
      %v5227 = vmul.f32 %v5223, %v3249
      %v5228 = vmul.f32 %v5224, %v3249
      %v5229 = vmul.f32 %v5225, %v3249
      %v5230 = vadd.f32 %v5226, %v3250
      %v5231 = vadd.f32 %v5227, %v3250
      %v5232 = vadd.f32 %v5228, %v3250
      %v5233 = vadd.f32 %v5229, %v3250
      %5234 = vst [vmem:[%s251] sm:$0xff] %v5230
      %5235 = vst [vmem:[%s251 + $0x8] sm:$0xff] %v5231
      %5236 = vst [vmem:[%s251 + $0x10] sm:$0xff] %v5232
      %5237 = vst [vmem:[%s251 + $0x18] sm:$0xf] %v5233
      %p5238 = scmp.lt.s32.totalorder %s17, 1
      %s5239 = scalar_select %p5238, %s17, 1
      %s5240 = smul.addr %s5239, 4
      %s5241 = smul.addr %s5240, 8
      %s5242 = scalar_lea.vmem %s6, %s5241
      // Predicated region
      $region45: #{mcnn_forward.1} parent=43 // pred_check
        %p5243 = pneg %p166
      $region46: #{mcnn_forward.1} parent=43 // pred_check_branch
        %5245 = sbr.rel (%p5243) target = $region48
      $region47: #{mcnn_forward.1} parent=43 // pred_region
        _
      $region48: #{mcnn_forward.1} parent=43 // pred_fallthru
        _
    $region44: #{mcnn_forward.1} parent=5 // pred_fallthru
      _
    %p5246 = scmp.le.s32.totalorder 2, %s12
    // Predicated region
    $region49: #{mcnn_forward.1} parent=5 // pred_check
      %p5247 = pneg %p5246
    $region50: #{mcnn_forward.1} parent=5 // pred_check_branch
      %5249 = sbr.rel (%p5247) target = $region52
    $region51: #{mcnn_forward.1} parent=5 // pred_region
      %s5250 = ssub.s32 %s12, 2
      // Predicated region
      $region53: #{mcnn_forward.1} parent=51 // pred_check
        %p5251 = pneg %p172
      $region54: #{mcnn_forward.1} parent=51 // pred_check_branch
        %5253 = sbr.rel (%p5251) target = $region56
      $region55: #{mcnn_forward.1} parent=51 // pred_region
        %p5254 = scmp.lt.s32.totalorder %s18, 1
        %s5255 = scalar_select %p5254, %s18, 1
        %s5256 = smul.addr %s5255, 4
        %s5257 = smul.addr %s5256, 8
        %s5258 = scalar_lea.vmem %s6, %s5257
      $region56: #{mcnn_forward.1} parent=51 // pred_fallthru
        _
    $region52: #{mcnn_forward.1} parent=5 // pred_fallthru
      _
  $region6: #{mcnn_forward.1} parent=0 // loop_footer
    %s16 = sadd.s32 1, %s12
  $region7: #{mcnn_forward.1} parent=0 // loop_footer_branch
    %11 = sbr.rel target = $region3
  $region8: #{mcnn_forward.1} parent=0 // loop_exit
    _

</llo_original>
